<compile_context>
chip_gen: v6e
topology: v6e:2x2x1
jax: 0.10.0
libtpu: 0.0.40
codegen_flags: <defaults>
</compile_context>

<pallas_src>
import functools

import jax
import jax.numpy as jnp
from jax.experimental import pallas as pl
from jax.experimental.pallas import tpu as pltpu

_BN_EPS = 1e-5
_CP = pltpu.CompilerParams(dimension_semantics=("arbitrary",))
# TODO(synk): on v7x (2 TensorCores) a 2-way "parallel" split of the lane axis
# for the large (N=512) layers would use both cores; skipped at these sizes.


# ----------------------------- Pallas kernels -----------------------------

def _matmul_bias_kernel(relu, x_ref, w_ref, b_ref, o_ref):
    # (Cout, K)bf16 @ (K, N)bf16 -> f32, + bias, optional fused ReLU.
    y = jnp.dot(w_ref[...], x_ref[...], preferred_element_type=jnp.float32)
    y = y + b_ref[...]
    if relu:
        y = jnp.maximum(y, 0.0)
    o_ref[...] = y


def _conv_bn_relu_kernel(n_inv, cols_ref, w_ref, b_ref, g_ref, be_ref, o_ref):
    # Encoder stage: conv3x3(im2col matmul) + bias -> BN(batch stats) -> ReLU.
    y = jnp.dot(w_ref[...], cols_ref[...], preferred_element_type=jnp.float32)
    y = y + b_ref[...]                                        # (Cout, N)
    mean = jnp.sum(y, axis=1, keepdims=True) * n_inv          # (Cout, 1)
    diff = y - mean
    var = jnp.sum(diff * diff, axis=1, keepdims=True) * n_inv
    scale = g_ref[...] * jax.lax.rsqrt(var + _BN_EPS)
    shift = be_ref[...] - mean * scale
    o_ref[...] = jnp.maximum(y * scale + shift, 0.0)


def _resblock_kernel(n_inv, cols_ref, w3_ref, b3_ref, g_ref, be_ref,
                     w1_ref, b1_ref, x_ref, o_ref):
    # relu( conv1x1( relu( BN( conv3x3(x) ) ) ) + x ), all resident in VMEM.
    h = jnp.dot(w3_ref[...], cols_ref[...], preferred_element_type=jnp.float32)
    h = h + b3_ref[...]                                       # (E, N)
    mean = jnp.sum(h, axis=1, keepdims=True) * n_inv
    diff = h - mean
    var = jnp.sum(diff * diff, axis=1, keepdims=True) * n_inv
    scale = g_ref[...] * jax.lax.rsqrt(var + _BN_EPS)
    shift = be_ref[...] - mean * scale
    a = jnp.maximum(h * scale + shift, 0.0)                   # (E, N)
    y = jnp.dot(w1_ref[...], a.astype(jnp.bfloat16),
                preferred_element_type=jnp.float32)
    y = y + b1_ref[...] + x_ref[...]
    o_ref[...] = jnp.maximum(y, 0.0)


def _gumbel_kernel(tau, z_ref, g_ref, wp_ref, bp_ref, et_ref,
                   codes_ref, logp_ref, embs_ref):
    # 1x1 proj -> gumbel-softmax (soft), log-softmax, argmax -> emb lookup.
    logits = jnp.dot(wp_ref[...], z_ref[...],
                     preferred_element_type=jnp.float32) + bp_ref[...]  # (S, N)
    pert = (logits + g_ref[...]) * (1.0 / tau)
    pmax = jnp.max(pert, axis=0, keepdims=True)
    pexp = jnp.exp(pert - pmax)
    denom = jnp.sum(pexp, axis=0, keepdims=True)
    codes = pexp * pl.reciprocal(denom, approx=True)

    lmax = jnp.max(logits, axis=0, keepdims=True)
    lsh = logits - lmax
    logp = lsh - jnp.log(jnp.sum(jnp.exp(lsh), axis=0, keepdims=True))

    # first-occurrence argmax over codebook (sublane) axis via iota/min
    n_codes = pert.shape[0]
    iota = jax.lax.broadcasted_iota(jnp.int32, pert.shape, 0)
    idx = jnp.min(jnp.where(pert == pmax, iota, n_codes), axis=0, keepdims=True)
    onehot = (iota == idx).astype(jnp.float32)                # (S, N)
    embs = jnp.dot(et_ref[...], onehot, preferred_element_type=jnp.float32)

    codes_ref[...] = codes
    logp_ref[...] = logp
    embs_ref[...] = embs


# ----------------------------- pallas_call helper -----------------------------

def _spec(shape):
    return pl.BlockSpec(tuple(shape), lambda i: (0,) * len(shape))


def _call(kernel, out_shapes, *args):
    multi = isinstance(out_shapes, (tuple, list))
    shapes = tuple(out_shapes) if multi else (out_shapes,)
    return pl.pallas_call(
        kernel,
        out_shape=tuple(shapes) if multi else shapes[0],
        grid=(1,),
        in_specs=[_spec(a.shape) for a in args],
        out_specs=(tuple(_spec(s.shape) for s in shapes)
                   if multi else _spec(shapes[0].shape)),
        compiler_params=_CP,
    )(*args)


# ----------------------------- layout glue + wrappers -----------------------------

def _im2col3x3(x):
    # x: (C, B, H, W) f32 -> (9*C, B*H*W) bf16, tap order (kh, kw, cin).
    C, B, H, W = x.shape
    xp = jnp.pad(x, ((0, 0), (0, 0), (1, 1), (1, 1)))
    cols = jnp.concatenate(
        [xp[:, :, kh:kh + H, kw:kw + W] for kh in range(3) for kw in range(3)],
        axis=0)
    return cols.reshape(9 * C, B * H * W).astype(jnp.bfloat16)


def conv3x3(x, w, b, relu=False):
    # x: (C, B, H, W); w: (Cout, 9*Cin) bf16; b: (Cout, 1) f32
    C, B, H, W = x.shape
    N = B * H * W
    Cout = w.shape[0]
    y = _call(functools.partial(_matmul_bias_kernel, relu),
              jax.ShapeDtypeStruct((Cout, N), jnp.float32),
              _im2col3x3(x), w, b)
    return y.reshape(Cout, B, H, W)


def conv1x1(x, w, b, relu=False):
    C, B, H, W = x.shape
    N = B * H * W
    Cout = w.shape[0]
    y = _call(functools.partial(_matmul_bias_kernel, relu),
              jax.ShapeDtypeStruct((Cout, N), jnp.float32),
              x.reshape(C, N).astype(jnp.bfloat16), w, b)
    return y.reshape(Cout, B, H, W)


def conv3x3_bn_relu(x, p):
    # Encoder stage kernel: relu(BN(conv3x3(x))) at full resolution.
    C, B, H, W = x.shape
    N = B * H * W
    Cout = p["w"].shape[0]
    y = _call(functools.partial(_conv_bn_relu_kernel, 1.0 / N),
              jax.ShapeDtypeStruct((Cout, N), jnp.float32),
              _im2col3x3(x), p["w"], p["b"], p["gamma"], p["beta"])
    return y.reshape(Cout, B, H, W)


def maxpool2x2(x):
    # relu already applied in-kernel; max-pool commutes with relu (monotone).
    return jnp.maximum(
        jnp.maximum(x[:, :, 0::2, 0::2], x[:, :, 0::2, 1::2]),
        jnp.maximum(x[:, :, 1::2, 0::2], x[:, :, 1::2, 1::2]))


def resblock(x, p):
    C, B, H, W = x.shape
    N = B * H * W
    y = _call(functools.partial(_resblock_kernel, 1.0 / N),
              jax.ShapeDtypeStruct((C, N), jnp.float32),
              _im2col3x3(x), p["w3"], p["b3"], p["gamma"], p["beta"],
              p["w1"], p["b1"], x.reshape(C, N))
    return y.reshape(C, B, H, W)


def gumbel_coding(z, p, key, tau=1.0):
    # GumbelCoding2d with num_codebooks=1, proj kernel_size=1.
    C, B, h, w = z.shape
    N = B * h * w
    S = p["wp"].shape[0]
    Fdim = p["emb_t"].shape[0]
    g = jax.random.gumbel(key, (S, N), dtype=jnp.float32)
    codes, logp, embs = _call(
        functools.partial(_gumbel_kernel, tau),
        (jax.ShapeDtypeStruct((S, N), jnp.float32),
         jax.ShapeDtypeStruct((S, N), jnp.float32),
         jax.ShapeDtypeStruct((Fdim, N), jnp.float32)),
        z.reshape(C, N), g, p["wp"], p["bp"], p["emb_t"])
    return (codes.reshape(S, B, h, w), logp.reshape(S, B, h, w),
            embs.reshape(Fdim, B, h, w))


def upsample_nearest2x(x):
    return jnp.repeat(jnp.repeat(x, 2, axis=2), 2, axis=3)


# ----------------------------- parameters & model -----------------------------

def init_params(key, num_channels=4, h_dim=8, codebook_size=16):
    keys = iter(jax.random.split(key, 64))

    def nrm(shape, s=0.1):
        return s * jax.random.normal(next(keys), shape, jnp.float32)

    def conv3x3_w(cin, cout):
        # (Cout, 3, 3, Cin) -> (Cout, 9*Cin); matches _im2col3x3 tap order.
        return nrm((cout, 3, 3, cin)).reshape(cout, 9 * cin).astype(jnp.bfloat16)

    def resblock_p(cin, exp):
        return {"w3": conv3x3_w(cin, exp), "b3": nrm((exp, 1), 0.01),
                "gamma": jnp.ones((exp, 1), jnp.float32),
                "beta": jnp.zeros((exp, 1), jnp.float32),
                "w1": nrm((cin, exp)).astype(jnp.bfloat16),
                "b1": nrm((cin, 1), 0.01)}

    params = {}
    enc = []
    cin, hd = num_channels, h_dim
    for _ in range(3):  # n_downsamples = 3
        enc.append({"w": conv3x3_w(cin, hd), "b": nrm((hd, 1), 0.01),
                    "gamma": jnp.ones((hd, 1), jnp.float32),
                    "beta": jnp.zeros((hd, 1), jnp.float32)})
        cin, hd = hd, hd * 2
    bott = cin  # == h_dim * 4
    params["enc"] = enc
    params["enc_res"] = [resblock_p(bott, bott // 2) for _ in range(2)]

    params["coding"] = {
        "wp": nrm((codebook_size, bott)),                  # (S, Cin) f32
        "bp": nrm((codebook_size, 1), 0.01),
        "emb_t": jax.random.normal(next(keys), (bott, codebook_size),
                                   jnp.float32),           # embeddings^T (F, S)
    }

    dec = {}
    hd = bott
    dec["res0"] = resblock_p(hd, hd // 2)
    ups = []
    for _ in range(3):  # n_upsamples = 3
        ups.append({"w": conv3x3_w(hd, hd // 2), "b": nrm((hd // 2, 1), 0.01)})
        hd //= 2
    dec["ups"] = ups
    dec["res1"] = resblock_p(hd, hd)
    dec["out"] = {"w": nrm((num_channels, hd)).astype(jnp.bfloat16),
                  "b": nrm((num_channels, 1), 0.01)}
    params["dec"] = dec
    return params


def vqvae2_forward(params, x_nchw, key, tau=1.0):
    # NCHW (PyTorch) -> channel-major (C, B, H, W): (batch*spatial) on lanes.
    x = jnp.transpose(x_nchw, (1, 0, 2, 3)).astype(jnp.float32)

    # encoder: 3 x [conv3x3 -> BN -> maxpool2 -> relu], then 2 bottleneck ResBlocks
    for p in params["enc"]:
        x = maxpool2x2(conv3x3_bn_relu(x, p))
    for p in params["enc_res"]:
        x = resblock(x, p)

    # gumbel coding (num_codebooks = 1)
    codes, logp, embs = gumbel_coding(x, params["coding"], key, tau)

    # decoder
    d = params["dec"]
    z = resblock(embs, d["res0"])
    for p in d["ups"]:
        z = upsample_nearest2x(z)
        z = conv3x3(z, p["w"], p["b"], relu=True)
    z = resblock(z, d["res1"])
    xhat = conv1x1(z, d["out"]["w"], d["out"]["b"], relu=False)

    # back to PyTorch conventions
    xhat = jnp.transpose(xhat, (1, 0, 2, 3))               # (B, C, H, W)
    codes = jnp.transpose(codes, (1, 0, 2, 3))[:, None]    # (B, 1, S, h, w)
    logp = jnp.transpose(logp, (1, 0, 2, 3))[:, None]      # (B, 1, S, h, w)
    return xhat, codes, logp


if __name__ == "__main__":
    key = jax.random.PRNGKey(0)
    pkey, xkey, gkey = jax.random.split(key, 3)

    num_channels, h_dim, codebook_size = 4, 8, 16
    params = init_params(pkey, num_channels, h_dim, codebook_size)
    x = jax.random.normal(xkey, (2, num_channels, 16, 16), dtype=jnp.float32)

    fwd = jax.jit(vqvae2_forward)
    xhat, codes, logp = fwd(params, x, gkey)
    jax.block_until_ready((xhat, codes, logp))

    assert xhat.shape == (2, num_channels, 16, 16)
    assert codes.shape == (2, 1, codebook_size, 2, 2)
    assert logp.shape == (2, 1, codebook_size, 2, 2)
    print("KERNEL_OK")
</pallas_src>

<mosaic_0001>
module attributes {stable_mosaic.version = 11 : i64} {
  func.func @_conv_bn_relu_kernel(%arg0: i32, %arg1: memref<36x512xbf16, #tpu.memory_space<vmem>>, %arg2: memref<8x36xbf16, #tpu.memory_space<vmem>>, %arg3: memref<8x1xf32, #tpu.memory_space<vmem>>, %arg4: memref<8x1xf32, #tpu.memory_space<vmem>>, %arg5: memref<8x1xf32, #tpu.memory_space<vmem>>, %arg6: memref<8x512xf32, #tpu.memory_space<vmem>>) attributes {dimension_semantics = [#tpu.dimension_semantics<arbitrary>], iteration_bounds = array<i64: 1>, scalar_prefetch = 0 : i64, scratch_operands = 0 : i64, tpu.core_type = #tpu.core_type<tc>, window_params = [{pipeline_mode = #tpu.pipeline_mode<synchronous>, transform_indices = @transform_0, window_bounds = array<i64: 36, 512>}, {pipeline_mode = #tpu.pipeline_mode<synchronous>, transform_indices = @transform_1, window_bounds = array<i64: 8, 36>}, {pipeline_mode = #tpu.pipeline_mode<synchronous>, transform_indices = @transform_2, window_bounds = array<i64: 8, 1>}, {pipeline_mode = #tpu.pipeline_mode<synchronous>, transform_indices = @transform_3, window_bounds = array<i64: 8, 1>}, {pipeline_mode = #tpu.pipeline_mode<synchronous>, transform_indices = @transform_4, window_bounds = array<i64: 8, 1>}, {pipeline_mode = #tpu.pipeline_mode<synchronous>, transform_indices = @transform_5, window_bounds = array<i64: 8, 512>}]} {
    %c0 = arith.constant 0 : index
    %c0_0 = arith.constant 0 : index
    %0 = vector.load %arg2[%c0, %c0_0] : memref<8x36xbf16, #tpu.memory_space<vmem>>, vector<8x36xbf16>
    %c0_1 = arith.constant 0 : index
    %c0_2 = arith.constant 0 : index
    %1 = vector.load %arg1[%c0_1, %c0_2] : memref<36x512xbf16, #tpu.memory_space<vmem>>, vector<36x512xbf16>
    %cst = arith.constant dense<0.000000e+00> : vector<8x512xf32>
    %2 = tpu.matmul %0, %1, %cst {dimension_numbers = #tpu.dot_dimension_numbers<[1], [0], [0], [1], [0, 0, 1, 1], [], []>} : vector<8x36xbf16>, vector<36x512xbf16>, vector<8x512xf32> -> vector<8x512xf32>
    %c0_3 = arith.constant 0 : index
    %c0_4 = arith.constant 0 : index
    %3 = vector.load %arg3[%c0_3, %c0_4] : memref<8x1xf32, #tpu.memory_space<vmem>>, vector<8x1xf32>
    %4 = vector.broadcast %3 : vector<8x1xf32> to vector<8x512xf32>
    %5 = arith.addf %2, %4 : vector<8x512xf32>
    %cst_5 = arith.constant dense<0.000000e+00> : vector<8xf32>
    %6 = vector.multi_reduction <add>, %5, %cst_5 [1] : vector<8x512xf32> to vector<8xf32>
    %7 = vector.shape_cast %6 : vector<8xf32> to vector<8x1xf32>
    %cst_6 = arith.constant 0.001953125 : f32
    %8 = vector.broadcast %cst_6 : f32 to vector<8x1xf32>
    %9 = arith.mulf %7, %8 : vector<8x1xf32>
    %10 = vector.broadcast %9 : vector<8x1xf32> to vector<8x512xf32>
    %11 = arith.subf %5, %10 : vector<8x512xf32>
    %12 = arith.mulf %11, %11 : vector<8x512xf32>
    %cst_7 = arith.constant dense<0.000000e+00> : vector<8xf32>
    %13 = vector.multi_reduction <add>, %12, %cst_7 [1] : vector<8x512xf32> to vector<8xf32>
    %14 = vector.shape_cast %13 : vector<8xf32> to vector<8x1xf32>
    %cst_8 = arith.constant 0.001953125 : f32
    %15 = vector.broadcast %cst_8 : f32 to vector<8x1xf32>
    %16 = arith.mulf %14, %15 : vector<8x1xf32>
    %c0_9 = arith.constant 0 : index
    %c0_10 = arith.constant 0 : index
    %17 = vector.load %arg4[%c0_9, %c0_10] : memref<8x1xf32, #tpu.memory_space<vmem>>, vector<8x1xf32>
    %cst_11 = arith.constant 9.99999974E-6 : f32
    %18 = vector.broadcast %cst_11 : f32 to vector<8x1xf32>
    %19 = arith.addf %16, %18 : vector<8x1xf32>
    %20 = math.rsqrt %19 : vector<8x1xf32>
    %21 = arith.mulf %17, %20 : vector<8x1xf32>
    %c0_12 = arith.constant 0 : index
    %c0_13 = arith.constant 0 : index
    %22 = vector.load %arg5[%c0_12, %c0_13] : memref<8x1xf32, #tpu.memory_space<vmem>>, vector<8x1xf32>
    %23 = arith.mulf %9, %21 : vector<8x1xf32>
    %24 = arith.subf %22, %23 : vector<8x1xf32>
    %25 = vector.broadcast %21 : vector<8x1xf32> to vector<8x512xf32>
    %26 = arith.mulf %5, %25 : vector<8x512xf32>
    %27 = vector.broadcast %24 : vector<8x1xf32> to vector<8x512xf32>
    %28 = arith.addf %26, %27 : vector<8x512xf32>
    %cst_14 = arith.constant 0.000000e+00 : f32
    %29 = vector.broadcast %cst_14 : f32 to vector<8x512xf32>
    %30 = arith.maximumf %28, %29 : vector<8x512xf32>
    %c0_15 = arith.constant 0 : index
    %c0_16 = arith.constant 0 : index
    %31 = vector.load %arg6[%c0_15, %c0_16] : memref<8x512xf32, #tpu.memory_space<vmem>>, vector<8x512xf32>
    tpu.vector_store %arg6[%c0_15, %c0_16], %30 {strides = array<i32>} : memref<8x512xf32, #tpu.memory_space<vmem>>, vector<8x512xf32>,
    return
  }
  func.func @transform_0(%arg0: i32) -> (i32, i32) {
    %c0_i32 = arith.constant 0 : i32
    %c0_i32_0 = arith.constant 0 : i32
    %c0_i32_1 = arith.constant 0 : i32
    return %c0_i32, %c0_i32_0 : i32, i32
  }
  func.func @transform_1(%arg0: i32) -> (i32, i32) {
    %c0_i32 = arith.constant 0 : i32
    %c0_i32_0 = arith.constant 0 : i32
    %c0_i32_1 = arith.constant 0 : i32
    return %c0_i32, %c0_i32_0 : i32, i32
  }
  func.func @transform_2(%arg0: i32) -> (i32, i32) {
    %c0_i32 = arith.constant 0 : i32
    %c0_i32_0 = arith.constant 0 : i32
    %c0_i32_1 = arith.constant 0 : i32
    return %c0_i32, %c0_i32_0 : i32, i32
  }
  func.func @transform_3(%arg0: i32) -> (i32, i32) {
    %c0_i32 = arith.constant 0 : i32
    %c0_i32_0 = arith.constant 0 : i32
    %c0_i32_1 = arith.constant 0 : i32
    return %c0_i32, %c0_i32_0 : i32, i32
  }
  func.func @transform_4(%arg0: i32) -> (i32, i32) {
    %c0_i32 = arith.constant 0 : i32
    %c0_i32_0 = arith.constant 0 : i32
    %c0_i32_1 = arith.constant 0 : i32
    return %c0_i32, %c0_i32_0 : i32, i32
  }
  func.func @transform_5(%arg0: i32) -> (i32, i32) {
    %c0_i32 = arith.constant 0 : i32
    %c0_i32_0 = arith.constant 0 : i32
    %c0_i32_1 = arith.constant 0 : i32
    return %c0_i32, %c0_i32_0 : i32, i32
  }
}

module attributes {stable_mosaic.version = 11 : i64} {
  func.func @_conv_bn_relu_kernel(%arg0: i32, %arg1: memref<72x128xbf16, #tpu.memory_space<vmem>>, %arg2: memref<16x72xbf16, #tpu.memory_space<vmem>>, %arg3: memref<16x1xf32, #tpu.memory_space<vmem>>, %arg4: memref<16x1xf32, #tpu.memory_space<vmem>>, %arg5: memref<16x1xf32, #tpu.memory_space<vmem>>, %arg6: memref<16x128xf32, #tpu.memory_space<vmem>>) attributes {dimension_semantics = [#tpu.dimension_semantics<arbitrary>], iteration_bounds = array<i64: 1>, scalar_prefetch = 0 : i64, scratch_operands = 0 : i64, tpu.core_type = #tpu.core_type<tc>, window_params = [{pipeline_mode = #tpu.pipeline_mode<synchronous>, transform_indices = @transform_0, window_bounds = array<i64: 72, 128>}, {pipeline_mode = #tpu.pipeline_mode<synchronous>, transform_indices = @transform_1, window_bounds = array<i64: 16, 72>}, {pipeline_mode = #tpu.pipeline_mode<synchronous>, transform_indices = @transform_2, window_bounds = array<i64: 16, 1>}, {pipeline_mode = #tpu.pipeline_mode<synchronous>, transform_indices = @transform_3, window_bounds = array<i64: 16, 1>}, {pipeline_mode = #tpu.pipeline_mode<synchronous>, transform_indices = @transform_4, window_bounds = array<i64: 16, 1>}, {pipeline_mode = #tpu.pipeline_mode<synchronous>, transform_indices = @transform_5, window_bounds = array<i64: 16, 128>}]} {
    %c0 = arith.constant 0 : index
    %c0_0 = arith.constant 0 : index
    %0 = vector.load %arg2[%c0, %c0_0] : memref<16x72xbf16, #tpu.memory_space<vmem>>, vector<16x72xbf16>
    %c0_1 = arith.constant 0 : index
    %c0_2 = arith.constant 0 : index
    %1 = vector.load %arg1[%c0_1, %c0_2] : memref<72x128xbf16, #tpu.memory_space<vmem>>, vector<72x128xbf16>
    %cst = arith.constant dense<0.000000e+00> : vector<16x128xf32>
    %2 = tpu.matmul %0, %1, %cst {dimension_numbers = #tpu.dot_dimension_numbers<[1], [0], [0], [1], [0, 0, 1, 1], [], []>} : vector<16x72xbf16>, vector<72x128xbf16>, vector<16x128xf32> -> vector<16x128xf32>
    %c0_3 = arith.constant 0 : index
    %c0_4 = arith.constant 0 : index
    %3 = vector.load %arg3[%c0_3, %c0_4] : memref<16x1xf32, #tpu.memory_space<vmem>>, vector<16x1xf32>
    %4 = vector.broadcast %3 : vector<16x1xf32> to vector<16x128xf32>
    %5 = arith.addf %2, %4 : vector<16x128xf32>
    %cst_5 = arith.constant dense<0.000000e+00> : vector<16xf32>
    %6 = vector.multi_reduction <add>, %5, %cst_5 [1] : vector<16x128xf32> to vector<16xf32>
    %7 = vector.shape_cast %6 : vector<16xf32> to vector<16x1xf32>
    %cst_6 = arith.constant 7.812500e-03 : f32
    %8 = vector.broadcast %cst_6 : f32 to vector<16x1xf32>
    %9 = arith.mulf %7, %8 : vector<16x1xf32>
    %10 = vector.broadcast %9 : vector<16x1xf32> to vector<16x128xf32>
    %11 = arith.subf %5, %10 : vector<16x128xf32>
    %12 = arith.mulf %11, %11 : vector<16x128xf32>
    %cst_7 = arith.constant dense<0.000000e+00> : vector<16xf32>
    %13 = vector.multi_reduction <add>, %12, %cst_7 [1] : vector<16x128xf32> to vector<16xf32>
    %14 = vector.shape_cast %13 : vector<16xf32> to vector<16x1xf32>
    %cst_8 = arith.constant 7.812500e-03 : f32
    %15 = vector.broadcast %cst_8 : f32 to vector<16x1xf32>
    %16 = arith.mulf %14, %15 : vector<16x1xf32>
    %c0_9 = arith.constant 0 : index
    %c0_10 = arith.constant 0 : index
    %17 = vector.load %arg4[%c0_9, %c0_10] : memref<16x1xf32, #tpu.memory_space<vmem>>, vector<16x1xf32>
    %cst_11 = arith.constant 9.99999974E-6 : f32
    %18 = vector.broadcast %cst_11 : f32 to vector<16x1xf32>
    %19 = arith.addf %16, %18 : vector<16x1xf32>
    %20 = math.rsqrt %19 : vector<16x1xf32>
    %21 = arith.mulf %17, %20 : vector<16x1xf32>
    %c0_12 = arith.constant 0 : index
    %c0_13 = arith.constant 0 : index
    %22 = vector.load %arg5[%c0_12, %c0_13] : memref<16x1xf32, #tpu.memory_space<vmem>>, vector<16x1xf32>
    %23 = arith.mulf %9, %21 : vector<16x1xf32>
    %24 = arith.subf %22, %23 : vector<16x1xf32>
    %25 = vector.broadcast %21 : vector<16x1xf32> to vector<16x128xf32>
    %26 = arith.mulf %5, %25 : vector<16x128xf32>
    %27 = vector.broadcast %24 : vector<16x1xf32> to vector<16x128xf32>
    %28 = arith.addf %26, %27 : vector<16x128xf32>
    %cst_14 = arith.constant 0.000000e+00 : f32
    %29 = vector.broadcast %cst_14 : f32 to vector<16x128xf32>
    %30 = arith.maximumf %28, %29 : vector<16x128xf32>
    %c0_15 = arith.constant 0 : index
    %c0_16 = arith.constant 0 : index
    %31 = vector.load %arg6[%c0_15, %c0_16] : memref<16x128xf32, #tpu.memory_space<vmem>>, vector<16x128xf32>
    tpu.vector_store %arg6[%c0_15, %c0_16], %30 {strides = array<i32>} : memref<16x128xf32, #tpu.memory_space<vmem>>, vector<16x128xf32>,
    return
  }
  func.func @transform_0(%arg0: i32) -> (i32, i32) {
    %c0_i32 = arith.constant 0 : i32
    %c0_i32_0 = arith.constant 0 : i32
    %c0_i32_1 = arith.constant 0 : i32
    return %c0_i32, %c0_i32_0 : i32, i32
  }
  func.func @transform_1(%arg0: i32) -> (i32, i32) {
    %c0_i32 = arith.constant 0 : i32
    %c0_i32_0 = arith.constant 0 : i32
    %c0_i32_1 = arith.constant 0 : i32
    return %c0_i32, %c0_i32_0 : i32, i32
  }
  func.func @transform_2(%arg0: i32) -> (i32, i32) {
    %c0_i32 = arith.constant 0 : i32
    %c0_i32_0 = arith.constant 0 : i32
    %c0_i32_1 = arith.constant 0 : i32
    return %c0_i32, %c0_i32_0 : i32, i32
  }
  func.func @transform_3(%arg0: i32) -> (i32, i32) {
    %c0_i32 = arith.constant 0 : i32
    %c0_i32_0 = arith.constant 0 : i32
    %c0_i32_1 = arith.constant 0 : i32
    return %c0_i32, %c0_i32_0 : i32, i32
  }
  func.func @transform_4(%arg0: i32) -> (i32, i32) {
    %c0_i32 = arith.constant 0 : i32
    %c0_i32_0 = arith.constant 0 : i32
    %c0_i32_1 = arith.constant 0 : i32
    return %c0_i32, %c0_i32_0 : i32, i32
  }
  func.func @transform_5(%arg0: i32) -> (i32, i32) {
    %c0_i32 = arith.constant 0 : i32
    %c0_i32_0 = arith.constant 0 : i32
    %c0_i32_1 = arith.constant 0 : i32
    return %c0_i32, %c0_i32_0 : i32, i32
  }
}

module attributes {stable_mosaic.version = 11 : i64} {
  func.func @_conv_bn_relu_kernel(%arg0: i32, %arg1: memref<144x32xbf16, #tpu.memory_space<vmem>>, %arg2: memref<32x144xbf16, #tpu.memory_space<vmem>>, %arg3: memref<32x1xf32, #tpu.memory_space<vmem>>, %arg4: memref<32x1xf32, #tpu.memory_space<vmem>>, %arg5: memref<32x1xf32, #tpu.memory_space<vmem>>, %arg6: memref<32x32xf32, #tpu.memory_space<vmem>>) attributes {dimension_semantics = [#tpu.dimension_semantics<arbitrary>], iteration_bounds = array<i64: 1>, scalar_prefetch = 0 : i64, scratch_operands = 0 : i64, tpu.core_type = #tpu.core_type<tc>, window_params = [{pipeline_mode = #tpu.pipeline_mode<synchronous>, transform_indices = @transform_0, window_bounds = array<i64: 144, 32>}, {pipeline_mode = #tpu.pipeline_mode<synchronous>, transform_indices = @transform_1, window_bounds = array<i64: 32, 144>}, {pipeline_mode = #tpu.pipeline_mode<synchronous>, transform_indices = @transform_2, window_bounds = array<i64: 32, 1>}, {pipeline_mode = #tpu.pipeline_mode<synchronous>, transform_indices = @transform_3, window_bounds = array<i64: 32, 1>}, {pipeline_mode = #tpu.pipeline_mode<synchronous>, transform_indices = @transform_4, window_bounds = array<i64: 32, 1>}, {pipeline_mode = #tpu.pipeline_mode<synchronous>, transform_indices = @transform_5, window_bounds = array<i64: 32, 32>}]} {
    %c0 = arith.constant 0 : index
    %c0_0 = arith.constant 0 : index
    %0 = vector.load %arg2[%c0, %c0_0] : memref<32x144xbf16, #tpu.memory_space<vmem>>, vector<32x144xbf16>
    %c0_1 = arith.constant 0 : index
    %c0_2 = arith.constant 0 : index
    %1 = vector.load %arg1[%c0_1, %c0_2] : memref<144x32xbf16, #tpu.memory_space<vmem>>, vector<144x32xbf16>
    %cst = arith.constant dense<0.000000e+00> : vector<32x32xf32>
    %2 = tpu.matmul %0, %1, %cst {dimension_numbers = #tpu.dot_dimension_numbers<[1], [0], [0], [1], [0, 0, 1, 1], [], []>} : vector<32x144xbf16>, vector<144x32xbf16>, vector<32x32xf32> -> vector<32x32xf32>
    %c0_3 = arith.constant 0 : index
    %c0_4 = arith.constant 0 : index
    %3 = vector.load %arg3[%c0_3, %c0_4] : memref<32x1xf32, #tpu.memory_space<vmem>>, vector<32x1xf32>
    %4 = vector.broadcast %3 : vector<32x1xf32> to vector<32x32xf32>
    %5 = arith.addf %2, %4 : vector<32x32xf32>
    %cst_5 = arith.constant dense<0.000000e+00> : vector<32xf32>
    %6 = vector.multi_reduction <add>, %5, %cst_5 [1] : vector<32x32xf32> to vector<32xf32>
    %7 = vector.shape_cast %6 : vector<32xf32> to vector<32x1xf32>
    %cst_6 = arith.constant 3.125000e-02 : f32
    %8 = vector.broadcast %cst_6 : f32 to vector<32x1xf32>
    %9 = arith.mulf %7, %8 : vector<32x1xf32>
    %10 = vector.broadcast %9 : vector<32x1xf32> to vector<32x32xf32>
    %11 = arith.subf %5, %10 : vector<32x32xf32>
    %12 = arith.mulf %11, %11 : vector<32x32xf32>
    %cst_7 = arith.constant dense<0.000000e+00> : vector<32xf32>
    %13 = vector.multi_reduction <add>, %12, %cst_7 [1] : vector<32x32xf32> to vector<32xf32>
    %14 = vector.shape_cast %13 : vector<32xf32> to vector<32x1xf32>
    %cst_8 = arith.constant 3.125000e-02 : f32
    %15 = vector.broadcast %cst_8 : f32 to vector<32x1xf32>
    %16 = arith.mulf %14, %15 : vector<32x1xf32>
    %c0_9 = arith.constant 0 : index
    %c0_10 = arith.constant 0 : index
    %17 = vector.load %arg4[%c0_9, %c0_10] : memref<32x1xf32, #tpu.memory_space<vmem>>, vector<32x1xf32>
    %cst_11 = arith.constant 9.99999974E-6 : f32
    %18 = vector.broadcast %cst_11 : f32 to vector<32x1xf32>
    %19 = arith.addf %16, %18 : vector<32x1xf32>
    %20 = math.rsqrt %19 : vector<32x1xf32>
    %21 = arith.mulf %17, %20 : vector<32x1xf32>
    %c0_12 = arith.constant 0 : index
    %c0_13 = arith.constant 0 : index
    %22 = vector.load %arg5[%c0_12, %c0_13] : memref<32x1xf32, #tpu.memory_space<vmem>>, vector<32x1xf32>
    %23 = arith.mulf %9, %21 : vector<32x1xf32>
    %24 = arith.subf %22, %23 : vector<32x1xf32>
    %25 = vector.broadcast %21 : vector<32x1xf32> to vector<32x32xf32>
    %26 = arith.mulf %5, %25 : vector<32x32xf32>
    %27 = vector.broadcast %24 : vector<32x1xf32> to vector<32x32xf32>
    %28 = arith.addf %26, %27 : vector<32x32xf32>
    %cst_14 = arith.constant 0.000000e+00 : f32
    %29 = vector.broadcast %cst_14 : f32 to vector<32x32xf32>
    %30 = arith.maximumf %28, %29 : vector<32x32xf32>
    %c0_15 = arith.constant 0 : index
    %c0_16 = arith.constant 0 : index
    %31 = vector.load %arg6[%c0_15, %c0_16] : memref<32x32xf32, #tpu.memory_space<vmem>>, vector<32x32xf32>
    tpu.vector_store %arg6[%c0_15, %c0_16], %30 {strides = array<i32>} : memref<32x32xf32, #tpu.memory_space<vmem>>, vector<32x32xf32>,
    return
  }
  func.func @transform_0(%arg0: i32) -> (i32, i32) {
    %c0_i32 = arith.constant 0 : i32
    %c0_i32_0 = arith.constant 0 : i32
    %c0_i32_1 = arith.constant 0 : i32
    return %c0_i32, %c0_i32_0 : i32, i32
  }
  func.func @transform_1(%arg0: i32) -> (i32, i32) {
    %c0_i32 = arith.constant 0 : i32
    %c0_i32_0 = arith.constant 0 : i32
    %c0_i32_1 = arith.constant 0 : i32
    return %c0_i32, %c0_i32_0 : i32, i32
  }
  func.func @transform_2(%arg0: i32) -> (i32, i32) {
    %c0_i32 = arith.constant 0 : i32
    %c0_i32_0 = arith.constant 0 : i32
    %c0_i32_1 = arith.constant 0 : i32
    return %c0_i32, %c0_i32_0 : i32, i32
  }
  func.func @transform_3(%arg0: i32) -> (i32, i32) {
    %c0_i32 = arith.constant 0 : i32
    %c0_i32_0 = arith.constant 0 : i32
    %c0_i32_1 = arith.constant 0 : i32
    return %c0_i32, %c0_i32_0 : i32, i32
  }
  func.func @transform_4(%arg0: i32) -> (i32, i32) {
    %c0_i32 = arith.constant 0 : i32
    %c0_i32_0 = arith.constant 0 : i32
    %c0_i32_1 = arith.constant 0 : i32
    return %c0_i32, %c0_i32_0 : i32, i32
  }
  func.func @transform_5(%arg0: i32) -> (i32, i32) {
    %c0_i32 = arith.constant 0 : i32
    %c0_i32_0 = arith.constant 0 : i32
    %c0_i32_1 = arith.constant 0 : i32
    return %c0_i32, %c0_i32_0 : i32, i32
  }
}

module attributes {stable_mosaic.version = 11 : i64} {
  func.func @_resblock_kernel(%arg0: i32, %arg1: memref<288x8xbf16, #tpu.memory_space<vmem>>, %arg2: memref<16x288xbf16, #tpu.memory_space<vmem>>, %arg3: memref<16x1xf32, #tpu.memory_space<vmem>>, %arg4: memref<16x1xf32, #tpu.memory_space<vmem>>, %arg5: memref<16x1xf32, #tpu.memory_space<vmem>>, %arg6: memref<32x16xbf16, #tpu.memory_space<vmem>>, %arg7: memref<32x1xf32, #tpu.memory_space<vmem>>, %arg8: memref<32x8xf32, #tpu.memory_space<vmem>>, %arg9: memref<32x8xf32, #tpu.memory_space<vmem>>) attributes {dimension_semantics = [#tpu.dimension_semantics<arbitrary>], iteration_bounds = array<i64: 1>, scalar_prefetch = 0 : i64, scratch_operands = 0 : i64, tpu.core_type = #tpu.core_type<tc>, window_params = [{pipeline_mode = #tpu.pipeline_mode<synchronous>, transform_indices = @transform_0, window_bounds = array<i64: 288, 8>}, {pipeline_mode = #tpu.pipeline_mode<synchronous>, transform_indices = @transform_1, window_bounds = array<i64: 16, 288>}, {pipeline_mode = #tpu.pipeline_mode<synchronous>, transform_indices = @transform_2, window_bounds = array<i64: 16, 1>}, {pipeline_mode = #tpu.pipeline_mode<synchronous>, transform_indices = @transform_3, window_bounds = array<i64: 16, 1>}, {pipeline_mode = #tpu.pipeline_mode<synchronous>, transform_indices = @transform_4, window_bounds = array<i64: 16, 1>}, {pipeline_mode = #tpu.pipeline_mode<synchronous>, transform_indices = @transform_5, window_bounds = array<i64: 32, 16>}, {pipeline_mode = #tpu.pipeline_mode<synchronous>, transform_indices = @transform_6, window_bounds = array<i64: 32, 1>}, {pipeline_mode = #tpu.pipeline_mode<synchronous>, transform_indices = @transform_7, window_bounds = array<i64: 32, 8>}, {pipeline_mode = #tpu.pipeline_mode<synchronous>, transform_indices = @transform_8, window_bounds = array<i64: 32, 8>}]} {
    %c0 = arith.constant 0 : index
    %c0_0 = arith.constant 0 : index
    %0 = vector.load %arg2[%c0, %c0_0] : memref<16x288xbf16, #tpu.memory_space<vmem>>, vector<16x288xbf16>
    %c0_1 = arith.constant 0 : index
    %c0_2 = arith.constant 0 : index
    %1 = vector.load %arg1[%c0_1, %c0_2] : memref<288x8xbf16, #tpu.memory_space<vmem>>, vector<288x8xbf16>
    %cst = arith.constant dense<0.000000e+00> : vector<16x8xf32>
    %2 = tpu.matmul %0, %1, %cst {dimension_numbers = #tpu.dot_dimension_numbers<[1], [0], [0], [1], [0, 0, 1, 1], [], []>} : vector<16x288xbf16>, vector<288x8xbf16>, vector<16x8xf32> -> vector<16x8xf32>
    %c0_3 = arith.constant 0 : index
    %c0_4 = arith.constant 0 : index
    %3 = vector.load %arg3[%c0_3, %c0_4] : memref<16x1xf32, #tpu.memory_space<vmem>>, vector<16x1xf32>
    %4 = vector.broadcast %3 : vector<16x1xf32> to vector<16x8xf32>
    %5 = arith.addf %2, %4 : vector<16x8xf32>
    %cst_5 = arith.constant dense<0.000000e+00> : vector<16xf32>
    %6 = vector.multi_reduction <add>, %5, %cst_5 [1] : vector<16x8xf32> to vector<16xf32>
    %7 = vector.shape_cast %6 : vector<16xf32> to vector<16x1xf32>
    %cst_6 = arith.constant 1.250000e-01 : f32
    %8 = vector.broadcast %cst_6 : f32 to vector<16x1xf32>
    %9 = arith.mulf %7, %8 : vector<16x1xf32>
    %10 = vector.broadcast %9 : vector<16x1xf32> to vector<16x8xf32>
    %11 = arith.subf %5, %10 : vector<16x8xf32>
    %12 = arith.mulf %11, %11 : vector<16x8xf32>
    %cst_7 = arith.constant dense<0.000000e+00> : vector<16xf32>
    %13 = vector.multi_reduction <add>, %12, %cst_7 [1] : vector<16x8xf32> to vector<16xf32>
    %14 = vector.shape_cast %13 : vector<16xf32> to vector<16x1xf32>
    %cst_8 = arith.constant 1.250000e-01 : f32
    %15 = vector.broadcast %cst_8 : f32 to vector<16x1xf32>
    %16 = arith.mulf %14, %15 : vector<16x1xf32>
    %c0_9 = arith.constant 0 : index
    %c0_10 = arith.constant 0 : index
    %17 = vector.load %arg4[%c0_9, %c0_10] : memref<16x1xf32, #tpu.memory_space<vmem>>, vector<16x1xf32>
    %cst_11 = arith.constant 9.99999974E-6 : f32
    %18 = vector.broadcast %cst_11 : f32 to vector<16x1xf32>
    %19 = arith.addf %16, %18 : vector<16x1xf32>
    %20 = math.rsqrt %19 : vector<16x1xf32>
    %21 = arith.mulf %17, %20 : vector<16x1xf32>
    %c0_12 = arith.constant 0 : index
    %c0_13 = arith.constant 0 : index
    %22 = vector.load %arg5[%c0_12, %c0_13] : memref<16x1xf32, #tpu.memory_space<vmem>>, vector<16x1xf32>
    %23 = arith.mulf %9, %21 : vector<16x1xf32>
    %24 = arith.subf %22, %23 : vector<16x1xf32>
    %25 = vector.broadcast %21 : vector<16x1xf32> to vector<16x8xf32>
    %26 = arith.mulf %5, %25 : vector<16x8xf32>
    %27 = vector.broadcast %24 : vector<16x1xf32> to vector<16x8xf32>
    %28 = arith.addf %26, %27 : vector<16x8xf32>
    %cst_14 = arith.constant 0.000000e+00 : f32
    %29 = vector.broadcast %cst_14 : f32 to vector<16x8xf32>
    %30 = arith.maximumf %28, %29 : vector<16x8xf32>
    %c0_15 = arith.constant 0 : index
    %c0_16 = arith.constant 0 : index
    %31 = vector.load %arg6[%c0_15, %c0_16] : memref<32x16xbf16, #tpu.memory_space<vmem>>, vector<32x16xbf16>
    %32 = arith.truncf %30 : vector<16x8xf32> to vector<16x8xbf16>
    %cst_17 = arith.constant dense<0.000000e+00> : vector<32x8xf32>
    %33 = tpu.matmul %31, %32, %cst_17 {dimension_numbers = #tpu.dot_dimension_numbers<[1], [0], [0], [1], [0, 0, 1, 1], [], []>} : vector<32x16xbf16>, vector<16x8xbf16>, vector<32x8xf32> -> vector<32x8xf32>
    %c0_18 = arith.constant 0 : index
    %c0_19 = arith.constant 0 : index
    %34 = vector.load %arg7[%c0_18, %c0_19] : memref<32x1xf32, #tpu.memory_space<vmem>>, vector<32x1xf32>
    %35 = vector.broadcast %34 : vector<32x1xf32> to vector<32x8xf32>
    %36 = arith.addf %33, %35 : vector<32x8xf32>
    %c0_20 = arith.constant 0 : index
    %c0_21 = arith.constant 0 : index
    %37 = vector.load %arg8[%c0_20, %c0_21] : memref<32x8xf32, #tpu.memory_space<vmem>>, vector<32x8xf32>
    %38 = arith.addf %36, %37 : vector<32x8xf32>
    %cst_22 = arith.constant 0.000000e+00 : f32
    %39 = vector.broadcast %cst_22 : f32 to vector<32x8xf32>
    %40 = arith.maximumf %38, %39 : vector<32x8xf32>
    %c0_23 = arith.constant 0 : index
    %c0_24 = arith.constant 0 : index
    %41 = vector.load %arg9[%c0_23, %c0_24] : memref<32x8xf32, #tpu.memory_space<vmem>>, vector<32x8xf32>
    tpu.vector_store %arg9[%c0_23, %c0_24], %40 {strides = array<i32>} : memref<32x8xf32, #tpu.memory_space<vmem>>, vector<32x8xf32>,
    return
  }
  func.func @transform_0(%arg0: i32) -> (i32, i32) {
    %c0_i32 = arith.constant 0 : i32
    %c0_i32_0 = arith.constant 0 : i32
    %c0_i32_1 = arith.constant 0 : i32
    return %c0_i32, %c0_i32_0 : i32, i32
  }
  func.func @transform_1(%arg0: i32) -> (i32, i32) {
    %c0_i32 = arith.constant 0 : i32
    %c0_i32_0 = arith.constant 0 : i32
    %c0_i32_1 = arith.constant 0 : i32
    return %c0_i32, %c0_i32_0 : i32, i32
  }
  func.func @transform_2(%arg0: i32) -> (i32, i32) {
    %c0_i32 = arith.constant 0 : i32
    %c0_i32_0 = arith.constant 0 : i32
    %c0_i32_1 = arith.constant 0 : i32
    return %c0_i32, %c0_i32_0 : i32, i32
  }
  func.func @transform_3(%arg0: i32) -> (i32, i32) {
    %c0_i32 = arith.constant 0 : i32
    %c0_i32_0 = arith.constant 0 : i32
    %c0_i32_1 = arith.constant 0 : i32
    return %c0_i32, %c0_i32_0 : i32, i32
  }
  func.func @transform_4(%arg0: i32) -> (i32, i32) {
    %c0_i32 = arith.constant 0 : i32
    %c0_i32_0 = arith.constant 0 : i32
    %c0_i32_1 = arith.constant 0 : i32
    return %c0_i32, %c0_i32_0 : i32, i32
  }
  func.func @transform_5(%arg0: i32) -> (i32, i32) {
    %c0_i32 = arith.constant 0 : i32
    %c0_i32_0 = arith.constant 0 : i32
    %c0_i32_1 = arith.constant 0 : i32
    return %c0_i32, %c0_i32_0 : i32, i32
  }
  func.func @transform_6(%arg0: i32) -> (i32, i32) {
    %c0_i32 = arith.constant 0 : i32
    %c0_i32_0 = arith.constant 0 : i32
    %c0_i32_1 = arith.constant 0 : i32
    return %c0_i32, %c0_i32_0 : i32, i32
  }
  func.func @transform_7(%arg0: i32) -> (i32, i32) {
    %c0_i32 = arith.constant 0 : i32
    %c0_i32_0 = arith.constant 0 : i32
    %c0_i32_1 = arith.constant 0 : i32
    return %c0_i32, %c0_i32_0 : i32, i32
  }
  func.func @transform_8(%arg0: i32) -> (i32, i32) {
    %c0_i32 = arith.constant 0 : i32
    %c0_i32_0 = arith.constant 0 : i32
    %c0_i32_1 = arith.constant 0 : i32
    return %c0_i32, %c0_i32_0 : i32, i32
  }
}

module attributes {stable_mosaic.version = 11 : i64} {
  func.func @_gumbel_kernel(%arg0: i32, %arg1: memref<32x8xf32, #tpu.memory_space<vmem>>, %arg2: memref<16x8xf32, #tpu.memory_space<vmem>>, %arg3: memref<16x32xf32, #tpu.memory_space<vmem>>, %arg4: memref<16x1xf32, #tpu.memory_space<vmem>>, %arg5: memref<32x16xf32, #tpu.memory_space<vmem>>, %arg6: memref<16x8xf32, #tpu.memory_space<vmem>>, %arg7: memref<16x8xf32, #tpu.memory_space<vmem>>, %arg8: memref<32x8xf32, #tpu.memory_space<vmem>>) attributes {dimension_semantics = [#tpu.dimension_semantics<arbitrary>], iteration_bounds = array<i64: 1>, scalar_prefetch = 0 : i64, scratch_operands = 0 : i64, tpu.core_type = #tpu.core_type<tc>, window_params = [{pipeline_mode = #tpu.pipeline_mode<synchronous>, transform_indices = @transform_0, window_bounds = array<i64: 32, 8>}, {pipeline_mode = #tpu.pipeline_mode<synchronous>, transform_indices = @transform_1, window_bounds = array<i64: 16, 8>}, {pipeline_mode = #tpu.pipeline_mode<synchronous>, transform_indices = @transform_2, window_bounds = array<i64: 16, 32>}, {pipeline_mode = #tpu.pipeline_mode<synchronous>, transform_indices = @transform_3, window_bounds = array<i64: 16, 1>}, {pipeline_mode = #tpu.pipeline_mode<synchronous>, transform_indices = @transform_4, window_bounds = array<i64: 32, 16>}, {pipeline_mode = #tpu.pipeline_mode<synchronous>, transform_indices = @transform_5, window_bounds = array<i64: 16, 8>}, {pipeline_mode = #tpu.pipeline_mode<synchronous>, transform_indices = @transform_6, window_bounds = array<i64: 16, 8>}, {pipeline_mode = #tpu.pipeline_mode<synchronous>, transform_indices = @transform_7, window_bounds = array<i64: 32, 8>}]} {
    %c0 = arith.constant 0 : index
    %c0_0 = arith.constant 0 : index
    %0 = vector.load %arg3[%c0, %c0_0] : memref<16x32xf32, #tpu.memory_space<vmem>>, vector<16x32xf32>
    %c0_1 = arith.constant 0 : index
    %c0_2 = arith.constant 0 : index
    %1 = vector.load %arg1[%c0_1, %c0_2] : memref<32x8xf32, #tpu.memory_space<vmem>>, vector<32x8xf32>
    %cst = arith.constant dense<0.000000e+00> : vector<16x8xf32>
    %2 = tpu.matmul %0, %1, %cst {dimension_numbers = #tpu.dot_dimension_numbers<[1], [0], [0], [1], [0, 0, 1, 1], [], []>} : vector<16x32xf32>, vector<32x8xf32>, vector<16x8xf32> -> vector<16x8xf32>
    %c0_3 = arith.constant 0 : index
    %c0_4 = arith.constant 0 : index
    %3 = vector.load %arg4[%c0_3, %c0_4] : memref<16x1xf32, #tpu.memory_space<vmem>>, vector<16x1xf32>
    %4 = vector.broadcast %3 : vector<16x1xf32> to vector<16x8xf32>
    %5 = arith.addf %2, %4 : vector<16x8xf32>
    %c0_5 = arith.constant 0 : index
    %c0_6 = arith.constant 0 : index
    %6 = vector.load %arg2[%c0_5, %c0_6] : memref<16x8xf32, #tpu.memory_space<vmem>>, vector<16x8xf32>
    %7 = arith.addf %5, %6 : vector<16x8xf32>
    %cst_7 = arith.constant 1.000000e+00 : f32
    %8 = vector.broadcast %cst_7 : f32 to vector<16x8xf32>
    %9 = arith.mulf %7, %8 : vector<16x8xf32>
    %cst_8 = arith.constant dense<0xFF800000> : vector<8xf32>
    %10 = vector.multi_reduction <maximumf>, %9, %cst_8 [0] : vector<16x8xf32> to vector<8xf32>
    %11 = vector.shape_cast %10 : vector<8xf32> to vector<1x8xf32>
    %12 = vector.broadcast %11 : vector<1x8xf32> to vector<16x8xf32>
    %13 = arith.subf %9, %12 : vector<16x8xf32>
    %14 = math.exp %13 : vector<16x8xf32>
    %cst_9 = arith.constant dense<0.000000e+00> : vector<8xf32>
    %15 = vector.multi_reduction <add>, %14, %cst_9 [0] : vector<16x8xf32> to vector<8xf32>
    %16 = vector.shape_cast %15 : vector<8xf32> to vector<1x8xf32>
    %17 = tpu.reciprocal %16 {approx = true} : vector<1x8xf32> -> vector<1x8xf32>
    %18 = vector.broadcast %17 : vector<1x8xf32> to vector<16x8xf32>
    %19 = arith.mulf %14, %18 : vector<16x8xf32>
    %cst_10 = arith.constant dense<0xFF800000> : vector<8xf32>
    %20 = vector.multi_reduction <maximumf>, %5, %cst_10 [0] : vector<16x8xf32> to vector<8xf32>
    %21 = vector.shape_cast %20 : vector<8xf32> to vector<1x8xf32>
    %22 = vector.broadcast %21 : vector<1x8xf32> to vector<16x8xf32>
    %23 = arith.subf %5, %22 : vector<16x8xf32>
    %24 = math.exp %23 : vector<16x8xf32>
    %cst_11 = arith.constant dense<0.000000e+00> : vector<8xf32>
    %25 = vector.multi_reduction <add>, %24, %cst_11 [0] : vector<16x8xf32> to vector<8xf32>
    %26 = vector.shape_cast %25 : vector<8xf32> to vector<1x8xf32>
    %27 = math.log %26 : vector<1x8xf32>
    %28 = vector.broadcast %27 : vector<1x8xf32> to vector<16x8xf32>
    %29 = arith.subf %23, %28 : vector<16x8xf32>
    %30 = tpu.iota {dimensions = array<i32: 0>} : vector<16x8xi32>
    %31 = vector.broadcast %11 : vector<1x8xf32> to vector<16x8xf32>
    %32 = arith.cmpf oeq, %9, %31 : vector<16x8xf32>
    %c16_i32 = arith.constant 16 : i32
    %33 = vector.broadcast %c16_i32 : i32 to vector<16x8xi32>
    %34 = arith.select %32, %30, %33 : vector<16x8xi1>, vector<16x8xi32>
    %cst_12 = arith.constant dense<2147483647> : vector<8xi32>
    %35 = vector.multi_reduction <minsi>, %34, %cst_12 [0] : vector<16x8xi32> to vector<8xi32>
    %36 = vector.shape_cast %35 : vector<8xi32> to vector<1x8xi32>
    %37 = vector.broadcast %36 : vector<1x8xi32> to vector<16x8xi32>
    %38 = arith.cmpi eq, %30, %37 : vector<16x8xi32>
    %39 = arith.extui %38 : vector<16x8xi1> to vector<16x8xi32>
    %40 = arith.sitofp %39 : vector<16x8xi32> to vector<16x8xf32>
    %c0_13 = arith.constant 0 : index
    %c0_14 = arith.constant 0 : index
    %41 = vector.load %arg5[%c0_13, %c0_14] : memref<32x16xf32, #tpu.memory_space<vmem>>, vector<32x16xf32>
    %cst_15 = arith.constant dense<0.000000e+00> : vector<32x8xf32>
    %42 = tpu.matmul %41, %40, %cst_15 {dimension_numbers = #tpu.dot_dimension_numbers<[1], [0], [0], [1], [0, 0, 1, 1], [], []>} : vector<32x16xf32>, vector<16x8xf32>, vector<32x8xf32> -> vector<32x8xf32>
    %c0_16 = arith.constant 0 : index
    %c0_17 = arith.constant 0 : index
    %43 = vector.load %arg6[%c0_16, %c0_17] : memref<16x8xf32, #tpu.memory_space<vmem>>, vector<16x8xf32>
    tpu.vector_store %arg6[%c0_16, %c0_17], %19 {strides = array<i32>} : memref<16x8xf32, #tpu.memory_space<vmem>>, vector<16x8xf32>,
    %c0_18 = arith.constant 0 : index
    %c0_19 = arith.constant 0 : index
    %44 = vector.load %arg7[%c0_18, %c0_19] : memref<16x8xf32, #tpu.memory_space<vmem>>, vector<16x8xf32>
    tpu.vector_store %arg7[%c0_18, %c0_19], %29 {strides = array<i32>} : memref<16x8xf32, #tpu.memory_space<vmem>>, vector<16x8xf32>,
    %c0_20 = arith.constant 0 : index
    %c0_21 = arith.constant 0 : index
    %45 = vector.load %arg8[%c0_20, %c0_21] : memref<32x8xf32, #tpu.memory_space<vmem>>, vector<32x8xf32>
    tpu.vector_store %arg8[%c0_20, %c0_21], %42 {strides = array<i32>} : memref<32x8xf32, #tpu.memory_space<vmem>>, vector<32x8xf32>,
    return
  }
  func.func @transform_0(%arg0: i32) -> (i32, i32) {
    %c0_i32 = arith.constant 0 : i32
    %c0_i32_0 = arith.constant 0 : i32
    %c0_i32_1 = arith.constant 0 : i32
    return %c0_i32, %c0_i32_0 : i32, i32
  }
  func.func @transform_1(%arg0: i32) -> (i32, i32) {
    %c0_i32 = arith.constant 0 : i32
    %c0_i32_0 = arith.constant 0 : i32
    %c0_i32_1 = arith.constant 0 : i32
    return %c0_i32, %c0_i32_0 : i32, i32
  }
  func.func @transform_2(%arg0: i32) -> (i32, i32) {
    %c0_i32 = arith.constant 0 : i32
    %c0_i32_0 = arith.constant 0 : i32
    %c0_i32_1 = arith.constant 0 : i32
    return %c0_i32, %c0_i32_0 : i32, i32
  }
  func.func @transform_3(%arg0: i32) -> (i32, i32) {
    %c0_i32 = arith.constant 0 : i32
    %c0_i32_0 = arith.constant 0 : i32
    %c0_i32_1 = arith.constant 0 : i32
    return %c0_i32, %c0_i32_0 : i32, i32
  }
  func.func @transform_4(%arg0: i32) -> (i32, i32) {
    %c0_i32 = arith.constant 0 : i32
    %c0_i32_0 = arith.constant 0 : i32
    %c0_i32_1 = arith.constant 0 : i32
    return %c0_i32, %c0_i32_0 : i32, i32
  }
  func.func @transform_5(%arg0: i32) -> (i32, i32) {
    %c0_i32 = arith.constant 0 : i32
    %c0_i32_0 = arith.constant 0 : i32
    %c0_i32_1 = arith.constant 0 : i32
    return %c0_i32, %c0_i32_0 : i32, i32
  }
  func.func @transform_6(%arg0: i32) -> (i32, i32) {
    %c0_i32 = arith.constant 0 : i32
    %c0_i32_0 = arith.constant 0 : i32
    %c0_i32_1 = arith.constant 0 : i32
    return %c0_i32, %c0_i32_0 : i32, i32
  }
  func.func @transform_7(%arg0: i32) -> (i32, i32) {
    %c0_i32 = arith.constant 0 : i32
    %c0_i32_0 = arith.constant 0 : i32
    %c0_i32_1 = arith.constant 0 : i32
    return %c0_i32, %c0_i32_0 : i32, i32
  }
}

module attributes {stable_mosaic.version = 11 : i64} {
  func.func @_matmul_bias_kernel(%arg0: i32, %arg1: memref<288x32xbf16, #tpu.memory_space<vmem>>, %arg2: memref<16x288xbf16, #tpu.memory_space<vmem>>, %arg3: memref<16x1xf32, #tpu.memory_space<vmem>>, %arg4: memref<16x32xf32, #tpu.memory_space<vmem>>) attributes {dimension_semantics = [#tpu.dimension_semantics<arbitrary>], iteration_bounds = array<i64: 1>, scalar_prefetch = 0 : i64, scratch_operands = 0 : i64, tpu.core_type = #tpu.core_type<tc>, window_params = [{pipeline_mode = #tpu.pipeline_mode<synchronous>, transform_indices = @transform_0, window_bounds = array<i64: 288, 32>}, {pipeline_mode = #tpu.pipeline_mode<synchronous>, transform_indices = @transform_1, window_bounds = array<i64: 16, 288>}, {pipeline_mode = #tpu.pipeline_mode<synchronous>, transform_indices = @transform_2, window_bounds = array<i64: 16, 1>}, {pipeline_mode = #tpu.pipeline_mode<synchronous>, transform_indices = @transform_3, window_bounds = array<i64: 16, 32>}]} {
    %c0 = arith.constant 0 : index
    %c0_0 = arith.constant 0 : index
    %0 = vector.load %arg2[%c0, %c0_0] : memref<16x288xbf16, #tpu.memory_space<vmem>>, vector<16x288xbf16>
    %c0_1 = arith.constant 0 : index
    %c0_2 = arith.constant 0 : index
    %1 = vector.load %arg1[%c0_1, %c0_2] : memref<288x32xbf16, #tpu.memory_space<vmem>>, vector<288x32xbf16>
    %cst = arith.constant dense<0.000000e+00> : vector<16x32xf32>
    %2 = tpu.matmul %0, %1, %cst {dimension_numbers = #tpu.dot_dimension_numbers<[1], [0], [0], [1], [0, 0, 1, 1], [], []>} : vector<16x288xbf16>, vector<288x32xbf16>, vector<16x32xf32> -> vector<16x32xf32>
    %c0_3 = arith.constant 0 : index
    %c0_4 = arith.constant 0 : index
    %3 = vector.load %arg3[%c0_3, %c0_4] : memref<16x1xf32, #tpu.memory_space<vmem>>, vector<16x1xf32>
    %4 = vector.broadcast %3 : vector<16x1xf32> to vector<16x32xf32>
    %5 = arith.addf %2, %4 : vector<16x32xf32>
    %cst_5 = arith.constant 0.000000e+00 : f32
    %6 = vector.broadcast %cst_5 : f32 to vector<16x32xf32>
    %7 = arith.maximumf %5, %6 : vector<16x32xf32>
    %c0_6 = arith.constant 0 : index
    %c0_7 = arith.constant 0 : index
    %8 = vector.load %arg4[%c0_6, %c0_7] : memref<16x32xf32, #tpu.memory_space<vmem>>, vector<16x32xf32>
    tpu.vector_store %arg4[%c0_6, %c0_7], %7 {strides = array<i32>} : memref<16x32xf32, #tpu.memory_space<vmem>>, vector<16x32xf32>,
    return
  }
  func.func @transform_0(%arg0: i32) -> (i32, i32) {
    %c0_i32 = arith.constant 0 : i32
    %c0_i32_0 = arith.constant 0 : i32
    %c0_i32_1 = arith.constant 0 : i32
    return %c0_i32, %c0_i32_0 : i32, i32
  }
  func.func @transform_1(%arg0: i32) -> (i32, i32) {
    %c0_i32 = arith.constant 0 : i32
    %c0_i32_0 = arith.constant 0 : i32
    %c0_i32_1 = arith.constant 0 : i32
    return %c0_i32, %c0_i32_0 : i32, i32
  }
  func.func @transform_2(%arg0: i32) -> (i32, i32) {
    %c0_i32 = arith.constant 0 : i32
    %c0_i32_0 = arith.constant 0 : i32
    %c0_i32_1 = arith.constant 0 : i32
    return %c0_i32, %c0_i32_0 : i32, i32
  }
  func.func @transform_3(%arg0: i32) -> (i32, i32) {
    %c0_i32 = arith.constant 0 : i32
    %c0_i32_0 = arith.constant 0 : i32
    %c0_i32_1 = arith.constant 0 : i32
    return %c0_i32, %c0_i32_0 : i32, i32
  }
}

module attributes {stable_mosaic.version = 11 : i64} {
  func.func @_matmul_bias_kernel(%arg0: i32, %arg1: memref<144x128xbf16, #tpu.memory_space<vmem>>, %arg2: memref<8x144xbf16, #tpu.memory_space<vmem>>, %arg3: memref<8x1xf32, #tpu.memory_space<vmem>>, %arg4: memref<8x128xf32, #tpu.memory_space<vmem>>) attributes {dimension_semantics = [#tpu.dimension_semantics<arbitrary>], iteration_bounds = array<i64: 1>, scalar_prefetch = 0 : i64, scratch_operands = 0 : i64, tpu.core_type = #tpu.core_type<tc>, window_params = [{pipeline_mode = #tpu.pipeline_mode<synchronous>, transform_indices = @transform_0, window_bounds = array<i64: 144, 128>}, {pipeline_mode = #tpu.pipeline_mode<synchronous>, transform_indices = @transform_1, window_bounds = array<i64: 8, 144>}, {pipeline_mode = #tpu.pipeline_mode<synchronous>, transform_indices = @transform_2, window_bounds = array<i64: 8, 1>}, {pipeline_mode = #tpu.pipeline_mode<synchronous>, transform_indices = @transform_3, window_bounds = array<i64: 8, 128>}]} {
    %c0 = arith.constant 0 : index
    %c0_0 = arith.constant 0 : index
    %0 = vector.load %arg2[%c0, %c0_0] : memref<8x144xbf16, #tpu.memory_space<vmem>>, vector<8x144xbf16>
    %c0_1 = arith.constant 0 : index
    %c0_2 = arith.constant 0 : index
    %1 = vector.load %arg1[%c0_1, %c0_2] : memref<144x128xbf16, #tpu.memory_space<vmem>>, vector<144x128xbf16>
    %cst = arith.constant dense<0.000000e+00> : vector<8x128xf32>
    %2 = tpu.matmul %0, %1, %cst {dimension_numbers = #tpu.dot_dimension_numbers<[1], [0], [0], [1], [0, 0, 1, 1], [], []>} : vector<8x144xbf16>, vector<144x128xbf16>, vector<8x128xf32> -> vector<8x128xf32>
    %c0_3 = arith.constant 0 : index
    %c0_4 = arith.constant 0 : index
    %3 = vector.load %arg3[%c0_3, %c0_4] : memref<8x1xf32, #tpu.memory_space<vmem>>, vector<8x1xf32>
    %4 = vector.broadcast %3 : vector<8x1xf32> to vector<8x128xf32>
    %5 = arith.addf %2, %4 : vector<8x128xf32>
    %cst_5 = arith.constant 0.000000e+00 : f32
    %6 = vector.broadcast %cst_5 : f32 to vector<8x128xf32>
    %7 = arith.maximumf %5, %6 : vector<8x128xf32>
    %c0_6 = arith.constant 0 : index
    %c0_7 = arith.constant 0 : index
    %8 = vector.load %arg4[%c0_6, %c0_7] : memref<8x128xf32, #tpu.memory_space<vmem>>, vector<8x128xf32>
    tpu.vector_store %arg4[%c0_6, %c0_7], %7 {strides = array<i32>} : memref<8x128xf32, #tpu.memory_space<vmem>>, vector<8x128xf32>,
    return
  }
  func.func @transform_0(%arg0: i32) -> (i32, i32) {
    %c0_i32 = arith.constant 0 : i32
    %c0_i32_0 = arith.constant 0 : i32
    %c0_i32_1 = arith.constant 0 : i32
    return %c0_i32, %c0_i32_0 : i32, i32
  }
  func.func @transform_1(%arg0: i32) -> (i32, i32) {
    %c0_i32 = arith.constant 0 : i32
    %c0_i32_0 = arith.constant 0 : i32
    %c0_i32_1 = arith.constant 0 : i32
    return %c0_i32, %c0_i32_0 : i32, i32
  }
  func.func @transform_2(%arg0: i32) -> (i32, i32) {
    %c0_i32 = arith.constant 0 : i32
    %c0_i32_0 = arith.constant 0 : i32
    %c0_i32_1 = arith.constant 0 : i32
    return %c0_i32, %c0_i32_0 : i32, i32
  }
  func.func @transform_3(%arg0: i32) -> (i32, i32) {
    %c0_i32 = arith.constant 0 : i32
    %c0_i32_0 = arith.constant 0 : i32
    %c0_i32_1 = arith.constant 0 : i32
    return %c0_i32, %c0_i32_0 : i32, i32
  }
}

module attributes {stable_mosaic.version = 11 : i64} {
  func.func @_matmul_bias_kernel(%arg0: i32, %arg1: memref<72x512xbf16, #tpu.memory_space<vmem>>, %arg2: memref<4x72xbf16, #tpu.memory_space<vmem>>, %arg3: memref<4x1xf32, #tpu.memory_space<vmem>>, %arg4: memref<4x512xf32, #tpu.memory_space<vmem>>) attributes {dimension_semantics = [#tpu.dimension_semantics<arbitrary>], iteration_bounds = array<i64: 1>, scalar_prefetch = 0 : i64, scratch_operands = 0 : i64, tpu.core_type = #tpu.core_type<tc>, window_params = [{pipeline_mode = #tpu.pipeline_mode<synchronous>, transform_indices = @transform_0, window_bounds = array<i64: 72, 512>}, {pipeline_mode = #tpu.pipeline_mode<synchronous>, transform_indices = @transform_1, window_bounds = array<i64: 4, 72>}, {pipeline_mode = #tpu.pipeline_mode<synchronous>, transform_indices = @transform_2, window_bounds = array<i64: 4, 1>}, {pipeline_mode = #tpu.pipeline_mode<synchronous>, transform_indices = @transform_3, window_bounds = array<i64: 4, 512>}]} {
    %c0 = arith.constant 0 : index
    %c0_0 = arith.constant 0 : index
    %0 = vector.load %arg2[%c0, %c0_0] : memref<4x72xbf16, #tpu.memory_space<vmem>>, vector<4x72xbf16>
    %c0_1 = arith.constant 0 : index
    %c0_2 = arith.constant 0 : index
    %1 = vector.load %arg1[%c0_1, %c0_2] : memref<72x512xbf16, #tpu.memory_space<vmem>>, vector<72x512xbf16>
    %cst = arith.constant dense<0.000000e+00> : vector<4x512xf32>
    %2 = tpu.matmul %0, %1, %cst {dimension_numbers = #tpu.dot_dimension_numbers<[1], [0], [0], [1], [0, 0, 1, 1], [], []>} : vector<4x72xbf16>, vector<72x512xbf16>, vector<4x512xf32> -> vector<4x512xf32>
    %c0_3 = arith.constant 0 : index
    %c0_4 = arith.constant 0 : index
    %3 = vector.load %arg3[%c0_3, %c0_4] : memref<4x1xf32, #tpu.memory_space<vmem>>, vector<4x1xf32>
    %4 = vector.broadcast %3 : vector<4x1xf32> to vector<4x512xf32>
    %5 = arith.addf %2, %4 : vector<4x512xf32>
    %cst_5 = arith.constant 0.000000e+00 : f32
    %6 = vector.broadcast %cst_5 : f32 to vector<4x512xf32>
    %7 = arith.maximumf %5, %6 : vector<4x512xf32>
    %c0_6 = arith.constant 0 : index
    %c0_7 = arith.constant 0 : index
    %8 = vector.load %arg4[%c0_6, %c0_7] : memref<4x512xf32, #tpu.memory_space<vmem>>, vector<4x512xf32>
    tpu.vector_store %arg4[%c0_6, %c0_7], %7 {strides = array<i32>} : memref<4x512xf32, #tpu.memory_space<vmem>>, vector<4x512xf32>,
    return
  }
  func.func @transform_0(%arg0: i32) -> (i32, i32) {
    %c0_i32 = arith.constant 0 : i32
    %c0_i32_0 = arith.constant 0 : i32
    %c0_i32_1 = arith.constant 0 : i32
    return %c0_i32, %c0_i32_0 : i32, i32
  }
  func.func @transform_1(%arg0: i32) -> (i32, i32) {
    %c0_i32 = arith.constant 0 : i32
    %c0_i32_0 = arith.constant 0 : i32
    %c0_i32_1 = arith.constant 0 : i32
    return %c0_i32, %c0_i32_0 : i32, i32
  }
  func.func @transform_2(%arg0: i32) -> (i32, i32) {
    %c0_i32 = arith.constant 0 : i32
    %c0_i32_0 = arith.constant 0 : i32
    %c0_i32_1 = arith.constant 0 : i32
    return %c0_i32, %c0_i32_0 : i32, i32
  }
  func.func @transform_3(%arg0: i32) -> (i32, i32) {
    %c0_i32 = arith.constant 0 : i32
    %c0_i32_0 = arith.constant 0 : i32
    %c0_i32_1 = arith.constant 0 : i32
    return %c0_i32, %c0_i32_0 : i32, i32
  }
}

module attributes {stable_mosaic.version = 11 : i64} {
  func.func @_resblock_kernel(%arg0: i32, %arg1: memref<36x512xbf16, #tpu.memory_space<vmem>>, %arg2: memref<4x36xbf16, #tpu.memory_space<vmem>>, %arg3: memref<4x1xf32, #tpu.memory_space<vmem>>, %arg4: memref<4x1xf32, #tpu.memory_space<vmem>>, %arg5: memref<4x1xf32, #tpu.memory_space<vmem>>, %arg6: memref<4x4xbf16, #tpu.memory_space<vmem>>, %arg7: memref<4x1xf32, #tpu.memory_space<vmem>>, %arg8: memref<4x512xf32, #tpu.memory_space<vmem>>, %arg9: memref<4x512xf32, #tpu.memory_space<vmem>>) attributes {dimension_semantics = [#tpu.dimension_semantics<arbitrary>], iteration_bounds = array<i64: 1>, scalar_prefetch = 0 : i64, scratch_operands = 0 : i64, tpu.core_type = #tpu.core_type<tc>, window_params = [{pipeline_mode = #tpu.pipeline_mode<synchronous>, transform_indices = @transform_0, window_bounds = array<i64: 36, 512>}, {pipeline_mode = #tpu.pipeline_mode<synchronous>, transform_indices = @transform_1, window_bounds = array<i64: 4, 36>}, {pipeline_mode = #tpu.pipeline_mode<synchronous>, transform_indices = @transform_2, window_bounds = array<i64: 4, 1>}, {pipeline_mode = #tpu.pipeline_mode<synchronous>, transform_indices = @transform_3, window_bounds = array<i64: 4, 1>}, {pipeline_mode = #tpu.pipeline_mode<synchronous>, transform_indices = @transform_4, window_bounds = array<i64: 4, 1>}, {pipeline_mode = #tpu.pipeline_mode<synchronous>, transform_indices = @transform_5, window_bounds = array<i64: 4, 4>}, {pipeline_mode = #tpu.pipeline_mode<synchronous>, transform_indices = @transform_6, window_bounds = array<i64: 4, 1>}, {pipeline_mode = #tpu.pipeline_mode<synchronous>, transform_indices = @transform_7, window_bounds = array<i64: 4, 512>}, {pipeline_mode = #tpu.pipeline_mode<synchronous>, transform_indices = @transform_8, window_bounds = array<i64: 4, 512>}]} {
    %c0 = arith.constant 0 : index
    %c0_0 = arith.constant 0 : index
    %0 = vector.load %arg2[%c0, %c0_0] : memref<4x36xbf16, #tpu.memory_space<vmem>>, vector<4x36xbf16>
    %c0_1 = arith.constant 0 : index
    %c0_2 = arith.constant 0 : index
    %1 = vector.load %arg1[%c0_1, %c0_2] : memref<36x512xbf16, #tpu.memory_space<vmem>>, vector<36x512xbf16>
    %cst = arith.constant dense<0.000000e+00> : vector<4x512xf32>
    %2 = tpu.matmul %0, %1, %cst {dimension_numbers = #tpu.dot_dimension_numbers<[1], [0], [0], [1], [0, 0, 1, 1], [], []>} : vector<4x36xbf16>, vector<36x512xbf16>, vector<4x512xf32> -> vector<4x512xf32>
    %c0_3 = arith.constant 0 : index
    %c0_4 = arith.constant 0 : index
    %3 = vector.load %arg3[%c0_3, %c0_4] : memref<4x1xf32, #tpu.memory_space<vmem>>, vector<4x1xf32>
    %4 = vector.broadcast %3 : vector<4x1xf32> to vector<4x512xf32>
    %5 = arith.addf %2, %4 : vector<4x512xf32>
    %cst_5 = arith.constant dense<0.000000e+00> : vector<4xf32>
    %6 = vector.multi_reduction <add>, %5, %cst_5 [1] : vector<4x512xf32> to vector<4xf32>
    %7 = vector.shape_cast %6 : vector<4xf32> to vector<4x1xf32>
    %cst_6 = arith.constant 0.001953125 : f32
    %8 = vector.broadcast %cst_6 : f32 to vector<4x1xf32>
    %9 = arith.mulf %7, %8 : vector<4x1xf32>
    %10 = vector.broadcast %9 : vector<4x1xf32> to vector<4x512xf32>
    %11 = arith.subf %5, %10 : vector<4x512xf32>
    %12 = arith.mulf %11, %11 : vector<4x512xf32>
    %cst_7 = arith.constant dense<0.000000e+00> : vector<4xf32>
    %13 = vector.multi_reduction <add>, %12, %cst_7 [1] : vector<4x512xf32> to vector<4xf32>
    %14 = vector.shape_cast %13 : vector<4xf32> to vector<4x1xf32>
    %cst_8 = arith.constant 0.001953125 : f32
    %15 = vector.broadcast %cst_8 : f32 to vector<4x1xf32>
    %16 = arith.mulf %14, %15 : vector<4x1xf32>
    %c0_9 = arith.constant 0 : index
    %c0_10 = arith.constant 0 : index
    %17 = vector.load %arg4[%c0_9, %c0_10] : memref<4x1xf32, #tpu.memory_space<vmem>>, vector<4x1xf32>
    %cst_11 = arith.constant 9.99999974E-6 : f32
    %18 = vector.broadcast %cst_11 : f32 to vector<4x1xf32>
    %19 = arith.addf %16, %18 : vector<4x1xf32>
    %20 = math.rsqrt %19 : vector<4x1xf32>
    %21 = arith.mulf %17, %20 : vector<4x1xf32>
    %c0_12 = arith.constant 0 : index
    %c0_13 = arith.constant 0 : index
    %22 = vector.load %arg5[%c0_12, %c0_13] : memref<4x1xf32, #tpu.memory_space<vmem>>, vector<4x1xf32>
    %23 = arith.mulf %9, %21 : vector<4x1xf32>
    %24 = arith.subf %22, %23 : vector<4x1xf32>
    %25 = vector.broadcast %21 : vector<4x1xf32> to vector<4x512xf32>
    %26 = arith.mulf %5, %25 : vector<4x512xf32>
    %27 = vector.broadcast %24 : vector<4x1xf32> to vector<4x512xf32>
    %28 = arith.addf %26, %27 : vector<4x512xf32>
    %cst_14 = arith.constant 0.000000e+00 : f32
    %29 = vector.broadcast %cst_14 : f32 to vector<4x512xf32>
    %30 = arith.maximumf %28, %29 : vector<4x512xf32>
    %c0_15 = arith.constant 0 : index
    %c0_16 = arith.constant 0 : index
    %31 = vector.load %arg6[%c0_15, %c0_16] : memref<4x4xbf16, #tpu.memory_space<vmem>>, vector<4x4xbf16>
    %32 = arith.truncf %30 : vector<4x512xf32> to vector<4x512xbf16>
    %cst_17 = arith.constant dense<0.000000e+00> : vector<4x512xf32>
    %33 = tpu.matmul %31, %32, %cst_17 {dimension_numbers = #tpu.dot_dimension_numbers<[1], [0], [0], [1], [0, 0, 1, 1], [], []>} : vector<4x4xbf16>, vector<4x512xbf16>, vector<4x512xf32> -> vector<4x512xf32>
    %c0_18 = arith.constant 0 : index
    %c0_19 = arith.constant 0 : index
    %34 = vector.load %arg7[%c0_18, %c0_19] : memref<4x1xf32, #tpu.memory_space<vmem>>, vector<4x1xf32>
    %35 = vector.broadcast %34 : vector<4x1xf32> to vector<4x512xf32>
    %36 = arith.addf %33, %35 : vector<4x512xf32>
    %c0_20 = arith.constant 0 : index
    %c0_21 = arith.constant 0 : index
    %37 = vector.load %arg8[%c0_20, %c0_21] : memref<4x512xf32, #tpu.memory_space<vmem>>, vector<4x512xf32>
    %38 = arith.addf %36, %37 : vector<4x512xf32>
    %cst_22 = arith.constant 0.000000e+00 : f32
    %39 = vector.broadcast %cst_22 : f32 to vector<4x512xf32>
    %40 = arith.maximumf %38, %39 : vector<4x512xf32>
    %c0_23 = arith.constant 0 : index
    %c0_24 = arith.constant 0 : index
    %41 = vector.load %arg9[%c0_23, %c0_24] : memref<4x512xf32, #tpu.memory_space<vmem>>, vector<4x512xf32>
    tpu.vector_store %arg9[%c0_23, %c0_24], %40 {strides = array<i32>} : memref<4x512xf32, #tpu.memory_space<vmem>>, vector<4x512xf32>,
    return
  }
  func.func @transform_0(%arg0: i32) -> (i32, i32) {
    %c0_i32 = arith.constant 0 : i32
    %c0_i32_0 = arith.constant 0 : i32
    %c0_i32_1 = arith.constant 0 : i32
    return %c0_i32, %c0_i32_0 : i32, i32
  }
  func.func @transform_1(%arg0: i32) -> (i32, i32) {
    %c0_i32 = arith.constant 0 : i32
    %c0_i32_0 = arith.constant 0 : i32
    %c0_i32_1 = arith.constant 0 : i32
    return %c0_i32, %c0_i32_0 : i32, i32
  }
  func.func @transform_2(%arg0: i32) -> (i32, i32) {
    %c0_i32 = arith.constant 0 : i32
    %c0_i32_0 = arith.constant 0 : i32
    %c0_i32_1 = arith.constant 0 : i32
    return %c0_i32, %c0_i32_0 : i32, i32
  }
  func.func @transform_3(%arg0: i32) -> (i32, i32) {
    %c0_i32 = arith.constant 0 : i32
    %c0_i32_0 = arith.constant 0 : i32
    %c0_i32_1 = arith.constant 0 : i32
    return %c0_i32, %c0_i32_0 : i32, i32
  }
  func.func @transform_4(%arg0: i32) -> (i32, i32) {
    %c0_i32 = arith.constant 0 : i32
    %c0_i32_0 = arith.constant 0 : i32
    %c0_i32_1 = arith.constant 0 : i32
    return %c0_i32, %c0_i32_0 : i32, i32
  }
  func.func @transform_5(%arg0: i32) -> (i32, i32) {
    %c0_i32 = arith.constant 0 : i32
    %c0_i32_0 = arith.constant 0 : i32
    %c0_i32_1 = arith.constant 0 : i32
    return %c0_i32, %c0_i32_0 : i32, i32
  }
  func.func @transform_6(%arg0: i32) -> (i32, i32) {
    %c0_i32 = arith.constant 0 : i32
    %c0_i32_0 = arith.constant 0 : i32
    %c0_i32_1 = arith.constant 0 : i32
    return %c0_i32, %c0_i32_0 : i32, i32
  }
  func.func @transform_7(%arg0: i32) -> (i32, i32) {
    %c0_i32 = arith.constant 0 : i32
    %c0_i32_0 = arith.constant 0 : i32
    %c0_i32_1 = arith.constant 0 : i32
    return %c0_i32, %c0_i32_0 : i32, i32
  }
  func.func @transform_8(%arg0: i32) -> (i32, i32) {
    %c0_i32 = arith.constant 0 : i32
    %c0_i32_0 = arith.constant 0 : i32
    %c0_i32_1 = arith.constant 0 : i32
    return %c0_i32, %c0_i32_0 : i32, i32
  }
}

module attributes {stable_mosaic.version = 11 : i64} {
  func.func @_matmul_bias_kernel(%arg0: i32, %arg1: memref<4x512xbf16, #tpu.memory_space<vmem>>, %arg2: memref<4x4xbf16, #tpu.memory_space<vmem>>, %arg3: memref<4x1xf32, #tpu.memory_space<vmem>>, %arg4: memref<4x512xf32, #tpu.memory_space<vmem>>) attributes {dimension_semantics = [#tpu.dimension_semantics<arbitrary>], iteration_bounds = array<i64: 1>, scalar_prefetch = 0 : i64, scratch_operands = 0 : i64, tpu.core_type = #tpu.core_type<tc>, window_params = [{pipeline_mode = #tpu.pipeline_mode<synchronous>, transform_indices = @transform_0, window_bounds = array<i64: 4, 512>}, {pipeline_mode = #tpu.pipeline_mode<synchronous>, transform_indices = @transform_1, window_bounds = array<i64: 4, 4>}, {pipeline_mode = #tpu.pipeline_mode<synchronous>, transform_indices = @transform_2, window_bounds = array<i64: 4, 1>}, {pipeline_mode = #tpu.pipeline_mode<synchronous>, transform_indices = @transform_3, window_bounds = array<i64: 4, 512>}]} {
    %c0 = arith.constant 0 : index
    %c0_0 = arith.constant 0 : index
    %0 = vector.load %arg2[%c0, %c0_0] : memref<4x4xbf16, #tpu.memory_space<vmem>>, vector<4x4xbf16>
    %c0_1 = arith.constant 0 : index
    %c0_2 = arith.constant 0 : index
    %1 = vector.load %arg1[%c0_1, %c0_2] : memref<4x512xbf16, #tpu.memory_space<vmem>>, vector<4x512xbf16>
    %cst = arith.constant dense<0.000000e+00> : vector<4x512xf32>
    %2 = tpu.matmul %0, %1, %cst {dimension_numbers = #tpu.dot_dimension_numbers<[1], [0], [0], [1], [0, 0, 1, 1], [], []>} : vector<4x4xbf16>, vector<4x512xbf16>, vector<4x512xf32> -> vector<4x512xf32>
    %c0_3 = arith.constant 0 : index
    %c0_4 = arith.constant 0 : index
    %3 = vector.load %arg3[%c0_3, %c0_4] : memref<4x1xf32, #tpu.memory_space<vmem>>, vector<4x1xf32>
    %4 = vector.broadcast %3 : vector<4x1xf32> to vector<4x512xf32>
    %5 = arith.addf %2, %4 : vector<4x512xf32>
    %c0_5 = arith.constant 0 : index
    %c0_6 = arith.constant 0 : index
    %6 = vector.load %arg4[%c0_5, %c0_6] : memref<4x512xf32, #tpu.memory_space<vmem>>, vector<4x512xf32>
    tpu.vector_store %arg4[%c0_5, %c0_6], %5 {strides = array<i32>} : memref<4x512xf32, #tpu.memory_space<vmem>>, vector<4x512xf32>,
    return
  }
  func.func @transform_0(%arg0: i32) -> (i32, i32) {
    %c0_i32 = arith.constant 0 : i32
    %c0_i32_0 = arith.constant 0 : i32
    %c0_i32_1 = arith.constant 0 : i32
    return %c0_i32, %c0_i32_0 : i32, i32
  }
  func.func @transform_1(%arg0: i32) -> (i32, i32) {
    %c0_i32 = arith.constant 0 : i32
    %c0_i32_0 = arith.constant 0 : i32
    %c0_i32_1 = arith.constant 0 : i32
    return %c0_i32, %c0_i32_0 : i32, i32
  }
  func.func @transform_2(%arg0: i32) -> (i32, i32) {
    %c0_i32 = arith.constant 0 : i32
    %c0_i32_0 = arith.constant 0 : i32
    %c0_i32_1 = arith.constant 0 : i32
    return %c0_i32, %c0_i32_0 : i32, i32
  }
  func.func @transform_3(%arg0: i32) -> (i32, i32) {
    %c0_i32 = arith.constant 0 : i32
    %c0_i32_0 = arith.constant 0 : i32
    %c0_i32_1 = arith.constant 0 : i32
    return %c0_i32, %c0_i32_0 : i32, i32
  }
}

</mosaic_0001>

<llo_original>
// kernel: vqvae2_forward.12
$region0: #{vqvae2_forward.12}
  #allocation0 [shape = 'u32[]', space=smem, size = 0x4, offset = 0x4, fixed_abs, tag = 'smem constant byte address 0x4 - core index']
  #allocation1 [shape = 'u32[144,128]{1,0:T(1,128)}', space=vmem, size = 0x12000, scoped, tag = 'internal scratch']
  %s0 = inlined_call_operand.vmem [shape: bf16[36,512], index: 0, kind: input, shape index: {}]
  %s1 = inlined_call_operand.vmem [shape: bf16[8,36], index: 1, kind: input, shape index: {}]
  %s2 = inlined_call_operand.vmem [shape: f32[8,1], index: 2, kind: input, shape index: {}]
  %s3 = inlined_call_operand.vmem [shape: f32[8,1], index: 3, kind: input, shape index: {}]
  %s4 = inlined_call_operand.vmem [shape: f32[8,1], index: 4, kind: input, shape index: {}]
  %s5 = inlined_call_operand.vmem [shape: f32[8,512], index: 5, kind: output, shape index: {}]
  %s6 = sld [smem:[#allocation0]]
  $region30: #{vqvae2_forward.12} parent=0
    _
  %s8 = ssub.s32 1, %s6
  %s9 = scalar_select 0, %s8, %s6
  // Predicated region
  $region2: #{vqvae2_forward.12} parent=0 // pred_check
    _
  $region3: #{vqvae2_forward.12} parent=0 // pred_check_branch
    %11 = sbr.rel (0) target = $region5
  $region4: #{vqvae2_forward.12} parent=0 // pred_region
    _
  $region5: #{vqvae2_forward.12} parent=0 // pred_fallthru
    _
  // Predicated region
  $region6: #{vqvae2_forward.12} parent=0 // pred_check
    _
  $region7: #{vqvae2_forward.12} parent=0 // pred_check_branch
    %13 = sbr.rel (0) target = $region9
  $region8: #{vqvae2_forward.12} parent=0 // pred_region
    _
  $region9: #{vqvae2_forward.12} parent=0 // pred_fallthru
    _
  // Predicated region
  $region10: #{vqvae2_forward.12} parent=0 // pred_check
    _
  $region11: #{vqvae2_forward.12} parent=0 // pred_check_branch
    %15 = sbr.rel (0) target = $region13
  $region12: #{vqvae2_forward.12} parent=0 // pred_region
    _
  $region13: #{vqvae2_forward.12} parent=0 // pred_fallthru
    _
  // Predicated region
  $region14: #{vqvae2_forward.12} parent=0 // pred_check
    _
  $region15: #{vqvae2_forward.12} parent=0 // pred_check_branch
    %17 = sbr.rel (0) target = $region17
  $region16: #{vqvae2_forward.12} parent=0 // pred_region
    _
  $region17: #{vqvae2_forward.12} parent=0 // pred_fallthru
    _
  // Predicated region
  $region18: #{vqvae2_forward.12} parent=0 // pred_check
    _
  $region19: #{vqvae2_forward.12} parent=0 // pred_check_branch
    %19 = sbr.rel (0) target = $region21
  $region20: #{vqvae2_forward.12} parent=0 // pred_region
    _
  $region21: #{vqvae2_forward.12} parent=0 // pred_fallthru
    _
  %v21 = vld [vmem:[%s1] sm:$0xf]
  %v22 = vld [vmem:[%s0] sm:$0xff]
  %v23 = vld [vmem:[%s0 + $0x8] sm:$0xff]
  %v24 = vld [vmem:[%s0 + $0x10] sm:$0xff]
  %v25 = vld [vmem:[%s0 + $0x18] sm:$0xff]
  %v26 = vld [vmem:[%s0 + $0x20] sm:$0xff]
  %v27 = vld [vmem:[%s0 + $0x28] sm:$0xff]
  %v28 = vld [vmem:[%s0 + $0x30] sm:$0xff]
  %v29 = vld [vmem:[%s0 + $0x38] sm:$0xff]
  %v30 = vld [vmem:[%s0 + $0x40] sm:$0x33]
  %v31 = vld [vmem:[%s0 + $0x48] sm:$0x33]
  %v32 = vld [vmem:[%s2] sm:$0xff]
  %34 = vset.pattern.permute.xlu0 0
  %35 = vperm.xlu0 %34, %v32
  %v36 = vpop.permute.xlu0 %35
  %v48 = vunpack.c.l.b16 %v22
  %v49 = vunpack.c.h.b16 %v22
  %v50 = vunpack.c.l.b16 %v23
  %v51 = vunpack.c.h.b16 %v23
  %v52 = vunpack.c.l.b16 %v24
  %v53 = vunpack.c.h.b16 %v24
  %v54 = vunpack.c.l.b16 %v25
  %v55 = vunpack.c.h.b16 %v25
  %v56 = vunpack.c.l.b16 %v26
  %v57 = vunpack.c.h.b16 %v26
  %v58 = vunpack.c.l.b16 %v27
  %v59 = vunpack.c.h.b16 %v27
  %v60 = vunpack.c.l.b16 %v28
  %v61 = vunpack.c.h.b16 %v28
  %v62 = vunpack.c.l.b16 %v29
  %v63 = vunpack.c.h.b16 %v29
  %v64 = vunpack.c.l.b16 %v30
  %v65 = vunpack.c.h.b16 %v30
  %v66 = vunpack.c.l.b16 %v31
  %v67 = vunpack.c.h.b16 %v31
  %v68 = vpack.c.b16 %v52, %v48
  %v69 = vpack.c.b16 %v53, %v49
  %v70 = vpack.c.b16 %v54, %v50
  %v71 = vpack.c.b16 %v55, %v51
  %v72 = vpack.c.b16 %v60, %v56
  %v73 = vpack.c.b16 %v61, %v57
  %v74 = vpack.c.b16 %v62, %v58
  %v75 = vpack.c.b16 %v63, %v59
  %v76 = vpack.c.b16 %v64, %v64
  %v77 = vpack.c.b16 %v65, %v65
  %v78 = vpack.c.b16 %v66, %v66
  %v79 = vpack.c.b16 %v67, %v67
  %vm88 = vcmask 293888
  %v90 = vsel %vm88, %v21, 0
  %vm92 = vcmask 1041408
  %v94 = vsel %vm92, %v76, 0
  %v97 = vsel %vm92, %v77, 0
  %v100 = vsel %vm92, %v78, 0
  %v103 = vsel %vm92, %v79, 0
  %105 = vmatprep.subr.bf16.mxu0 0
  %106 = vmatpush1.bf16.msra.mxu0 0
  %107 = vmatprep.subr.bf16.mxu0 0
  %108 = vmatpush1.bf16.msra.mxu0 0
  %109 = vmatprep.subr.bf16.mxu0 0
  %110 = vmatpush1.bf16.msra.mxu0 0
  %111 = vmatprep.subr.bf16.mxu0 0
  %112 = vmatpush1.bf16.msra.mxu0 0
  %113 = vmatprep.subr.bf16.mxu0 0
  %114 = vmatpush1.bf16.msra.mxu0 0
  %115 = vmatprep.subr.bf16.mxu0 %v97
  %116 = vmatpush1.bf16.msra.mxu0 %v94
  %117 = vmatprep.subr.bf16.mxu0 %v73
  %118 = vmatpush1.bf16.msra.mxu0 %v72
  %119 = vmatprep.subr.bf16.mxu0 %v69
  %120 = vmatpush1.bf16.msra.mxu0 %v68
  %121 = vmatprep.subr.bf16.mxu0 0
  %122 = vmatpush2.bf16.msra.mxu0 0
  %123 = vmatprep.subr.bf16.mxu0 0
  %124 = vmatpush2.bf16.msra.mxu0 0
  %125 = vmatprep.subr.bf16.mxu0 0
  %126 = vmatpush2.bf16.msra.mxu0 0
  %127 = vmatprep.subr.bf16.mxu0 0
  %128 = vmatpush2.bf16.msra.mxu0 0
  %129 = vmatprep.subr.bf16.mxu0 0
  %130 = vmatpush2.bf16.msra.mxu0 0
  %131 = vmatprep.subr.bf16.mxu0 0
  %132 = vmatpush2.bf16.msra.mxu0 0
  %133 = vmatprep.subr.bf16.mxu0 0
  %134 = vmatpush2.bf16.msra.mxu0 0
  %135 = vmatprep.subr.bf16.mxu0 0
  %136 = vmatpush2.bf16.msra.mxu0 0
  %137 = vmatprep.mubr.bf16.mxu0 0
  %138 = vmatmul.mubr.bf16.gmra.mxu0 %v90
  %v139 = vpop.f32.mrf.mxu0
  %v140 = vadd.f32 %v36, %v139
  %v141 = vpop.f32.mrf.mxu0
  %v142 = vadd.f32 %v36, %v141
  %v143 = vpop.f32.mrf.mxu0
  %v144 = vpop.f32.mrf.mxu0
  %145 = vdwg.mxu0
  %146 = vmatprep.subr.bf16.mxu0 0
  %147 = vmatpush1.bf16.msra.mxu0 0
  %148 = vmatprep.subr.bf16.mxu0 0
  %149 = vmatpush1.bf16.msra.mxu0 0
  %150 = vmatprep.subr.bf16.mxu0 0
  %151 = vmatpush1.bf16.msra.mxu0 0
  %152 = vmatprep.subr.bf16.mxu0 0
  %153 = vmatpush1.bf16.msra.mxu0 0
  %154 = vmatprep.subr.bf16.mxu0 0
  %155 = vmatpush1.bf16.msra.mxu0 0
  %156 = vmatprep.subr.bf16.mxu0 %v103
  %157 = vmatpush1.bf16.msra.mxu0 %v100
  %158 = vmatprep.subr.bf16.mxu0 %v75
  %159 = vmatpush1.bf16.msra.mxu0 %v74
  %160 = vmatprep.subr.bf16.mxu0 %v71
  %161 = vmatpush1.bf16.msra.mxu0 %v70
  %162 = vmatprep.subr.bf16.mxu0 0
  %163 = vmatpush2.bf16.msra.mxu0 0
  %164 = vmatprep.subr.bf16.mxu0 0
  %165 = vmatpush2.bf16.msra.mxu0 0
  %166 = vmatprep.subr.bf16.mxu0 0
  %167 = vmatpush2.bf16.msra.mxu0 0
  %168 = vmatprep.subr.bf16.mxu0 0
  %169 = vmatpush2.bf16.msra.mxu0 0
  %170 = vmatprep.subr.bf16.mxu0 0
  %171 = vmatpush2.bf16.msra.mxu0 0
  %172 = vmatprep.subr.bf16.mxu0 0
  %173 = vmatpush2.bf16.msra.mxu0 0
  %174 = vmatprep.subr.bf16.mxu0 0
  %175 = vmatpush2.bf16.msra.mxu0 0
  %176 = vmatprep.subr.bf16.mxu0 0
  %177 = vmatpush2.bf16.msra.mxu0 0
  %178 = vmatprep.mubr.bf16.mxu0 0
  %179 = vmatmul.mubr.bf16.gmra.mxu0 %v90
  %v180 = vpop.f32.mrf.mxu0
  %v181 = vadd.f32 %v36, %v180
  %v182 = vpop.f32.mrf.mxu0
  %v183 = vadd.f32 %v36, %v182
  %v184 = vpop.f32.mrf.mxu0
  %v185 = vpop.f32.mrf.mxu0
  %186 = vdwg.mxu0
  %v187 = vadd.f32 %v140, %v142
  %v188 = vadd.f32 %v187, %v181
  %v189 = vadd.f32 %v188, %v183
  %190 = vadd.xlane.f32.xlu0 %v189
  %v191 = vpop.xlane.xlu0 %190
  %v192 = vmul.f32 %v191, 0.001953125
  %v193 = vsub.f32 %v140, %v192
  %v194 = vsub.f32 %v142, %v192
  %v195 = vsub.f32 %v181, %v192
  %v196 = vsub.f32 %v183, %v192
  %v197 = vmul.f32 %v193, %v193
  %v198 = vmul.f32 %v194, %v194
  %v199 = vmul.f32 %v195, %v195
  %v200 = vmul.f32 %v196, %v196
  %v201 = vadd.f32 %v197, %v198
  %v202 = vadd.f32 %v201, %v199
  %v203 = vadd.f32 %v202, %v200
  %204 = vadd.xlane.f32.xlu0 %v203
  %v205 = vpop.xlane.xlu0 %204
  %v206 = vmul.f32 %v205, 0.001953125
  %v207 = vld [vmem:[%s3] sm:$0xff]
  %v208 = vadd.f32 %v206, 1e-05
  %v209 = vrsqrt.pop %v208
  %v210 = vmul.f32 %v207, %v209
  %v211 = vld [vmem:[%s4] sm:$0xff]
  %v212 = vmul.f32 %v192, %v210
  %v213 = vsub.f32 %v211, %v212
  %215 = vset.pattern.permute.xlu0 0
  %216 = vperm.xlu0 %215, %v210
  %v217 = vpop.permute.xlu0 %216
  %v219 = vmul.f32 %v140, %v217
  %v220 = vmul.f32 %v142, %v217
  %v221 = vmul.f32 %v181, %v217
  %v222 = vmul.f32 %v183, %v217
  %224 = vset.pattern.permute.xlu0 0
  %225 = vperm.xlu0 %224, %v213
  %v226 = vpop.permute.xlu0 %225
  %v228 = vadd.f32 %v219, %v226
  %v229 = vadd.f32 %v220, %v226
  %v230 = vadd.f32 %v221, %v226
  %v231 = vadd.f32 %v222, %v226
  %v232 = vmax.f32 %v228, 0.0
  %v233 = vmax.f32 %v229, 0.0
  %v234 = vmax.f32 %v230, 0.0
  %v235 = vmax.f32 %v231, 0.0
  %236 = vst [vmem:[%s5] sm:$0xff] %v232
  %237 = vst [vmem:[%s5 + $0x8] sm:$0xff] %v233
  %238 = vst [vmem:[%s5 + $0x10] sm:$0xff] %v234
  %239 = vst [vmem:[%s5 + $0x18] sm:$0xff] %v235
  // Predicated region
  $region22: #{vqvae2_forward.12} parent=0 // pred_check
    _
  $region23: #{vqvae2_forward.12} parent=0 // pred_check_branch
    %241 = sbr.rel (0) target = $region25
  $region24: #{vqvae2_forward.12} parent=0 // pred_region
    _
  $region25: #{vqvae2_forward.12} parent=0 // pred_fallthru
    _
  // Predicated region
  $region26: #{vqvae2_forward.12} parent=0 // pred_check
    _
  $region27: #{vqvae2_forward.12} parent=0 // pred_check_branch
    %243 = sbr.rel (0) target = $region29
  $region28: #{vqvae2_forward.12} parent=0 // pred_region
    _
  $region29: #{vqvae2_forward.12} parent=0 // pred_fallthru
    _

// kernel: vqvae2_forward.13
$region0: #{vqvae2_forward.13}
  #allocation0 [shape = 'u32[]', space=smem, size = 0x4, offset = 0x4, fixed_abs, tag = 'smem constant byte address 0x4 - core index']
  #allocation1 [shape = 'u32[144,128]{1,0:T(1,128)}', space=vmem, size = 0x12000, scoped, tag = 'internal scratch']
  %s0 = inlined_call_operand.vmem [shape: bf16[72,128], index: 0, kind: input, shape index: {}]
  %s1 = inlined_call_operand.vmem [shape: bf16[16,72], index: 1, kind: input, shape index: {}]
  %s2 = inlined_call_operand.vmem [shape: f32[16,1], index: 2, kind: input, shape index: {}]
  %s3 = inlined_call_operand.vmem [shape: f32[16,1], index: 3, kind: input, shape index: {}]
  %s4 = inlined_call_operand.vmem [shape: f32[16,1], index: 4, kind: input, shape index: {}]
  %s5 = inlined_call_operand.vmem [shape: f32[16,128], index: 5, kind: output, shape index: {}]
  %s6 = sld [smem:[#allocation0]]
  $region30: #{vqvae2_forward.13} parent=0
    _
  %s8 = ssub.s32 1, %s6
  %s9 = scalar_select 0, %s8, %s6
  // Predicated region
  $region2: #{vqvae2_forward.13} parent=0 // pred_check
    _
  $region3: #{vqvae2_forward.13} parent=0 // pred_check_branch
    %11 = sbr.rel (0) target = $region5
  $region4: #{vqvae2_forward.13} parent=0 // pred_region
    _
  $region5: #{vqvae2_forward.13} parent=0 // pred_fallthru
    _
  // Predicated region
  $region6: #{vqvae2_forward.13} parent=0 // pred_check
    _
  $region7: #{vqvae2_forward.13} parent=0 // pred_check_branch
    %13 = sbr.rel (0) target = $region9
  $region8: #{vqvae2_forward.13} parent=0 // pred_region
    _
  $region9: #{vqvae2_forward.13} parent=0 // pred_fallthru
    _
  // Predicated region
  $region10: #{vqvae2_forward.13} parent=0 // pred_check
    _
  $region11: #{vqvae2_forward.13} parent=0 // pred_check_branch
    %15 = sbr.rel (0) target = $region13
  $region12: #{vqvae2_forward.13} parent=0 // pred_region
    _
  $region13: #{vqvae2_forward.13} parent=0 // pred_fallthru
    _
  // Predicated region
  $region14: #{vqvae2_forward.13} parent=0 // pred_check
    _
  $region15: #{vqvae2_forward.13} parent=0 // pred_check_branch
    %17 = sbr.rel (0) target = $region17
  $region16: #{vqvae2_forward.13} parent=0 // pred_region
    _
  $region17: #{vqvae2_forward.13} parent=0 // pred_fallthru
    _
  // Predicated region
  $region18: #{vqvae2_forward.13} parent=0 // pred_check
    _
  $region19: #{vqvae2_forward.13} parent=0 // pred_check_branch
    %19 = sbr.rel (0) target = $region21
  $region20: #{vqvae2_forward.13} parent=0 // pred_region
    _
  $region21: #{vqvae2_forward.13} parent=0 // pred_fallthru
    _
  %v21 = vld [vmem:[%s1] sm:$0xf]
  %v22 = vld [vmem:[%s1 + $0x4] sm:$0xf]
  %v23 = vld [vmem:[%s0] sm:$0xf]
  %v24 = vld [vmem:[%s0 + $0x4] sm:$0xf]
  %v25 = vld [vmem:[%s0 + $0x8] sm:$0xf]
  %v26 = vld [vmem:[%s0 + $0xc] sm:$0xf]
  %v27 = vld [vmem:[%s0 + $0x10] sm:$0xf]
  %v28 = vld [vmem:[%s0 + $0x14] sm:$0xf]
  %v29 = vld [vmem:[%s0 + $0x18] sm:$0xf]
  %v30 = vld [vmem:[%s0 + $0x1c] sm:$0xf]
  %v31 = vld [vmem:[%s0 + $0x20] sm:$0xf]
  %v32 = vld [vmem:[%s2] sm:$0xff]
  %v33 = vld [vmem:[%s2 + $0x8] sm:$0xff]
  %35 = vset.pattern.permute.xlu0 0
  %36 = vperm.xlu0 %35, %v32
  %v37 = vpop.permute.xlu0 %36
  %40 = vset.pattern.permute.xlu0 0
  %41 = vperm.xlu0 %40, %v33
  %v42 = vpop.permute.xlu0 %41
  %v46 = vunpack.c.l.b16 %v21
  %v47 = vunpack.c.l.b16 %v22
  %v48 = vpack.c.b16 %v47, %v46
  %v58 = vunpack.c.l.b16 %v23
  %v59 = vunpack.c.l.b16 %v24
  %v60 = vunpack.c.l.b16 %v25
  %v61 = vunpack.c.l.b16 %v26
  %v62 = vunpack.c.l.b16 %v27
  %v63 = vunpack.c.l.b16 %v28
  %v64 = vunpack.c.l.b16 %v29
  %v65 = vunpack.c.l.b16 %v30
  %v66 = vunpack.c.l.b16 %v31
  %v67 = vpack.c.b16 %v59, %v58
  %v68 = vpack.c.b16 %v61, %v60
  %v69 = vpack.c.b16 %v63, %v62
  %v70 = vpack.c.b16 %v65, %v64
  %v71 = vpack.c.b16 %v66, %v66
  %vm76 = vcmask 588800
  %v78 = vsel %vm76, %v48, 0
  %vm80 = vcmask 1043456
  %v82 = vsel %vm80, %v71, 0
  %84 = vmatprep.subr.bf16.mxu0 0
  %85 = vmatpush1.bf16.msra.mxu0 0
  %86 = vmatprep.subr.bf16.mxu0 0
  %87 = vmatpush1.bf16.msra.mxu0 0
  %88 = vmatprep.subr.bf16.mxu0 0
  %89 = vmatpush1.bf16.msra.mxu0 0
  %90 = vmatprep.subr.bf16.mxu0 0
  %91 = vmatpush1.bf16.msra.mxu0 %v82
  %92 = vmatprep.subr.bf16.mxu0 0
  %93 = vmatpush1.bf16.msra.mxu0 %v70
  %94 = vmatprep.subr.bf16.mxu0 0
  %95 = vmatpush1.bf16.msra.mxu0 %v69
  %96 = vmatprep.subr.bf16.mxu0 0
  %97 = vmatpush1.bf16.msra.mxu0 %v68
  %98 = vmatprep.subr.bf16.mxu0 0
  %99 = vmatpush1.bf16.msra.mxu0 %v67
  %100 = vmatprep.subr.bf16.mxu0 0
  %101 = vmatpush2.bf16.msra.mxu0 0
  %102 = vmatprep.subr.bf16.mxu0 0
  %103 = vmatpush2.bf16.msra.mxu0 0
  %104 = vmatprep.subr.bf16.mxu0 0
  %105 = vmatpush2.bf16.msra.mxu0 0
  %106 = vmatprep.subr.bf16.mxu0 0
  %107 = vmatpush2.bf16.msra.mxu0 0
  %108 = vmatprep.subr.bf16.mxu0 0
  %109 = vmatpush2.bf16.msra.mxu0 0
  %110 = vmatprep.subr.bf16.mxu0 0
  %111 = vmatpush2.bf16.msra.mxu0 0
  %112 = vmatprep.subr.bf16.mxu0 0
  %113 = vmatpush2.bf16.msra.mxu0 0
  %114 = vmatprep.subr.bf16.mxu0 0
  %115 = vmatpush2.bf16.msra.mxu0 0
  %116 = vmatprep.mubr.bf16.mxu0 0
  %117 = vmatmul.mubr.bf16.gmra.mxu0 %v78
  %v118 = vpop.f32.mrf.mxu0
  %v119 = vadd.f32 %v37, %v118
  %v120 = vpop.f32.mrf.mxu0
  %v121 = vpop.f32.mrf.mxu0
  %v122 = vadd.f32 %v42, %v121
  %v123 = vpop.f32.mrf.mxu0
  %124 = vdwg.mxu0
  %125 = vadd.xlane.f32.xlu0 %v119
  %v126 = vpop.xlane.xlu0 %125
  %127 = vadd.xlane.f32.xlu0 %v122
  %v128 = vpop.xlane.xlu0 %127
  %v129 = vmul.f32 %v126, 0.0078125
  %v130 = vmul.f32 %v128, 0.0078125
  %v131 = vsub.f32 %v119, %v129
  %v132 = vsub.f32 %v122, %v130
  %v133 = vmul.f32 %v131, %v131
  %v134 = vmul.f32 %v132, %v132
  %135 = vadd.xlane.f32.xlu0 %v133
  %v136 = vpop.xlane.xlu0 %135
  %137 = vadd.xlane.f32.xlu0 %v134
  %v138 = vpop.xlane.xlu0 %137
  %v139 = vmul.f32 %v136, 0.0078125
  %v140 = vmul.f32 %v138, 0.0078125
  %v141 = vld [vmem:[%s3] sm:$0xff]
  %v142 = vld [vmem:[%s3 + $0x8] sm:$0xff]
  %v143 = vadd.f32 %v139, 1e-05
  %v144 = vadd.f32 %v140, 1e-05
  %v145 = vrsqrt.pop %v143
  %v146 = vrsqrt.pop %v144
  %v147 = vmul.f32 %v141, %v145
  %v148 = vmul.f32 %v142, %v146
  %v149 = vld [vmem:[%s4] sm:$0xff]
  %v150 = vld [vmem:[%s4 + $0x8] sm:$0xff]
  %v151 = vmul.f32 %v129, %v147
  %v152 = vmul.f32 %v130, %v148
  %v153 = vsub.f32 %v149, %v151
  %v154 = vsub.f32 %v150, %v152
  %156 = vset.pattern.permute.xlu0 0
  %157 = vperm.xlu0 %156, %v147
  %v158 = vpop.permute.xlu0 %157
  %161 = vset.pattern.permute.xlu0 0
  %162 = vperm.xlu0 %161, %v148
  %v163 = vpop.permute.xlu0 %162
  %v165 = vmul.f32 %v119, %v158
  %v166 = vmul.f32 %v122, %v163
  %168 = vset.pattern.permute.xlu0 0
  %169 = vperm.xlu0 %168, %v153
  %v170 = vpop.permute.xlu0 %169
  %173 = vset.pattern.permute.xlu0 0
  %174 = vperm.xlu0 %173, %v154
  %v175 = vpop.permute.xlu0 %174
  %v177 = vadd.f32 %v165, %v170
  %v178 = vadd.f32 %v166, %v175
  %v179 = vmax.f32 %v177, 0.0
  %v180 = vmax.f32 %v178, 0.0
  %181 = vst [vmem:[%s5] sm:$0xff] %v179
  %182 = vst [vmem:[%s5 + $0x8] sm:$0xff] %v180
  // Predicated region
  $region22: #{vqvae2_forward.13} parent=0 // pred_check
    _
  $region23: #{vqvae2_forward.13} parent=0 // pred_check_branch
    %184 = sbr.rel (0) target = $region25
  $region24: #{vqvae2_forward.13} parent=0 // pred_region
    _
  $region25: #{vqvae2_forward.13} parent=0 // pred_fallthru
    _
  // Predicated region
  $region26: #{vqvae2_forward.13} parent=0 // pred_check
    _
  $region27: #{vqvae2_forward.13} parent=0 // pred_check_branch
    %186 = sbr.rel (0) target = $region29
  $region28: #{vqvae2_forward.13} parent=0 // pred_region
    _
  $region29: #{vqvae2_forward.13} parent=0 // pred_fallthru
    _

// kernel: vqvae2_forward.14
$region0: #{vqvae2_forward.14}
  #allocation0 [shape = 'u32[]', space=smem, size = 0x4, offset = 0x4, fixed_abs, tag = 'smem constant byte address 0x4 - core index']
  #allocation1 [shape = 'u32[144,128]{1,0:T(1,128)}', space=vmem, size = 0x12000, scoped, tag = 'internal scratch']
  %s0 = inlined_call_operand.vmem [shape: bf16[144,32], index: 0, kind: input, shape index: {}]
  %s1 = inlined_call_operand.vmem [shape: bf16[32,144], index: 1, kind: input, shape index: {}]
  %s2 = inlined_call_operand.vmem [shape: f32[32,1], index: 2, kind: input, shape index: {}]
  %s3 = inlined_call_operand.vmem [shape: f32[32,1], index: 3, kind: input, shape index: {}]
  %s4 = inlined_call_operand.vmem [shape: f32[32,1], index: 4, kind: input, shape index: {}]
  %s5 = inlined_call_operand.vmem [shape: f32[32,32], index: 5, kind: output, shape index: {}]
  %s6 = sld [smem:[#allocation0]]
  $region30: #{vqvae2_forward.14} parent=0
    _
  %s8 = ssub.s32 1, %s6
  %s9 = scalar_select 0, %s8, %s6
  // Predicated region
  $region2: #{vqvae2_forward.14} parent=0 // pred_check
    _
  $region3: #{vqvae2_forward.14} parent=0 // pred_check_branch
    %11 = sbr.rel (0) target = $region5
  $region4: #{vqvae2_forward.14} parent=0 // pred_region
    _
  $region5: #{vqvae2_forward.14} parent=0 // pred_fallthru
    _
  // Predicated region
  $region6: #{vqvae2_forward.14} parent=0 // pred_check
    _
  $region7: #{vqvae2_forward.14} parent=0 // pred_check_branch
    %13 = sbr.rel (0) target = $region9
  $region8: #{vqvae2_forward.14} parent=0 // pred_region
    _
  $region9: #{vqvae2_forward.14} parent=0 // pred_fallthru
    _
  // Predicated region
  $region10: #{vqvae2_forward.14} parent=0 // pred_check
    _
  $region11: #{vqvae2_forward.14} parent=0 // pred_check_branch
    %15 = sbr.rel (0) target = $region13
  $region12: #{vqvae2_forward.14} parent=0 // pred_region
    _
  $region13: #{vqvae2_forward.14} parent=0 // pred_fallthru
    _
  // Predicated region
  $region14: #{vqvae2_forward.14} parent=0 // pred_check
    _
  $region15: #{vqvae2_forward.14} parent=0 // pred_check_branch
    %17 = sbr.rel (0) target = $region17
  $region16: #{vqvae2_forward.14} parent=0 // pred_region
    _
  $region17: #{vqvae2_forward.14} parent=0 // pred_fallthru
    _
  // Predicated region
  $region18: #{vqvae2_forward.14} parent=0 // pred_check
    _
  $region19: #{vqvae2_forward.14} parent=0 // pred_check_branch
    %19 = sbr.rel (0) target = $region21
  $region20: #{vqvae2_forward.14} parent=0 // pred_region
    _
  $region21: #{vqvae2_forward.14} parent=0 // pred_fallthru
    _
  %v21 = vld [vmem:[%s1] sm:$0xff]
  %v22 = vld [vmem:[%s1 + $0x8] sm:$0xff]
  %v23 = vld [vmem:[%s1 + $0x10] sm:$0xff]
  %v24 = vld [vmem:[%s1 + $0x18] sm:$0xff]
  %v25 = vld [vmem:[%s0] sm:$0xf]
  %v26 = vld [vmem:[%s0 + $0x4] sm:$0xf]
  %v27 = vld [vmem:[%s0 + $0x8] sm:$0xf]
  %v28 = vld [vmem:[%s0 + $0xc] sm:$0xf]
  %v29 = vld [vmem:[%s0 + $0x10] sm:$0xf]
  %v30 = vld [vmem:[%s0 + $0x14] sm:$0xf]
  %v31 = vld [vmem:[%s0 + $0x18] sm:$0xf]
  %v32 = vld [vmem:[%s0 + $0x1c] sm:$0xf]
  %v33 = vld [vmem:[%s0 + $0x20] sm:$0xf]
  %v34 = vld [vmem:[%s0 + $0x24] sm:$0xf]
  %v35 = vld [vmem:[%s0 + $0x28] sm:$0xf]
  %v36 = vld [vmem:[%s0 + $0x2c] sm:$0xf]
  %v37 = vld [vmem:[%s0 + $0x30] sm:$0xf]
  %v38 = vld [vmem:[%s0 + $0x34] sm:$0xf]
  %v39 = vld [vmem:[%s0 + $0x38] sm:$0xf]
  %v40 = vld [vmem:[%s0 + $0x3c] sm:$0xf]
  %v41 = vld [vmem:[%s0 + $0x40] sm:$0xf]
  %v42 = vld [vmem:[%s0 + $0x44] sm:$0xf]
  %v43 = vld [vmem:[%s2] sm:$0xff]
  %v44 = vld [vmem:[%s2 + $0x8] sm:$0xff]
  %v45 = vld [vmem:[%s2 + $0x10] sm:$0xff]
  %v46 = vld [vmem:[%s2 + $0x18] sm:$0xff]
  %48 = vset.pattern.permute.xlu0 0
  %49 = vperm.xlu0 %48, %v43
  %v50 = vpop.permute.xlu0 %49
  %53 = vset.pattern.permute.xlu0 0
  %54 = vperm.xlu0 %53, %v44
  %v55 = vpop.permute.xlu0 %54
  %58 = vset.pattern.permute.xlu0 0
  %59 = vperm.xlu0 %58, %v45
  %v60 = vpop.permute.xlu0 %59
  %63 = vset.pattern.permute.xlu0 0
  %64 = vperm.xlu0 %63, %v46
  %v65 = vpop.permute.xlu0 %64
  %v71 = vunpack.c.l.b16 %v21
  %v72 = vunpack.c.h.b16 %v21
  %v73 = vunpack.c.l.b16 %v22
  %v74 = vunpack.c.h.b16 %v22
  %v75 = vunpack.c.l.b16 %v23
  %v76 = vunpack.c.h.b16 %v23
  %v77 = vunpack.c.l.b16 %v24
  %v78 = vunpack.c.h.b16 %v24
  %v79 = vpack.c.b16 %v73, %v71
  %v80 = vpack.c.b16 %v74, %v72
  %v81 = vpack.c.b16 %v77, %v75
  %v82 = vpack.c.b16 %v78, %v76
  %v103 = vunpack.c.l.b16 %v25
  %v104 = vunpack.c.l.b16 %v26
  %v105 = vunpack.c.l.b16 %v27
  %v106 = vunpack.c.l.b16 %v28
  %v107 = vunpack.c.l.b16 %v29
  %v108 = vunpack.c.l.b16 %v30
  %v109 = vunpack.c.l.b16 %v31
  %v110 = vunpack.c.l.b16 %v32
  %v111 = vunpack.c.l.b16 %v33
  %v112 = vunpack.c.l.b16 %v34
  %v113 = vunpack.c.l.b16 %v35
  %v114 = vunpack.c.l.b16 %v36
  %v115 = vunpack.c.l.b16 %v37
  %v116 = vunpack.c.l.b16 %v38
  %v117 = vunpack.c.l.b16 %v39
  %v118 = vunpack.c.l.b16 %v40
  %v119 = vunpack.c.l.b16 %v41
  %v120 = vunpack.c.l.b16 %v42
  %v121 = vpack.c.b16 %v104, %v103
  %v122 = vpack.c.b16 %v106, %v105
  %v123 = vpack.c.b16 %v108, %v107
  %v124 = vpack.c.b16 %v110, %v109
  %v125 = vpack.c.b16 %v112, %v111
  %v126 = vpack.c.b16 %v114, %v113
  %v127 = vpack.c.b16 %v116, %v115
  %v128 = vpack.c.b16 %v118, %v117
  %v129 = vpack.c.b16 %v120, %v119
  %vm139 = vcmask 130048
  %v141 = vsel %vm139, %v80, 0
  %v144 = vsel %vm139, %v82, 0
  %146 = vmatprep.subr.bf16.mxu0 0
  %147 = vmatpush1.bf16.msra.mxu0 %v128
  %148 = vmatprep.subr.bf16.mxu0 0
  %149 = vmatpush1.bf16.msra.mxu0 %v127
  %150 = vmatprep.subr.bf16.mxu0 0
  %151 = vmatpush1.bf16.msra.mxu0 %v126
  %152 = vmatprep.subr.bf16.mxu0 0
  %153 = vmatpush1.bf16.msra.mxu0 %v125
  %154 = vmatprep.subr.bf16.mxu0 0
  %155 = vmatpush1.bf16.msra.mxu0 %v124
  %156 = vmatprep.subr.bf16.mxu0 0
  %157 = vmatpush1.bf16.msra.mxu0 %v123
  %158 = vmatprep.subr.bf16.mxu0 0
  %159 = vmatpush1.bf16.msra.mxu0 %v122
  %160 = vmatprep.subr.bf16.mxu0 0
  %161 = vmatpush1.bf16.msra.mxu0 %v121
  %162 = vmatprep.subr.bf16.mxu0 0
  %163 = vmatpush2.bf16.msra.mxu0 0
  %164 = vmatprep.subr.bf16.mxu0 0
  %165 = vmatpush2.bf16.msra.mxu0 0
  %166 = vmatprep.subr.bf16.mxu0 0
  %167 = vmatpush2.bf16.msra.mxu0 0
  %168 = vmatprep.subr.bf16.mxu0 0
  %169 = vmatpush2.bf16.msra.mxu0 0
  %170 = vmatprep.subr.bf16.mxu0 0
  %171 = vmatpush2.bf16.msra.mxu0 0
  %172 = vmatprep.subr.bf16.mxu0 0
  %173 = vmatpush2.bf16.msra.mxu0 0
  %174 = vmatprep.subr.bf16.mxu0 0
  %175 = vmatpush2.bf16.msra.mxu0 0
  %176 = vmatprep.subr.bf16.mxu0 0
  %177 = vmatpush2.bf16.msra.mxu0 %v129
  %178 = vmatprep.mubr.bf16.mxu0 %v141
  %179 = vmatmul.mubr.bf16.gmra.mxu0 %v79
  %v180 = vpop.f32.mrf.mxu0
  %v181 = vadd.f32 %v50, %v180
  %v182 = vpop.f32.mrf.mxu0
  %v183 = vpop.f32.mrf.mxu0
  %v184 = vadd.f32 %v55, %v183
  %v185 = vpop.f32.mrf.mxu0
  %186 = vmatprep.mubr.bf16.mxu0 %v144
  %187 = vmatmul.mubr.bf16.gmra.mxu0 %v81
  %v188 = vpop.f32.mrf.mxu0
  %v189 = vadd.f32 %v60, %v188
  %v190 = vpop.f32.mrf.mxu0
  %v191 = vpop.f32.mrf.mxu0
  %v192 = vadd.f32 %v65, %v191
  %v193 = vpop.f32.mrf.mxu0
  %194 = vdwg.mxu0
  %vm195 = vcmask 261120
  %v196 = vsel %vm195, %v181, 0.0
  %197 = vadd.xlane.f32.xlu0 %v196
  %v198 = vpop.xlane.xlu0 %197
  %v199 = vsel %vm195, %v184, 0.0
  %200 = vadd.xlane.f32.xlu0 %v199
  %v201 = vpop.xlane.xlu0 %200
  %v202 = vsel %vm195, %v189, 0.0
  %203 = vadd.xlane.f32.xlu0 %v202
  %v204 = vpop.xlane.xlu0 %203
  %v205 = vsel %vm195, %v192, 0.0
  %206 = vadd.xlane.f32.xlu0 %v205
  %v207 = vpop.xlane.xlu0 %206
  %v208 = vmul.f32 %v198, 0.03125
  %v209 = vmul.f32 %v201, 0.03125
  %v210 = vmul.f32 %v204, 0.03125
  %v211 = vmul.f32 %v207, 0.03125
  %v212 = vsub.f32 %v181, %v208
  %v213 = vsub.f32 %v184, %v209
  %v214 = vsub.f32 %v189, %v210
  %v215 = vsub.f32 %v192, %v211
  %v216 = vmul.f32 %v212, %v212
  %v217 = vmul.f32 %v213, %v213
  %v218 = vmul.f32 %v214, %v214
  %v219 = vmul.f32 %v215, %v215
  %v220 = vsel %vm195, %v216, 0.0
  %221 = vadd.xlane.f32.xlu0 %v220
  %v222 = vpop.xlane.xlu0 %221
  %v223 = vsel %vm195, %v217, 0.0
  %224 = vadd.xlane.f32.xlu0 %v223
  %v225 = vpop.xlane.xlu0 %224
  %v226 = vsel %vm195, %v218, 0.0
  %227 = vadd.xlane.f32.xlu0 %v226
  %v228 = vpop.xlane.xlu0 %227
  %v229 = vsel %vm195, %v219, 0.0
  %230 = vadd.xlane.f32.xlu0 %v229
  %v231 = vpop.xlane.xlu0 %230
  %v232 = vmul.f32 %v222, 0.03125
  %v233 = vmul.f32 %v225, 0.03125
  %v234 = vmul.f32 %v228, 0.03125
  %v235 = vmul.f32 %v231, 0.03125
  %v236 = vld [vmem:[%s3] sm:$0xff]
  %v237 = vld [vmem:[%s3 + $0x8] sm:$0xff]
  %v238 = vld [vmem:[%s3 + $0x10] sm:$0xff]
  %v239 = vld [vmem:[%s3 + $0x18] sm:$0xff]
  %v240 = vadd.f32 %v232, 1e-05
  %v241 = vadd.f32 %v233, 1e-05
  %v242 = vadd.f32 %v234, 1e-05
  %v243 = vadd.f32 %v235, 1e-05
  %v244 = vrsqrt.pop %v240
  %v245 = vrsqrt.pop %v241
  %v246 = vrsqrt.pop %v242
  %v247 = vrsqrt.pop %v243
  %v248 = vmul.f32 %v236, %v244
  %v249 = vmul.f32 %v237, %v245
  %v250 = vmul.f32 %v238, %v246
  %v251 = vmul.f32 %v239, %v247
  %v252 = vld [vmem:[%s4] sm:$0xff]
  %v253 = vld [vmem:[%s4 + $0x8] sm:$0xff]
  %v254 = vld [vmem:[%s4 + $0x10] sm:$0xff]
  %v255 = vld [vmem:[%s4 + $0x18] sm:$0xff]
  %v256 = vmul.f32 %v208, %v248
  %v257 = vmul.f32 %v209, %v249
  %v258 = vmul.f32 %v210, %v250
  %v259 = vmul.f32 %v211, %v251
  %v260 = vsub.f32 %v252, %v256
  %v261 = vsub.f32 %v253, %v257
  %v262 = vsub.f32 %v254, %v258
  %v263 = vsub.f32 %v255, %v259
  %265 = vset.pattern.permute.xlu0 0
  %266 = vperm.xlu0 %265, %v248
  %v267 = vpop.permute.xlu0 %266
  %270 = vset.pattern.permute.xlu0 0
  %271 = vperm.xlu0 %270, %v249
  %v272 = vpop.permute.xlu0 %271
  %275 = vset.pattern.permute.xlu0 0
  %276 = vperm.xlu0 %275, %v250
  %v277 = vpop.permute.xlu0 %276
  %280 = vset.pattern.permute.xlu0 0
  %281 = vperm.xlu0 %280, %v251
  %v282 = vpop.permute.xlu0 %281
  %v284 = vmul.f32 %v181, %v267
  %v285 = vmul.f32 %v184, %v272
  %v286 = vmul.f32 %v189, %v277
  %v287 = vmul.f32 %v192, %v282
  %289 = vset.pattern.permute.xlu0 0
  %290 = vperm.xlu0 %289, %v260
  %v291 = vpop.permute.xlu0 %290
  %294 = vset.pattern.permute.xlu0 0
  %295 = vperm.xlu0 %294, %v261
  %v296 = vpop.permute.xlu0 %295
  %299 = vset.pattern.permute.xlu0 0
  %300 = vperm.xlu0 %299, %v262
  %v301 = vpop.permute.xlu0 %300
  %304 = vset.pattern.permute.xlu0 0
  %305 = vperm.xlu0 %304, %v263
  %v306 = vpop.permute.xlu0 %305
  %v308 = vadd.f32 %v284, %v291
  %v309 = vadd.f32 %v285, %v296
  %v310 = vadd.f32 %v286, %v301
  %v311 = vadd.f32 %v287, %v306
  %v312 = vmax.f32 %v308, 0.0
  %v313 = vmax.f32 %v309, 0.0
  %v314 = vmax.f32 %v310, 0.0
  %v315 = vmax.f32 %v311, 0.0
  %316 = vst.msk [vmem:[%s5] sm:$0xff] %vm195, %v312
  %317 = vst.msk [vmem:[%s5 + $0x8] sm:$0xff] %vm195, %v313
  %318 = vst.msk [vmem:[%s5 + $0x10] sm:$0xff] %vm195, %v314
  %319 = vst.msk [vmem:[%s5 + $0x18] sm:$0xff] %vm195, %v315
  // Predicated region
  $region22: #{vqvae2_forward.14} parent=0 // pred_check
    _
  $region23: #{vqvae2_forward.14} parent=0 // pred_check_branch
    %321 = sbr.rel (0) target = $region25
  $region24: #{vqvae2_forward.14} parent=0 // pred_region
    _
  $region25: #{vqvae2_forward.14} parent=0 // pred_fallthru
    _
  // Predicated region
  $region26: #{vqvae2_forward.14} parent=0 // pred_check
    _
  $region27: #{vqvae2_forward.14} parent=0 // pred_check_branch
    %323 = sbr.rel (0) target = $region29
  $region28: #{vqvae2_forward.14} parent=0 // pred_region
    _
  $region29: #{vqvae2_forward.14} parent=0 // pred_fallthru
    _

// kernel: vqvae2_forward.15
$region0: #{vqvae2_forward.15}
  #allocation0 [shape = 'u32[]', space=smem, size = 0x4, offset = 0x4, fixed_abs, tag = 'smem constant byte address 0x4 - core index']
  #allocation1 [shape = 'u32[144,128]{1,0:T(1,128)}', space=vmem, size = 0x12000, scoped, tag = 'internal scratch']
  %s0 = inlined_call_operand.vmem [shape: bf16[288,8], index: 0, kind: input, shape index: {}]
  %s1 = inlined_call_operand.vmem [shape: bf16[16,288], index: 1, kind: input, shape index: {}]
  %s2 = inlined_call_operand.vmem [shape: f32[16,1], index: 2, kind: input, shape index: {}]
  %s3 = inlined_call_operand.vmem [shape: f32[16,1], index: 3, kind: input, shape index: {}]
  %s4 = inlined_call_operand.vmem [shape: f32[16,1], index: 4, kind: input, shape index: {}]
  %s5 = inlined_call_operand.vmem [shape: bf16[32,16], index: 5, kind: input, shape index: {}]
  %s6 = inlined_call_operand.vmem [shape: f32[32,1], index: 6, kind: input, shape index: {}]
  %s7 = inlined_call_operand.vmem [shape: f32[32,8], index: 7, kind: input, shape index: {}]
  %s8 = inlined_call_operand.vmem [shape: f32[32,8], index: 8, kind: output, shape index: {}]
  %s9 = sld [smem:[#allocation0]]
  $region42: #{vqvae2_forward.15} parent=0
    _
  %s11 = ssub.s32 1, %s9
  %s12 = scalar_select 0, %s11, %s9
  // Predicated region
  $region2: #{vqvae2_forward.15} parent=0 // pred_check
    _
  $region3: #{vqvae2_forward.15} parent=0 // pred_check_branch
    %14 = sbr.rel (0) target = $region5
  $region4: #{vqvae2_forward.15} parent=0 // pred_region
    _
  $region5: #{vqvae2_forward.15} parent=0 // pred_fallthru
    _
  // Predicated region
  $region6: #{vqvae2_forward.15} parent=0 // pred_check
    _
  $region7: #{vqvae2_forward.15} parent=0 // pred_check_branch
    %16 = sbr.rel (0) target = $region9
  $region8: #{vqvae2_forward.15} parent=0 // pred_region
    _
  $region9: #{vqvae2_forward.15} parent=0 // pred_fallthru
    _
  // Predicated region
  $region10: #{vqvae2_forward.15} parent=0 // pred_check
    _
  $region11: #{vqvae2_forward.15} parent=0 // pred_check_branch
    %18 = sbr.rel (0) target = $region13
  $region12: #{vqvae2_forward.15} parent=0 // pred_region
    _
  $region13: #{vqvae2_forward.15} parent=0 // pred_fallthru
    _
  // Predicated region
  $region14: #{vqvae2_forward.15} parent=0 // pred_check
    _
  $region15: #{vqvae2_forward.15} parent=0 // pred_check_branch
    %20 = sbr.rel (0) target = $region17
  $region16: #{vqvae2_forward.15} parent=0 // pred_region
    _
  $region17: #{vqvae2_forward.15} parent=0 // pred_fallthru
    _
  // Predicated region
  $region18: #{vqvae2_forward.15} parent=0 // pred_check
    _
  $region19: #{vqvae2_forward.15} parent=0 // pred_check_branch
    %22 = sbr.rel (0) target = $region21
  $region20: #{vqvae2_forward.15} parent=0 // pred_region
    _
  $region21: #{vqvae2_forward.15} parent=0 // pred_fallthru
    _
  // Predicated region
  $region22: #{vqvae2_forward.15} parent=0 // pred_check
    _
  $region23: #{vqvae2_forward.15} parent=0 // pred_check_branch
    %24 = sbr.rel (0) target = $region25
  $region24: #{vqvae2_forward.15} parent=0 // pred_region
    _
  $region25: #{vqvae2_forward.15} parent=0 // pred_fallthru
    _
  // Predicated region
  $region26: #{vqvae2_forward.15} parent=0 // pred_check
    _
  $region27: #{vqvae2_forward.15} parent=0 // pred_check_branch
    %26 = sbr.rel (0) target = $region29
  $region28: #{vqvae2_forward.15} parent=0 // pred_region
    _
  $region29: #{vqvae2_forward.15} parent=0 // pred_fallthru
    _
  // Predicated region
  $region30: #{vqvae2_forward.15} parent=0 // pred_check
    _
  $region31: #{vqvae2_forward.15} parent=0 // pred_check_branch
    %28 = sbr.rel (0) target = $region33
  $region32: #{vqvae2_forward.15} parent=0 // pred_region
    _
  $region33: #{vqvae2_forward.15} parent=0 // pred_fallthru
    _
  %v30 = vld [vmem:[%s1] sm:$0xff]
  %v31 = vld [vmem:[%s1 + $0x8] sm:$0xf]
  %v32 = vld [vmem:[%s1 + $0xc] sm:$0xff]
  %v33 = vld [vmem:[%s1 + $0x14] sm:$0xf]
  %v34 = vld [vmem:[%s0] sm:$0xf]
  %v35 = vld [vmem:[%s0 + $0x4] sm:$0xf]
  %v36 = vld [vmem:[%s0 + $0x8] sm:$0xf]
  %v37 = vld [vmem:[%s0 + $0xc] sm:$0xf]
  %v38 = vld [vmem:[%s0 + $0x10] sm:$0xf]
  %v39 = vld [vmem:[%s0 + $0x14] sm:$0xf]
  %v40 = vld [vmem:[%s0 + $0x18] sm:$0xf]
  %v41 = vld [vmem:[%s0 + $0x1c] sm:$0xf]
  %v42 = vld [vmem:[%s0 + $0x20] sm:$0xf]
  %v43 = vld [vmem:[%s0 + $0x24] sm:$0xf]
  %v44 = vld [vmem:[%s0 + $0x28] sm:$0xf]
  %v45 = vld [vmem:[%s0 + $0x2c] sm:$0xf]
  %v46 = vld [vmem:[%s0 + $0x30] sm:$0xf]
  %v47 = vld [vmem:[%s0 + $0x34] sm:$0xf]
  %v48 = vld [vmem:[%s0 + $0x38] sm:$0xf]
  %v49 = vld [vmem:[%s0 + $0x3c] sm:$0xf]
  %v50 = vld [vmem:[%s0 + $0x40] sm:$0xf]
  %v51 = vld [vmem:[%s0 + $0x44] sm:$0xf]
  %v52 = vld [vmem:[%s0 + $0x48] sm:$0xf]
  %v53 = vld [vmem:[%s0 + $0x4c] sm:$0xf]
  %v54 = vld [vmem:[%s0 + $0x50] sm:$0xf]
  %v55 = vld [vmem:[%s0 + $0x54] sm:$0xf]
  %v56 = vld [vmem:[%s0 + $0x58] sm:$0xf]
  %v57 = vld [vmem:[%s0 + $0x5c] sm:$0xf]
  %v58 = vld [vmem:[%s0 + $0x60] sm:$0xf]
  %v59 = vld [vmem:[%s0 + $0x64] sm:$0xf]
  %v60 = vld [vmem:[%s0 + $0x68] sm:$0xf]
  %v61 = vld [vmem:[%s0 + $0x6c] sm:$0xf]
  %v62 = vld [vmem:[%s0 + $0x70] sm:$0xf]
  %v63 = vld [vmem:[%s0 + $0x74] sm:$0xf]
  %v64 = vld [vmem:[%s0 + $0x78] sm:$0xf]
  %v65 = vld [vmem:[%s0 + $0x7c] sm:$0xf]
  %v66 = vld [vmem:[%s0 + $0x80] sm:$0xf]
  %v67 = vld [vmem:[%s0 + $0x84] sm:$0xf]
  %v68 = vld [vmem:[%s0 + $0x88] sm:$0xf]
  %v69 = vld [vmem:[%s0 + $0x8c] sm:$0xf]
  %v70 = vld [vmem:[%s2] sm:$0xff]
  %v71 = vld [vmem:[%s2 + $0x8] sm:$0xff]
  %73 = vset.pattern.permute.xlu0 0
  %74 = vperm.xlu0 %73, %v70
  %v75 = vpop.permute.xlu0 %74
  %78 = vset.pattern.permute.xlu0 0
  %79 = vperm.xlu0 %78, %v71
  %v80 = vpop.permute.xlu0 %79
  %v86 = vunpack.c.l.b16 %v30
  %v87 = vunpack.c.h.b16 %v30
  %v88 = vunpack.c.l.b16 %v31
  %v89 = vunpack.c.l.b16 %v32
  %v90 = vunpack.c.h.b16 %v32
  %v91 = vunpack.c.l.b16 %v33
  %v92 = vpack.c.b16 %v89, %v86
  %v93 = vpack.c.b16 %v90, %v87
  %v94 = vpack.c.b16 %v91, %v88
  %v133 = vunpack.c.l.b16 %v34
  %v134 = vunpack.c.l.b16 %v35
  %v135 = vunpack.c.l.b16 %v36
  %v136 = vunpack.c.l.b16 %v37
  %v137 = vunpack.c.l.b16 %v38
  %v138 = vunpack.c.l.b16 %v39
  %v139 = vunpack.c.l.b16 %v40
  %v140 = vunpack.c.l.b16 %v41
  %v141 = vunpack.c.l.b16 %v42
  %v142 = vunpack.c.l.b16 %v43
  %v143 = vunpack.c.l.b16 %v44
  %v144 = vunpack.c.l.b16 %v45
  %v145 = vunpack.c.l.b16 %v46
  %v146 = vunpack.c.l.b16 %v47
  %v147 = vunpack.c.l.b16 %v48
  %v148 = vunpack.c.l.b16 %v49
  %v149 = vunpack.c.l.b16 %v50
  %v150 = vunpack.c.l.b16 %v51
  %v151 = vunpack.c.l.b16 %v52
  %v152 = vunpack.c.l.b16 %v53
  %v153 = vunpack.c.l.b16 %v54
  %v154 = vunpack.c.l.b16 %v55
  %v155 = vunpack.c.l.b16 %v56
  %v156 = vunpack.c.l.b16 %v57
  %v157 = vunpack.c.l.b16 %v58
  %v158 = vunpack.c.l.b16 %v59
  %v159 = vunpack.c.l.b16 %v60
  %v160 = vunpack.c.l.b16 %v61
  %v161 = vunpack.c.l.b16 %v62
  %v162 = vunpack.c.l.b16 %v63
  %v163 = vunpack.c.l.b16 %v64
  %v164 = vunpack.c.l.b16 %v65
  %v165 = vunpack.c.l.b16 %v66
  %v166 = vunpack.c.l.b16 %v67
  %v167 = vunpack.c.l.b16 %v68
  %v168 = vunpack.c.l.b16 %v69
  %v169 = vpack.c.b16 %v134, %v133
  %v170 = vpack.c.b16 %v136, %v135
  %v171 = vpack.c.b16 %v138, %v137
  %v172 = vpack.c.b16 %v140, %v139
  %v173 = vpack.c.b16 %v142, %v141
  %v174 = vpack.c.b16 %v144, %v143
  %v175 = vpack.c.b16 %v146, %v145
  %v176 = vpack.c.b16 %v148, %v147
  %v177 = vpack.c.b16 %v150, %v149
  %v178 = vpack.c.b16 %v152, %v151
  %v179 = vpack.c.b16 %v154, %v153
  %v180 = vpack.c.b16 %v156, %v155
  %v181 = vpack.c.b16 %v158, %v157
  %v182 = vpack.c.b16 %v160, %v159
  %v183 = vpack.c.b16 %v162, %v161
  %v184 = vpack.c.b16 %v164, %v163
  %v185 = vpack.c.b16 %v166, %v165
  %v186 = vpack.c.b16 %v168, %v167
  %vm205 = vcmask 261120
  %v207 = vsel %vm205, %v94, 0
  %209 = vmatprep.subr.bf16.mxu0 0
  %210 = vmatpush1.bf16.msra.mxu0 %v176
  %211 = vmatprep.subr.bf16.mxu0 0
  %212 = vmatpush1.bf16.msra.mxu0 %v175
  %213 = vmatprep.subr.bf16.mxu0 0
  %214 = vmatpush1.bf16.msra.mxu0 %v174
  %215 = vmatprep.subr.bf16.mxu0 0
  %216 = vmatpush1.bf16.msra.mxu0 %v173
  %217 = vmatprep.subr.bf16.mxu0 0
  %218 = vmatpush1.bf16.msra.mxu0 %v172
  %219 = vmatprep.subr.bf16.mxu0 0
  %220 = vmatpush1.bf16.msra.mxu0 %v171
  %221 = vmatprep.subr.bf16.mxu0 0
  %222 = vmatpush1.bf16.msra.mxu0 %v170
  %223 = vmatprep.subr.bf16.mxu0 0
  %224 = vmatpush1.bf16.msra.mxu0 %v169
  %225 = vmatprep.subr.bf16.mxu0 0
  %226 = vmatpush2.bf16.msra.mxu0 %v184
  %227 = vmatprep.subr.bf16.mxu0 0
  %228 = vmatpush2.bf16.msra.mxu0 %v183
  %229 = vmatprep.subr.bf16.mxu0 0
  %230 = vmatpush2.bf16.msra.mxu0 %v182
  %231 = vmatprep.subr.bf16.mxu0 0
  %232 = vmatpush2.bf16.msra.mxu0 %v181
  %233 = vmatprep.subr.bf16.mxu0 0
  %234 = vmatpush2.bf16.msra.mxu0 %v180
  %235 = vmatprep.subr.bf16.mxu0 0
  %236 = vmatpush2.bf16.msra.mxu0 %v179
  %237 = vmatprep.subr.bf16.mxu0 0
  %238 = vmatpush2.bf16.msra.mxu0 %v178
  %239 = vmatprep.subr.bf16.mxu0 0
  %240 = vmatpush2.bf16.msra.mxu0 %v177
  %241 = vmatprep.mubr.bf16.mxu0 %v93
  %242 = vmatmul.mubr.bf16.gmra.mxu0 %v92
  %v243 = vpop.f32.mrf.mxu0
  %v244 = vadd.f32 %v75, %v243
  %v245 = vpop.f32.mrf.mxu0
  %v246 = vpop.f32.mrf.mxu0
  %v247 = vadd.f32 %v80, %v246
  %v248 = vpop.f32.mrf.mxu0
  %249 = vdwg.mxu0
  %250 = vmatprep.subr.bf16.mxu0 0
  %251 = vmatpush1.bf16.msra.mxu0 0
  %252 = vmatprep.subr.bf16.mxu0 0
  %253 = vmatpush1.bf16.msra.mxu0 0
  %254 = vmatprep.subr.bf16.mxu0 0
  %255 = vmatpush1.bf16.msra.mxu0 0
  %256 = vmatprep.subr.bf16.mxu0 0
  %257 = vmatpush1.bf16.msra.mxu0 0
  %258 = vmatprep.subr.bf16.mxu0 0
  %259 = vmatpush1.bf16.msra.mxu0 0
  %260 = vmatprep.subr.bf16.mxu0 0
  %261 = vmatpush1.bf16.msra.mxu0 0
  %262 = vmatprep.subr.bf16.mxu0 0
  %263 = vmatpush1.bf16.msra.mxu0 %v186
  %264 = vmatprep.subr.bf16.mxu0 0
  %265 = vmatpush1.bf16.msra.mxu0 %v185
  %266 = vmatprep.subr.bf16.mxu0 0
  %267 = vmatpush2.bf16.msra.mxu0 0
  %268 = vmatprep.subr.bf16.mxu0 0
  %269 = vmatpush2.bf16.msra.mxu0 0
  %270 = vmatprep.subr.bf16.mxu0 0
  %271 = vmatpush2.bf16.msra.mxu0 0
  %272 = vmatprep.subr.bf16.mxu0 0
  %273 = vmatpush2.bf16.msra.mxu0 0
  %274 = vmatprep.subr.bf16.mxu0 0
  %275 = vmatpush2.bf16.msra.mxu0 0
  %276 = vmatprep.subr.bf16.mxu0 0
  %277 = vmatpush2.bf16.msra.mxu0 0
  %278 = vmatprep.subr.bf16.mxu0 0
  %279 = vmatpush2.bf16.msra.mxu0 0
  %280 = vmatprep.subr.bf16.mxu0 0
  %281 = vmatpush2.bf16.msra.mxu0 0
  %282 = vmatprep.mubr.bf16.mxu0 0
  %283 = vmatmul.mubr.bf16.gmra.mxu0 %v207
  %v284 = vpop.f32.mrf.mxu0
  %v285 = vadd.f32 %v244, %v284
  %v286 = vpop.f32.mrf.mxu0
  %v287 = vpop.f32.mrf.mxu0
  %v288 = vadd.f32 %v247, %v287
  %v289 = vpop.f32.mrf.mxu0
  %290 = vdwg.mxu0
  %vm291 = vcmask 64512
  %v292 = vsel %vm291, %v285, 0.0
  %293 = vadd.xlane.f32.xlu0 %v292
  %v294 = vpop.xlane.xlu0 %293
  %v295 = vsel %vm291, %v288, 0.0
  %296 = vadd.xlane.f32.xlu0 %v295
  %v297 = vpop.xlane.xlu0 %296
  %v298 = vmul.f32 %v294, 0.125
  %v299 = vmul.f32 %v297, 0.125
  %v300 = vsub.f32 %v285, %v298
  %v301 = vsub.f32 %v288, %v299
  %v302 = vmul.f32 %v300, %v300
  %v303 = vmul.f32 %v301, %v301
  %v304 = vsel %vm291, %v302, 0.0
  %305 = vadd.xlane.f32.xlu0 %v304
  %v306 = vpop.xlane.xlu0 %305
  %v307 = vsel %vm291, %v303, 0.0
  %308 = vadd.xlane.f32.xlu0 %v307
  %v309 = vpop.xlane.xlu0 %308
  %v310 = vmul.f32 %v306, 0.125
  %v311 = vmul.f32 %v309, 0.125
  %v312 = vld [vmem:[%s3] sm:$0xff]
  %v313 = vld [vmem:[%s3 + $0x8] sm:$0xff]
  %v314 = vadd.f32 %v310, 1e-05
  %v315 = vadd.f32 %v311, 1e-05
  %v316 = vrsqrt.pop %v314
  %v317 = vrsqrt.pop %v315
  %v318 = vmul.f32 %v312, %v316
  %v319 = vmul.f32 %v313, %v317
  %v320 = vld [vmem:[%s4] sm:$0xff]
  %v321 = vld [vmem:[%s4 + $0x8] sm:$0xff]
  %v322 = vmul.f32 %v298, %v318
  %v323 = vmul.f32 %v299, %v319
  %v324 = vsub.f32 %v320, %v322
  %v325 = vsub.f32 %v321, %v323
  %327 = vset.pattern.permute.xlu0 0
  %328 = vperm.xlu0 %327, %v318
  %v329 = vpop.permute.xlu0 %328
  %332 = vset.pattern.permute.xlu0 0
  %333 = vperm.xlu0 %332, %v319
  %v334 = vpop.permute.xlu0 %333
  %v336 = vmul.f32 %v285, %v329
  %v337 = vmul.f32 %v288, %v334
  %339 = vset.pattern.permute.xlu0 0
  %340 = vperm.xlu0 %339, %v324
  %v341 = vpop.permute.xlu0 %340
  %344 = vset.pattern.permute.xlu0 0
  %345 = vperm.xlu0 %344, %v325
  %v346 = vpop.permute.xlu0 %345
  %v348 = vadd.f32 %v336, %v341
  %v349 = vadd.f32 %v337, %v346
  %v350 = vmax.f32 %v348, 0.0
  %v351 = vmax.f32 %v349, 0.0
  %v352 = vld [vmem:[%s5] sm:$0xf]
  %v353 = vld [vmem:[%s5 + $0x4] sm:$0xf]
  %v354 = vld [vmem:[%s5 + $0x8] sm:$0xf]
  %v355 = vld [vmem:[%s5 + $0xc] sm:$0xf]
  %v356 = vpack.c.bf16 %v351, %v350
  %v357 = vld [vmem:[%s6] sm:$0xff]
  %v358 = vld [vmem:[%s6 + $0x8] sm:$0xff]
  %v359 = vld [vmem:[%s6 + $0x10] sm:$0xff]
  %v360 = vld [vmem:[%s6 + $0x18] sm:$0xff]
  %362 = vset.pattern.permute.xlu0 0
  %363 = vperm.xlu0 %362, %v357
  %v364 = vpop.permute.xlu0 %363
  %367 = vset.pattern.permute.xlu0 0
  %368 = vperm.xlu0 %367, %v358
  %v369 = vpop.permute.xlu0 %368
  %372 = vset.pattern.permute.xlu0 0
  %373 = vperm.xlu0 %372, %v359
  %v374 = vpop.permute.xlu0 %373
  %377 = vset.pattern.permute.xlu0 0
  %378 = vperm.xlu0 %377, %v360
  %v379 = vpop.permute.xlu0 %378
  %v385 = vunpack.c.l.b16 %v352
  %v386 = vunpack.c.l.b16 %v353
  %v387 = vunpack.c.l.b16 %v354
  %v388 = vunpack.c.l.b16 %v355
  %v389 = vpack.c.b16 %v386, %v385
  %v390 = vpack.c.b16 %v388, %v387
  %vm391 = vcmask 130048
  %v393 = vsel %vm391, %v389, 0
  %v396 = vsel %vm391, %v390, 0
  %398 = vmatprep.subr.bf16.mxu0 0
  %399 = vmatpush1.bf16.msra.mxu0 0
  %400 = vmatprep.subr.bf16.mxu0 0
  %401 = vmatpush1.bf16.msra.mxu0 0
  %402 = vmatprep.subr.bf16.mxu0 0
  %403 = vmatpush1.bf16.msra.mxu0 0
  %404 = vmatprep.subr.bf16.mxu0 0
  %405 = vmatpush1.bf16.msra.mxu0 0
  %406 = vmatprep.subr.bf16.mxu0 0
  %407 = vmatpush1.bf16.msra.mxu0 0
  %408 = vmatprep.subr.bf16.mxu0 0
  %409 = vmatpush1.bf16.msra.mxu0 0
  %410 = vmatprep.subr.bf16.mxu0 0
  %411 = vmatpush1.bf16.msra.mxu0 0
  %412 = vmatprep.subr.bf16.mxu0 0
  %413 = vmatpush1.bf16.msra.mxu0 %v356
  %414 = vmatprep.subr.bf16.mxu0 0
  %415 = vmatpush2.bf16.msra.mxu0 0
  %416 = vmatprep.subr.bf16.mxu0 0
  %417 = vmatpush2.bf16.msra.mxu0 0
  %418 = vmatprep.subr.bf16.mxu0 0
  %419 = vmatpush2.bf16.msra.mxu0 0
  %420 = vmatprep.subr.bf16.mxu0 0
  %421 = vmatpush2.bf16.msra.mxu0 0
  %422 = vmatprep.subr.bf16.mxu0 0
  %423 = vmatpush2.bf16.msra.mxu0 0
  %424 = vmatprep.subr.bf16.mxu0 0
  %425 = vmatpush2.bf16.msra.mxu0 0
  %426 = vmatprep.subr.bf16.mxu0 0
  %427 = vmatpush2.bf16.msra.mxu0 0
  %428 = vmatprep.subr.bf16.mxu0 0
  %429 = vmatpush2.bf16.msra.mxu0 0
  %430 = vmatprep.mubr.bf16.mxu0 0
  %431 = vmatmul.mubr.bf16.gmra.mxu0 %v393
  %v432 = vpop.f32.mrf.mxu0
  %v433 = vadd.f32 %v364, %v432
  %v434 = vpop.f32.mrf.mxu0
  %v435 = vpop.f32.mrf.mxu0
  %v436 = vadd.f32 %v369, %v435
  %v437 = vpop.f32.mrf.mxu0
  %438 = vmatprep.mubr.bf16.mxu0 0
  %439 = vmatmul.mubr.bf16.gmra.mxu0 %v396
  %v440 = vpop.f32.mrf.mxu0
  %v441 = vadd.f32 %v374, %v440
  %v442 = vpop.f32.mrf.mxu0
  %v443 = vpop.f32.mrf.mxu0
  %v444 = vadd.f32 %v379, %v443
  %v445 = vpop.f32.mrf.mxu0
  %446 = vdwg.mxu0
  %v447 = vld [vmem:[%s7] sm:$0xff]
  %v448 = vld [vmem:[%s7 + $0x8] sm:$0xff]
  %v449 = vld [vmem:[%s7 + $0x10] sm:$0xff]
  %v450 = vld [vmem:[%s7 + $0x18] sm:$0xff]
  %v451 = vadd.f32 %v433, %v447
  %v452 = vadd.f32 %v436, %v448
  %v453 = vadd.f32 %v441, %v449
  %v454 = vadd.f32 %v444, %v450
  %v455 = vmax.f32 %v451, 0.0
  %v456 = vmax.f32 %v452, 0.0
  %v457 = vmax.f32 %v453, 0.0
  %v458 = vmax.f32 %v454, 0.0
  %459 = vst.msk [vmem:[%s8] sm:$0xff] %vm291, %v455
  %460 = vst.msk [vmem:[%s8 + $0x8] sm:$0xff] %vm291, %v456
  %461 = vst.msk [vmem:[%s8 + $0x10] sm:$0xff] %vm291, %v457
  %462 = vst.msk [vmem:[%s8 + $0x18] sm:$0xff] %vm291, %v458
  // Predicated region
  $region34: #{vqvae2_forward.15} parent=0 // pred_check
    _
  $region35: #{vqvae2_forward.15} parent=0 // pred_check_branch
    %464 = sbr.rel (0) target = $region37
  $region36: #{vqvae2_forward.15} parent=0 // pred_region
    _
  $region37: #{vqvae2_forward.15} parent=0 // pred_fallthru
    _
  // Predicated region
  $region38: #{vqvae2_forward.15} parent=0 // pred_check
    _
  $region39: #{vqvae2_forward.15} parent=0 // pred_check_branch
    %466 = sbr.rel (0) target = $region41
  $region40: #{vqvae2_forward.15} parent=0 // pred_region
    _
  $region41: #{vqvae2_forward.15} parent=0 // pred_fallthru
    _

// kernel: vqvae2_forward.17
$region0: #{vqvae2_forward.17}
  #allocation0 [shape = 'u32[]', space=smem, size = 0x4, offset = 0x4, fixed_abs, tag = 'smem constant byte address 0x4 - core index']
  #allocation1 [shape = 'u32[144,128]{1,0:T(1,128)}', space=vmem, size = 0x12000, scoped, tag = 'internal scratch']
  %s0 = inlined_call_operand.vmem [shape: f32[32,8], index: 0, kind: input, shape index: {}]
  %s1 = inlined_call_operand.vmem [shape: f32[16,8], index: 1, kind: input, shape index: {}]
  %s2 = inlined_call_operand.vmem [shape: f32[16,32], index: 2, kind: input, shape index: {}]
  %s3 = inlined_call_operand.vmem [shape: f32[16,1], index: 3, kind: input, shape index: {}]
  %s4 = inlined_call_operand.vmem [shape: f32[32,16], index: 4, kind: input, shape index: {}]
  %s5 = inlined_call_operand.vmem [shape: f32[16,8], index: 5, kind: output, shape index: {0}]
  %s6 = inlined_call_operand.vmem [shape: f32[16,8], index: 6, kind: output, shape index: {1}]
  %s7 = inlined_call_operand.vmem [shape: f32[32,8], index: 7, kind: output, shape index: {2}]
  %8 = xla_tuple %s5, %s6, %s7
  %s9 = sld [smem:[#allocation0]]
  $region46: #{vqvae2_forward.17} parent=0
    _
  %s11 = ssub.s32 1, %s9
  %s12 = scalar_select 0, %s11, %s9
  // Predicated region
  $region2: #{vqvae2_forward.17} parent=0 // pred_check
    _
  $region3: #{vqvae2_forward.17} parent=0 // pred_check_branch
    %14 = sbr.rel (0) target = $region5
  $region4: #{vqvae2_forward.17} parent=0 // pred_region
    _
  $region5: #{vqvae2_forward.17} parent=0 // pred_fallthru
    _
  // Predicated region
  $region6: #{vqvae2_forward.17} parent=0 // pred_check
    _
  $region7: #{vqvae2_forward.17} parent=0 // pred_check_branch
    %16 = sbr.rel (0) target = $region9
  $region8: #{vqvae2_forward.17} parent=0 // pred_region
    _
  $region9: #{vqvae2_forward.17} parent=0 // pred_fallthru
    _
  // Predicated region
  $region10: #{vqvae2_forward.17} parent=0 // pred_check
    _
  $region11: #{vqvae2_forward.17} parent=0 // pred_check_branch
    %18 = sbr.rel (0) target = $region13
  $region12: #{vqvae2_forward.17} parent=0 // pred_region
    _
  $region13: #{vqvae2_forward.17} parent=0 // pred_fallthru
    _
  // Predicated region
  $region14: #{vqvae2_forward.17} parent=0 // pred_check
    _
  $region15: #{vqvae2_forward.17} parent=0 // pred_check_branch
    %20 = sbr.rel (0) target = $region17
  $region16: #{vqvae2_forward.17} parent=0 // pred_region
    _
  $region17: #{vqvae2_forward.17} parent=0 // pred_fallthru
    _
  // Predicated region
  $region18: #{vqvae2_forward.17} parent=0 // pred_check
    _
  $region19: #{vqvae2_forward.17} parent=0 // pred_check_branch
    %22 = sbr.rel (0) target = $region21
  $region20: #{vqvae2_forward.17} parent=0 // pred_region
    _
  $region21: #{vqvae2_forward.17} parent=0 // pred_fallthru
    _
  %v23 = vld [vmem:[%s2] sm:$0xff]
  %v24 = vld [vmem:[%s2 + $0x8] sm:$0xff]
  %v25 = vld [vmem:[%s0] sm:$0xff]
  %v26 = vld [vmem:[%s0 + $0x8] sm:$0xff]
  %v27 = vld [vmem:[%s0 + $0x10] sm:$0xff]
  %v28 = vld [vmem:[%s0 + $0x18] sm:$0xff]
  %v29 = vld [vmem:[%s3] sm:$0xff]
  %v30 = vld [vmem:[%s3 + $0x8] sm:$0xff]
  %32 = vset.pattern.permute.xlu0 0
  %33 = vperm.xlu0 %32, %v29
  %v34 = vpop.permute.xlu0 %33
  %37 = vset.pattern.permute.xlu0 0
  %38 = vperm.xlu0 %37, %v30
  %v39 = vpop.permute.xlu0 %38
  %vm41 = vcmask 261120
  %v43 = vsel %vm41, %v23, 0
  %v46 = vsel %vm41, %v24, 0
  %48 = vmatprep.subr.mxu0 0.0
  %49 = vmatpush1.msra.mxu0 0.0
  %50 = vmatprep.subr.mxu0 0.0
  %51 = vmatpush1.msra.mxu0 0.0
  %52 = vmatprep.subr.mxu0 0.0
  %53 = vmatpush1.msra.mxu0 0.0
  %54 = vmatprep.subr.mxu0 0.0
  %55 = vmatpush1.msra.mxu0 0.0
  %56 = vmatprep.subr.mxu0 0.0
  %57 = vmatpush1.msra.mxu0 0.0
  %58 = vmatprep.subr.mxu0 0.0
  %59 = vmatpush1.msra.mxu0 0.0
  %60 = vmatprep.subr.mxu0 0.0
  %61 = vmatpush1.msra.mxu0 0.0
  %62 = vmatprep.subr.mxu0 0.0
  %63 = vmatpush1.msra.mxu0 0.0
  %64 = vmatprep.subr.mxu0 0.0
  %65 = vmatpush1.msra.mxu0 0.0
  %66 = vmatprep.subr.mxu0 0.0
  %67 = vmatpush1.msra.mxu0 0.0
  %68 = vmatprep.subr.mxu0 0.0
  %69 = vmatpush1.msra.mxu0 0.0
  %70 = vmatprep.subr.mxu0 0.0
  %71 = vmatpush1.msra.mxu0 0.0
  %72 = vmatprep.subr.mxu0 0.0
  %73 = vmatpush1.msra.mxu0 %v28
  %74 = vmatprep.subr.mxu0 0.0
  %75 = vmatpush1.msra.mxu0 %v27
  %76 = vmatprep.subr.mxu0 0.0
  %77 = vmatpush1.msra.mxu0 %v26
  %78 = vmatprep.subr.mxu0 0.0
  %79 = vmatpush1.msra.mxu0 %v25
  %80 = vmatprep.subr.mxu0 0.0
  %81 = vmatpush2.msra.mxu0 0.0
  %82 = vmatprep.subr.mxu0 0.0
  %83 = vmatpush2.msra.mxu0 0.0
  %84 = vmatprep.subr.mxu0 0.0
  %85 = vmatpush2.msra.mxu0 0.0
  %86 = vmatprep.subr.mxu0 0.0
  %87 = vmatpush2.msra.mxu0 0.0
  %88 = vmatprep.subr.mxu0 0.0
  %89 = vmatpush2.msra.mxu0 0.0
  %90 = vmatprep.subr.mxu0 0.0
  %91 = vmatpush2.msra.mxu0 0.0
  %92 = vmatprep.subr.mxu0 0.0
  %93 = vmatpush2.msra.mxu0 0.0
  %94 = vmatprep.subr.mxu0 0.0
  %95 = vmatpush2.msra.mxu0 0.0
  %96 = vmatprep.subr.mxu0 0.0
  %97 = vmatpush2.msra.mxu0 0.0
  %98 = vmatprep.subr.mxu0 0.0
  %99 = vmatpush2.msra.mxu0 0.0
  %100 = vmatprep.subr.mxu0 0.0
  %101 = vmatpush2.msra.mxu0 0.0
  %102 = vmatprep.subr.mxu0 0.0
  %103 = vmatpush2.msra.mxu0 0.0
  %104 = vmatprep.subr.mxu0 0.0
  %105 = vmatpush2.msra.mxu0 0.0
  %106 = vmatprep.subr.mxu0 0.0
  %107 = vmatpush2.msra.mxu0 0.0
  %108 = vmatprep.subr.mxu0 0.0
  %109 = vmatpush2.msra.mxu0 0.0
  %110 = vmatprep.subr.mxu0 0.0
  %111 = vmatpush2.msra.mxu0 0.0
  %112 = vmatprep.mubr.f32.mxu0 0.0
  %113 = vmatmul.mubr.f32.gmra.mxu0 %v43
  %v114 = vpop.f32.mrf.mxu0
  %v115 = vadd.f32 %v34, %v114
  %v116 = vpop.f32.mrf.mxu0
  %117 = vmatprep.mubr.f32.mxu0 0.0
  %118 = vmatmul.mubr.f32.gmra.mxu0 %v46
  %v119 = vpop.f32.mrf.mxu0
  %v120 = vadd.f32 %v39, %v119
  %v121 = vpop.f32.mrf.mxu0
  %122 = vdwg.mxu0
  %v123 = vld [vmem:[%s1] sm:$0xff]
  %v124 = vld [vmem:[%s1 + $0x8] sm:$0xff]
  %v125 = vadd.f32 %v115, %v123
  %v126 = vadd.f32 %v120, %v124
  %vm127 = vcmask 64512
  %v128 = vsel %vm127, %v125, -inf
  %v129 = vsel %vm127, %v126, -inf
  %v130 = vmax.f32 %v128, %v129
  %v131 = vrot.slane %v130, 4
  %v132 = vmax.f32 %v130, %v131
  %v133 = vrot.slane %v132, 2
  %v134 = vmax.f32 %v132, %v133
  %v135 = vrot.slane %v134, 1
  %v136 = vmax.f32 %v134, %v135
  %v137 = vsub.f32 %v125, %v136
  %v138 = vsub.f32 %v126, %v136
  %v139 = vmul.f32 %v137, 1.442695
  %v140 = vpow.pop %v139
  %v141 = vmul.f32 %v138, 1.442695
  %v142 = vpow.pop %v141
  %v143 = vsel %vm127, %v140, 0.0
  %v144 = vsel %vm127, %v142, 0.0
  %v145 = vadd.f32 %v143, %v144
  %v146 = vrot.slane %v145, 4
  %v147 = vadd.f32 %v145, %v146
  %v148 = vrot.slane %v147, 2
  %v149 = vadd.f32 %v147, %v148
  %v150 = vrot.slane %v149, 1
  %v151 = vadd.f32 %v149, %v150
  %v152 = vrcp.pop %v151
  %v153 = vmul.f32 %v140, %v152
  %v154 = vmul.f32 %v142, %v152
  %v155 = vsel %vm127, %v115, -inf
  %v156 = vsel %vm127, %v120, -inf
  %v157 = vmax.f32 %v155, %v156
  %v158 = vrot.slane %v157, 4
  %v159 = vmax.f32 %v157, %v158
  %v160 = vrot.slane %v159, 2
  %v161 = vmax.f32 %v159, %v160
  %v162 = vrot.slane %v161, 1
  %v163 = vmax.f32 %v161, %v162
  %v164 = vsub.f32 %v115, %v163
  %v165 = vsub.f32 %v120, %v163
  %v166 = vmul.f32 %v164, 1.442695
  %v167 = vpow.pop %v166
  %v168 = vmul.f32 %v165, 1.442695
  %v169 = vpow.pop %v168
  %v170 = vsel %vm127, %v167, 0.0
  %v171 = vsel %vm127, %v169, 0.0
  %v172 = vadd.f32 %v170, %v171
  %v173 = vrot.slane %v172, 4
  %v174 = vadd.f32 %v172, %v173
  %v175 = vrot.slane %v174, 2
  %v176 = vadd.f32 %v174, %v175
  %v177 = vrot.slane %v176, 1
  %v178 = vadd.f32 %v176, %v177
  %v179 = vlog2.pop %v178
  %v180 = vmul.f32 %v179, 0.6931472
  %v181 = vsub.f32 %v164, %v180
  %v182 = vsub.f32 %v165, %v180
  %v183 = vlaneseq
  %v184 = vshrl.u32 %v183, 7
  %v185 = vadd.s32 %v184, 8
  %vm186 = vcmp.eq.f32.partialorder %v125, %v136
  %vm187 = vcmp.eq.f32.partialorder %v126, %v136
  %v188 = vsel %vm186, %v184, 16
  %v189 = vsel %vm187, %v185, 16
  %v190 = vsel %vm127, %v188, 2147483647
  %v191 = vsel %vm127, %v189, 2147483647
  %vm192 = vcmp.lt.s32.totalorder %v190, %v191
  %v193 = vsel %vm192, %v190, %v191
  %v194 = vrot.slane %v193, 4
  %vm195 = vcmp.lt.s32.totalorder %v193, %v194
  %v196 = vsel %vm195, %v193, %v194
  %v197 = vrot.slane %v196, 2
  %vm198 = vcmp.lt.s32.totalorder %v196, %v197
  %v199 = vsel %vm198, %v196, %v197
  %v200 = vrot.slane %v199, 1
  %vm201 = vcmp.lt.s32.totalorder %v199, %v200
  %v202 = vsel %vm201, %v199, %v200
  %vm203 = vcmp.eq.s32.totalorder %v184, %v202
  %vm204 = vcmp.eq.s32.totalorder %v185, %v202
  %v205 = vsel %vm203, 1, 0
  %v206 = vsel %vm204, 1, 0
  %v207 = vcvt.s32.f32 %v205
  %v208 = vcvt.s32.f32 %v206
  %v209 = vld [vmem:[%s4] sm:$0xff]
  %v210 = vld [vmem:[%s4 + $0x8] sm:$0xff]
  %v211 = vld [vmem:[%s4 + $0x10] sm:$0xff]
  %v212 = vld [vmem:[%s4 + $0x18] sm:$0xff]
  %vm213 = vcmask 130048
  %v215 = vsel %vm213, %v209, 0
  %v218 = vsel %vm213, %v210, 0
  %v221 = vsel %vm213, %v211, 0
  %v224 = vsel %vm213, %v212, 0
  %226 = vmatprep.subr.mxu0 0.0
  %227 = vmatpush1.msra.mxu0 0.0
  %228 = vmatprep.subr.mxu0 0.0
  %229 = vmatpush1.msra.mxu0 0.0
  %230 = vmatprep.subr.mxu0 0.0
  %231 = vmatpush1.msra.mxu0 0.0
  %232 = vmatprep.subr.mxu0 0.0
  %233 = vmatpush1.msra.mxu0 0.0
  %234 = vmatprep.subr.mxu0 0.0
  %235 = vmatpush1.msra.mxu0 0.0
  %236 = vmatprep.subr.mxu0 0.0
  %237 = vmatpush1.msra.mxu0 0.0
  %238 = vmatprep.subr.mxu0 0.0
  %239 = vmatpush1.msra.mxu0 0.0
  %240 = vmatprep.subr.mxu0 0.0
  %241 = vmatpush1.msra.mxu0 0.0
  %242 = vmatprep.subr.mxu0 0.0
  %243 = vmatpush1.msra.mxu0 0.0
  %244 = vmatprep.subr.mxu0 0.0
  %245 = vmatpush1.msra.mxu0 0.0
  %246 = vmatprep.subr.mxu0 0.0
  %247 = vmatpush1.msra.mxu0 0.0
  %248 = vmatprep.subr.mxu0 0.0
  %249 = vmatpush1.msra.mxu0 0.0
  %250 = vmatprep.subr.mxu0 0.0
  %251 = vmatpush1.msra.mxu0 0.0
  %252 = vmatprep.subr.mxu0 0.0
  %253 = vmatpush1.msra.mxu0 0.0
  %254 = vmatprep.subr.mxu0 0.0
  %255 = vmatpush1.msra.mxu0 %v208
  %256 = vmatprep.subr.mxu0 0.0
  %257 = vmatpush1.msra.mxu0 %v207
  %258 = vmatprep.subr.mxu0 0.0
  %259 = vmatpush2.msra.mxu0 0.0
  %260 = vmatprep.subr.mxu0 0.0
  %261 = vmatpush2.msra.mxu0 0.0
  %262 = vmatprep.subr.mxu0 0.0
  %263 = vmatpush2.msra.mxu0 0.0
  %264 = vmatprep.subr.mxu0 0.0
  %265 = vmatpush2.msra.mxu0 0.0
  %266 = vmatprep.subr.mxu0 0.0
  %267 = vmatpush2.msra.mxu0 0.0
  %268 = vmatprep.subr.mxu0 0.0
  %269 = vmatpush2.msra.mxu0 0.0
  %270 = vmatprep.subr.mxu0 0.0
  %271 = vmatpush2.msra.mxu0 0.0
  %272 = vmatprep.subr.mxu0 0.0
  %273 = vmatpush2.msra.mxu0 0.0
  %274 = vmatprep.subr.mxu0 0.0
  %275 = vmatpush2.msra.mxu0 0.0
  %276 = vmatprep.subr.mxu0 0.0
  %277 = vmatpush2.msra.mxu0 0.0
  %278 = vmatprep.subr.mxu0 0.0
  %279 = vmatpush2.msra.mxu0 0.0
  %280 = vmatprep.subr.mxu0 0.0
  %281 = vmatpush2.msra.mxu0 0.0
  %282 = vmatprep.subr.mxu0 0.0
  %283 = vmatpush2.msra.mxu0 0.0
  %284 = vmatprep.subr.mxu0 0.0
  %285 = vmatpush2.msra.mxu0 0.0
  %286 = vmatprep.subr.mxu0 0.0
  %287 = vmatpush2.msra.mxu0 0.0
  %288 = vmatprep.subr.mxu0 0.0
  %289 = vmatpush2.msra.mxu0 0.0
  %290 = vmatprep.mubr.f32.mxu0 0.0
  %291 = vmatmul.mubr.f32.gmra.mxu0 %v215
  %v292 = vpop.f32.mrf.mxu0
  %v293 = vadd.f32 0.0, %v292
  %v294 = vpop.f32.mrf.mxu0
  %295 = vmatprep.mubr.f32.mxu0 0.0
  %296 = vmatmul.mubr.f32.gmra.mxu0 %v218
  %v297 = vpop.f32.mrf.mxu0
  %v298 = vadd.f32 0.0, %v297
  %v299 = vpop.f32.mrf.mxu0
  %300 = vmatprep.mubr.f32.mxu0 0.0
  %301 = vmatmul.mubr.f32.gmra.mxu0 %v221
  %v302 = vpop.f32.mrf.mxu0
  %v303 = vadd.f32 0.0, %v302
  %v304 = vpop.f32.mrf.mxu0
  %305 = vmatprep.mubr.f32.mxu0 0.0
  %306 = vmatmul.mubr.f32.gmra.mxu0 %v224
  %v307 = vpop.f32.mrf.mxu0
  %v308 = vadd.f32 0.0, %v307
  %v309 = vpop.f32.mrf.mxu0
  %310 = vdwg.mxu0
  %311 = vst.msk [vmem:[%s5] sm:$0xff] %vm127, %v153
  %312 = vst.msk [vmem:[%s5 + $0x8] sm:$0xff] %vm127, %v154
  %313 = vst.msk [vmem:[%s6] sm:$0xff] %vm127, %v181
  %314 = vst.msk [vmem:[%s6 + $0x8] sm:$0xff] %vm127, %v182
  %315 = vst.msk [vmem:[%s7] sm:$0xff] %vm127, %v293
  %316 = vst.msk [vmem:[%s7 + $0x8] sm:$0xff] %vm127, %v298
  %317 = vst.msk [vmem:[%s7 + $0x10] sm:$0xff] %vm127, %v303
  %318 = vst.msk [vmem:[%s7 + $0x18] sm:$0xff] %vm127, %v308
  // Predicated region
  $region22: #{vqvae2_forward.17} parent=0 // pred_check
    _
  $region23: #{vqvae2_forward.17} parent=0 // pred_check_branch
    %320 = sbr.rel (0) target = $region25
  $region24: #{vqvae2_forward.17} parent=0 // pred_region
    _
  $region25: #{vqvae2_forward.17} parent=0 // pred_fallthru
    _
  // Predicated region
  $region26: #{vqvae2_forward.17} parent=0 // pred_check
    _
  $region27: #{vqvae2_forward.17} parent=0 // pred_check_branch
    %322 = sbr.rel (0) target = $region29
  $region28: #{vqvae2_forward.17} parent=0 // pred_region
    _
  $region29: #{vqvae2_forward.17} parent=0 // pred_fallthru
    _
  // Predicated region
  $region30: #{vqvae2_forward.17} parent=0 // pred_check
    _
  $region31: #{vqvae2_forward.17} parent=0 // pred_check_branch
    %324 = sbr.rel (0) target = $region33
  $region32: #{vqvae2_forward.17} parent=0 // pred_region
    _
  $region33: #{vqvae2_forward.17} parent=0 // pred_fallthru
    _
  // Predicated region
  $region34: #{vqvae2_forward.17} parent=0 // pred_check
    _
  $region35: #{vqvae2_forward.17} parent=0 // pred_check_branch
    %326 = sbr.rel (0) target = $region37
  $region36: #{vqvae2_forward.17} parent=0 // pred_region
    _
  $region37: #{vqvae2_forward.17} parent=0 // pred_fallthru
    _
  // Predicated region
  $region38: #{vqvae2_forward.17} parent=0 // pred_check
    _
  $region39: #{vqvae2_forward.17} parent=0 // pred_check_branch
    %328 = sbr.rel (0) target = $region41
  $region40: #{vqvae2_forward.17} parent=0 // pred_region
    _
  $region41: #{vqvae2_forward.17} parent=0 // pred_fallthru
    _
  // Predicated region
  $region42: #{vqvae2_forward.17} parent=0 // pred_check
    _
  $region43: #{vqvae2_forward.17} parent=0 // pred_check_branch
    %330 = sbr.rel (0) target = $region45
  $region44: #{vqvae2_forward.17} parent=0 // pred_region
    _
  $region45: #{vqvae2_forward.17} parent=0 // pred_fallthru
    _

// kernel: vqvae2_forward.19
$region0: #{vqvae2_forward.19}
  #allocation0 [shape = 'u32[]', space=smem, size = 0x4, offset = 0x4, fixed_abs, tag = 'smem constant byte address 0x4 - core index']
  #allocation1 [shape = 'u32[144,128]{1,0:T(1,128)}', space=vmem, size = 0x12000, scoped, tag = 'internal scratch']
  %s0 = inlined_call_operand.vmem [shape: bf16[288,32], index: 0, kind: input, shape index: {}]
  %s1 = inlined_call_operand.vmem [shape: bf16[16,288], index: 1, kind: input, shape index: {}]
  %s2 = inlined_call_operand.vmem [shape: f32[16,1], index: 2, kind: input, shape index: {}]
  %s3 = inlined_call_operand.vmem [shape: f32[16,32], index: 3, kind: output, shape index: {}]
  %s4 = sld [smem:[#allocation0]]
  $region22: #{vqvae2_forward.19} parent=0
    _
  %s6 = ssub.s32 1, %s4
  %s7 = scalar_select 0, %s6, %s4
  // Predicated region
  $region2: #{vqvae2_forward.19} parent=0 // pred_check
    _
  $region3: #{vqvae2_forward.19} parent=0 // pred_check_branch
    %9 = sbr.rel (0) target = $region5
  $region4: #{vqvae2_forward.19} parent=0 // pred_region
    _
  $region5: #{vqvae2_forward.19} parent=0 // pred_fallthru
    _
  // Predicated region
  $region6: #{vqvae2_forward.19} parent=0 // pred_check
    _
  $region7: #{vqvae2_forward.19} parent=0 // pred_check_branch
    %11 = sbr.rel (0) target = $region9
  $region8: #{vqvae2_forward.19} parent=0 // pred_region
    _
  $region9: #{vqvae2_forward.19} parent=0 // pred_fallthru
    _
  // Predicated region
  $region10: #{vqvae2_forward.19} parent=0 // pred_check
    _
  $region11: #{vqvae2_forward.19} parent=0 // pred_check_branch
    %13 = sbr.rel (0) target = $region13
  $region12: #{vqvae2_forward.19} parent=0 // pred_region
    _
  $region13: #{vqvae2_forward.19} parent=0 // pred_fallthru
    _
  %v15 = vld [vmem:[%s1] sm:$0xff]
  %v16 = vld [vmem:[%s1 + $0x8] sm:$0xf]
  %v17 = vld [vmem:[%s1 + $0xc] sm:$0xff]
  %v18 = vld [vmem:[%s1 + $0x14] sm:$0xf]
  %v19 = vld [vmem:[%s0] sm:$0xf]
  %v20 = vld [vmem:[%s0 + $0x4] sm:$0xf]
  %v21 = vld [vmem:[%s0 + $0x8] sm:$0xf]
  %v22 = vld [vmem:[%s0 + $0xc] sm:$0xf]
  %v23 = vld [vmem:[%s0 + $0x10] sm:$0xf]
  %v24 = vld [vmem:[%s0 + $0x14] sm:$0xf]
  %v25 = vld [vmem:[%s0 + $0x18] sm:$0xf]
  %v26 = vld [vmem:[%s0 + $0x1c] sm:$0xf]
  %v27 = vld [vmem:[%s0 + $0x20] sm:$0xf]
  %v28 = vld [vmem:[%s0 + $0x24] sm:$0xf]
  %v29 = vld [vmem:[%s0 + $0x28] sm:$0xf]
  %v30 = vld [vmem:[%s0 + $0x2c] sm:$0xf]
  %v31 = vld [vmem:[%s0 + $0x30] sm:$0xf]
  %v32 = vld [vmem:[%s0 + $0x34] sm:$0xf]
  %v33 = vld [vmem:[%s0 + $0x38] sm:$0xf]
  %v34 = vld [vmem:[%s0 + $0x3c] sm:$0xf]
  %v35 = vld [vmem:[%s0 + $0x40] sm:$0xf]
  %v36 = vld [vmem:[%s0 + $0x44] sm:$0xf]
  %v37 = vld [vmem:[%s0 + $0x48] sm:$0xf]
  %v38 = vld [vmem:[%s0 + $0x4c] sm:$0xf]
  %v39 = vld [vmem:[%s0 + $0x50] sm:$0xf]
  %v40 = vld [vmem:[%s0 + $0x54] sm:$0xf]
  %v41 = vld [vmem:[%s0 + $0x58] sm:$0xf]
  %v42 = vld [vmem:[%s0 + $0x5c] sm:$0xf]
  %v43 = vld [vmem:[%s0 + $0x60] sm:$0xf]
  %v44 = vld [vmem:[%s0 + $0x64] sm:$0xf]
  %v45 = vld [vmem:[%s0 + $0x68] sm:$0xf]
  %v46 = vld [vmem:[%s0 + $0x6c] sm:$0xf]
  %v47 = vld [vmem:[%s0 + $0x70] sm:$0xf]
  %v48 = vld [vmem:[%s0 + $0x74] sm:$0xf]
  %v49 = vld [vmem:[%s0 + $0x78] sm:$0xf]
  %v50 = vld [vmem:[%s0 + $0x7c] sm:$0xf]
  %v51 = vld [vmem:[%s0 + $0x80] sm:$0xf]
  %v52 = vld [vmem:[%s0 + $0x84] sm:$0xf]
  %v53 = vld [vmem:[%s0 + $0x88] sm:$0xf]
  %v54 = vld [vmem:[%s0 + $0x8c] sm:$0xf]
  %v55 = vld [vmem:[%s2] sm:$0xff]
  %v56 = vld [vmem:[%s2 + $0x8] sm:$0xff]
  %58 = vset.pattern.permute.xlu0 0
  %59 = vperm.xlu0 %58, %v55
  %v60 = vpop.permute.xlu0 %59
  %63 = vset.pattern.permute.xlu0 0
  %64 = vperm.xlu0 %63, %v56
  %v65 = vpop.permute.xlu0 %64
  %v71 = vunpack.c.l.b16 %v15
  %v72 = vunpack.c.h.b16 %v15
  %v73 = vunpack.c.l.b16 %v16
  %v74 = vunpack.c.l.b16 %v17
  %v75 = vunpack.c.h.b16 %v17
  %v76 = vunpack.c.l.b16 %v18
  %v77 = vpack.c.b16 %v74, %v71
  %v78 = vpack.c.b16 %v75, %v72
  %v79 = vpack.c.b16 %v76, %v73
  %v118 = vunpack.c.l.b16 %v19
  %v119 = vunpack.c.l.b16 %v20
  %v120 = vunpack.c.l.b16 %v21
  %v121 = vunpack.c.l.b16 %v22
  %v122 = vunpack.c.l.b16 %v23
  %v123 = vunpack.c.l.b16 %v24
  %v124 = vunpack.c.l.b16 %v25
  %v125 = vunpack.c.l.b16 %v26
  %v126 = vunpack.c.l.b16 %v27
  %v127 = vunpack.c.l.b16 %v28
  %v128 = vunpack.c.l.b16 %v29
  %v129 = vunpack.c.l.b16 %v30
  %v130 = vunpack.c.l.b16 %v31
  %v131 = vunpack.c.l.b16 %v32
  %v132 = vunpack.c.l.b16 %v33
  %v133 = vunpack.c.l.b16 %v34
  %v134 = vunpack.c.l.b16 %v35
  %v135 = vunpack.c.l.b16 %v36
  %v136 = vunpack.c.l.b16 %v37
  %v137 = vunpack.c.l.b16 %v38
  %v138 = vunpack.c.l.b16 %v39
  %v139 = vunpack.c.l.b16 %v40
  %v140 = vunpack.c.l.b16 %v41
  %v141 = vunpack.c.l.b16 %v42
  %v142 = vunpack.c.l.b16 %v43
  %v143 = vunpack.c.l.b16 %v44
  %v144 = vunpack.c.l.b16 %v45
  %v145 = vunpack.c.l.b16 %v46
  %v146 = vunpack.c.l.b16 %v47
  %v147 = vunpack.c.l.b16 %v48
  %v148 = vunpack.c.l.b16 %v49
  %v149 = vunpack.c.l.b16 %v50
  %v150 = vunpack.c.l.b16 %v51
  %v151 = vunpack.c.l.b16 %v52
  %v152 = vunpack.c.l.b16 %v53
  %v153 = vunpack.c.l.b16 %v54
  %v154 = vpack.c.b16 %v119, %v118
  %v155 = vpack.c.b16 %v121, %v120
  %v156 = vpack.c.b16 %v123, %v122
  %v157 = vpack.c.b16 %v125, %v124
  %v158 = vpack.c.b16 %v127, %v126
  %v159 = vpack.c.b16 %v129, %v128
  %v160 = vpack.c.b16 %v131, %v130
  %v161 = vpack.c.b16 %v133, %v132
  %v162 = vpack.c.b16 %v135, %v134
  %v163 = vpack.c.b16 %v137, %v136
  %v164 = vpack.c.b16 %v139, %v138
  %v165 = vpack.c.b16 %v141, %v140
  %v166 = vpack.c.b16 %v143, %v142
  %v167 = vpack.c.b16 %v145, %v144
  %v168 = vpack.c.b16 %v147, %v146
  %v169 = vpack.c.b16 %v149, %v148
  %v170 = vpack.c.b16 %v151, %v150
  %v171 = vpack.c.b16 %v153, %v152
  %vm190 = vcmask 261120
  %v192 = vsel %vm190, %v79, 0
  %194 = vmatprep.subr.bf16.mxu0 0
  %195 = vmatpush1.bf16.msra.mxu0 %v161
  %196 = vmatprep.subr.bf16.mxu0 0
  %197 = vmatpush1.bf16.msra.mxu0 %v160
  %198 = vmatprep.subr.bf16.mxu0 0
  %199 = vmatpush1.bf16.msra.mxu0 %v159
  %200 = vmatprep.subr.bf16.mxu0 0
  %201 = vmatpush1.bf16.msra.mxu0 %v158
  %202 = vmatprep.subr.bf16.mxu0 0
  %203 = vmatpush1.bf16.msra.mxu0 %v157
  %204 = vmatprep.subr.bf16.mxu0 0
  %205 = vmatpush1.bf16.msra.mxu0 %v156
  %206 = vmatprep.subr.bf16.mxu0 0
  %207 = vmatpush1.bf16.msra.mxu0 %v155
  %208 = vmatprep.subr.bf16.mxu0 0
  %209 = vmatpush1.bf16.msra.mxu0 %v154
  %210 = vmatprep.subr.bf16.mxu0 0
  %211 = vmatpush2.bf16.msra.mxu0 %v169
  %212 = vmatprep.subr.bf16.mxu0 0
  %213 = vmatpush2.bf16.msra.mxu0 %v168
  %214 = vmatprep.subr.bf16.mxu0 0
  %215 = vmatpush2.bf16.msra.mxu0 %v167
  %216 = vmatprep.subr.bf16.mxu0 0
  %217 = vmatpush2.bf16.msra.mxu0 %v166
  %218 = vmatprep.subr.bf16.mxu0 0
  %219 = vmatpush2.bf16.msra.mxu0 %v165
  %220 = vmatprep.subr.bf16.mxu0 0
  %221 = vmatpush2.bf16.msra.mxu0 %v164
  %222 = vmatprep.subr.bf16.mxu0 0
  %223 = vmatpush2.bf16.msra.mxu0 %v163
  %224 = vmatprep.subr.bf16.mxu0 0
  %225 = vmatpush2.bf16.msra.mxu0 %v162
  %226 = vmatprep.mubr.bf16.mxu0 %v78
  %227 = vmatmul.mubr.bf16.gmra.mxu0 %v77
  %v228 = vpop.f32.mrf.mxu0
  %v229 = vadd.f32 %v60, %v228
  %v230 = vpop.f32.mrf.mxu0
  %v231 = vpop.f32.mrf.mxu0
  %v232 = vadd.f32 %v65, %v231
  %v233 = vpop.f32.mrf.mxu0
  %234 = vdwg.mxu0
  %235 = vmatprep.subr.bf16.mxu0 0
  %236 = vmatpush1.bf16.msra.mxu0 0
  %237 = vmatprep.subr.bf16.mxu0 0
  %238 = vmatpush1.bf16.msra.mxu0 0
  %239 = vmatprep.subr.bf16.mxu0 0
  %240 = vmatpush1.bf16.msra.mxu0 0
  %241 = vmatprep.subr.bf16.mxu0 0
  %242 = vmatpush1.bf16.msra.mxu0 0
  %243 = vmatprep.subr.bf16.mxu0 0
  %244 = vmatpush1.bf16.msra.mxu0 0
  %245 = vmatprep.subr.bf16.mxu0 0
  %246 = vmatpush1.bf16.msra.mxu0 0
  %247 = vmatprep.subr.bf16.mxu0 0
  %248 = vmatpush1.bf16.msra.mxu0 %v171
  %249 = vmatprep.subr.bf16.mxu0 0
  %250 = vmatpush1.bf16.msra.mxu0 %v170
  %251 = vmatprep.subr.bf16.mxu0 0
  %252 = vmatpush2.bf16.msra.mxu0 0
  %253 = vmatprep.subr.bf16.mxu0 0
  %254 = vmatpush2.bf16.msra.mxu0 0
  %255 = vmatprep.subr.bf16.mxu0 0
  %256 = vmatpush2.bf16.msra.mxu0 0
  %257 = vmatprep.subr.bf16.mxu0 0
  %258 = vmatpush2.bf16.msra.mxu0 0
  %259 = vmatprep.subr.bf16.mxu0 0
  %260 = vmatpush2.bf16.msra.mxu0 0
  %261 = vmatprep.subr.bf16.mxu0 0
  %262 = vmatpush2.bf16.msra.mxu0 0
  %263 = vmatprep.subr.bf16.mxu0 0
  %264 = vmatpush2.bf16.msra.mxu0 0
  %265 = vmatprep.subr.bf16.mxu0 0
  %266 = vmatpush2.bf16.msra.mxu0 0
  %267 = vmatprep.mubr.bf16.mxu0 0
  %268 = vmatmul.mubr.bf16.gmra.mxu0 %v192
  %v269 = vpop.f32.mrf.mxu0
  %v270 = vadd.f32 %v229, %v269
  %v271 = vpop.f32.mrf.mxu0
  %v272 = vpop.f32.mrf.mxu0
  %v273 = vadd.f32 %v232, %v272
  %v274 = vpop.f32.mrf.mxu0
  %275 = vdwg.mxu0
  %v276 = vmax.f32 %v270, 0.0
  %v277 = vmax.f32 %v273, 0.0
  %278 = vst.msk [vmem:[%s3] sm:$0xff] %vm190, %v276
  %279 = vst.msk [vmem:[%s3 + $0x8] sm:$0xff] %vm190, %v277
  // Predicated region
  $region14: #{vqvae2_forward.19} parent=0 // pred_check
    _
  $region15: #{vqvae2_forward.19} parent=0 // pred_check_branch
    %281 = sbr.rel (0) target = $region17
  $region16: #{vqvae2_forward.19} parent=0 // pred_region
    _
  $region17: #{vqvae2_forward.19} parent=0 // pred_fallthru
    _
  // Predicated region
  $region18: #{vqvae2_forward.19} parent=0 // pred_check
    _
  $region19: #{vqvae2_forward.19} parent=0 // pred_check_branch
    %283 = sbr.rel (0) target = $region21
  $region20: #{vqvae2_forward.19} parent=0 // pred_region
    _
  $region21: #{vqvae2_forward.19} parent=0 // pred_fallthru
    _

// kernel: vqvae2_forward.20
$region0: #{vqvae2_forward.20}
  #allocation0 [shape = 'u32[]', space=smem, size = 0x4, offset = 0x4, fixed_abs, tag = 'smem constant byte address 0x4 - core index']
  #allocation1 [shape = 'u32[144,128]{1,0:T(1,128)}', space=vmem, size = 0x12000, scoped, tag = 'internal scratch']
  %s0 = inlined_call_operand.vmem [shape: bf16[144,128], index: 0, kind: input, shape index: {}]
  %s1 = inlined_call_operand.vmem [shape: bf16[8,144], index: 1, kind: input, shape index: {}]
  %s2 = inlined_call_operand.vmem [shape: f32[8,1], index: 2, kind: input, shape index: {}]
  %s3 = inlined_call_operand.vmem [shape: f32[8,128], index: 3, kind: output, shape index: {}]
  %s4 = sld [smem:[#allocation0]]
  $region22: #{vqvae2_forward.20} parent=0
    _
  %s6 = ssub.s32 1, %s4
  %s7 = scalar_select 0, %s6, %s4
  // Predicated region
  $region2: #{vqvae2_forward.20} parent=0 // pred_check
    _
  $region3: #{vqvae2_forward.20} parent=0 // pred_check_branch
    %9 = sbr.rel (0) target = $region5
  $region4: #{vqvae2_forward.20} parent=0 // pred_region
    _
  $region5: #{vqvae2_forward.20} parent=0 // pred_fallthru
    _
  // Predicated region
  $region6: #{vqvae2_forward.20} parent=0 // pred_check
    _
  $region7: #{vqvae2_forward.20} parent=0 // pred_check_branch
    %11 = sbr.rel (0) target = $region9
  $region8: #{vqvae2_forward.20} parent=0 // pred_region
    _
  $region9: #{vqvae2_forward.20} parent=0 // pred_fallthru
    _
  // Predicated region
  $region10: #{vqvae2_forward.20} parent=0 // pred_check
    _
  $region11: #{vqvae2_forward.20} parent=0 // pred_check_branch
    %13 = sbr.rel (0) target = $region13
  $region12: #{vqvae2_forward.20} parent=0 // pred_region
    _
  $region13: #{vqvae2_forward.20} parent=0 // pred_fallthru
    _
  %v15 = vld [vmem:[%s1] sm:$0xff]
  %v16 = vld [vmem:[%s0] sm:$0xf]
  %v17 = vld [vmem:[%s0 + $0x4] sm:$0xf]
  %v18 = vld [vmem:[%s0 + $0x8] sm:$0xf]
  %v19 = vld [vmem:[%s0 + $0xc] sm:$0xf]
  %v20 = vld [vmem:[%s0 + $0x10] sm:$0xf]
  %v21 = vld [vmem:[%s0 + $0x14] sm:$0xf]
  %v22 = vld [vmem:[%s0 + $0x18] sm:$0xf]
  %v23 = vld [vmem:[%s0 + $0x1c] sm:$0xf]
  %v24 = vld [vmem:[%s0 + $0x20] sm:$0xf]
  %v25 = vld [vmem:[%s0 + $0x24] sm:$0xf]
  %v26 = vld [vmem:[%s0 + $0x28] sm:$0xf]
  %v27 = vld [vmem:[%s0 + $0x2c] sm:$0xf]
  %v28 = vld [vmem:[%s0 + $0x30] sm:$0xf]
  %v29 = vld [vmem:[%s0 + $0x34] sm:$0xf]
  %v30 = vld [vmem:[%s0 + $0x38] sm:$0xf]
  %v31 = vld [vmem:[%s0 + $0x3c] sm:$0xf]
  %v32 = vld [vmem:[%s0 + $0x40] sm:$0xf]
  %v33 = vld [vmem:[%s0 + $0x44] sm:$0xf]
  %v34 = vld [vmem:[%s2] sm:$0xff]
  %36 = vset.pattern.permute.xlu0 0
  %37 = vperm.xlu0 %36, %v34
  %v38 = vpop.permute.xlu0 %37
  %v41 = vunpack.c.l.b16 %v15
  %v42 = vunpack.c.h.b16 %v15
  %v43 = vpack.c.b16 %v41, %v41
  %v44 = vpack.c.b16 %v42, %v42
  %v64 = vunpack.c.l.b16 %v16
  %v65 = vunpack.c.l.b16 %v17
  %v66 = vunpack.c.l.b16 %v18
  %v67 = vunpack.c.l.b16 %v19
  %v68 = vunpack.c.l.b16 %v20
  %v69 = vunpack.c.l.b16 %v21
  %v70 = vunpack.c.l.b16 %v22
  %v71 = vunpack.c.l.b16 %v23
  %v72 = vunpack.c.l.b16 %v24
  %v73 = vunpack.c.l.b16 %v25
  %v74 = vunpack.c.l.b16 %v26
  %v75 = vunpack.c.l.b16 %v27
  %v76 = vunpack.c.l.b16 %v28
  %v77 = vunpack.c.l.b16 %v29
  %v78 = vunpack.c.l.b16 %v30
  %v79 = vunpack.c.l.b16 %v31
  %v80 = vunpack.c.l.b16 %v32
  %v81 = vunpack.c.l.b16 %v33
  %v82 = vpack.c.b16 %v65, %v64
  %v83 = vpack.c.b16 %v67, %v66
  %v84 = vpack.c.b16 %v69, %v68
  %v85 = vpack.c.b16 %v71, %v70
  %v86 = vpack.c.b16 %v73, %v72
  %v87 = vpack.c.b16 %v75, %v74
  %v88 = vpack.c.b16 %v77, %v76
  %v89 = vpack.c.b16 %v79, %v78
  %v90 = vpack.c.b16 %v81, %v80
  %vm100 = vcmask 130048
  %v102 = vsel %vm100, %v44, 0
  %104 = vmatprep.subr.bf16.mxu0 0
  %105 = vmatpush1.bf16.msra.mxu0 %v89
  %106 = vmatprep.subr.bf16.mxu0 0
  %107 = vmatpush1.bf16.msra.mxu0 %v88
  %108 = vmatprep.subr.bf16.mxu0 0
  %109 = vmatpush1.bf16.msra.mxu0 %v87
  %110 = vmatprep.subr.bf16.mxu0 0
  %111 = vmatpush1.bf16.msra.mxu0 %v86
  %112 = vmatprep.subr.bf16.mxu0 0
  %113 = vmatpush1.bf16.msra.mxu0 %v85
  %114 = vmatprep.subr.bf16.mxu0 0
  %115 = vmatpush1.bf16.msra.mxu0 %v84
  %116 = vmatprep.subr.bf16.mxu0 0
  %117 = vmatpush1.bf16.msra.mxu0 %v83
  %118 = vmatprep.subr.bf16.mxu0 0
  %119 = vmatpush1.bf16.msra.mxu0 %v82
  %120 = vmatprep.subr.bf16.mxu0 0
  %121 = vmatpush2.bf16.msra.mxu0 0
  %122 = vmatprep.subr.bf16.mxu0 0
  %123 = vmatpush2.bf16.msra.mxu0 0
  %124 = vmatprep.subr.bf16.mxu0 0
  %125 = vmatpush2.bf16.msra.mxu0 0
  %126 = vmatprep.subr.bf16.mxu0 0
  %127 = vmatpush2.bf16.msra.mxu0 0
  %128 = vmatprep.subr.bf16.mxu0 0
  %129 = vmatpush2.bf16.msra.mxu0 0
  %130 = vmatprep.subr.bf16.mxu0 0
  %131 = vmatpush2.bf16.msra.mxu0 0
  %132 = vmatprep.subr.bf16.mxu0 0
  %133 = vmatpush2.bf16.msra.mxu0 0
  %134 = vmatprep.subr.bf16.mxu0 0
  %135 = vmatpush2.bf16.msra.mxu0 %v90
  %136 = vmatprep.mubr.bf16.mxu0 %v102
  %137 = vmatmul.mubr.bf16.gmra.mxu0 %v43
  %v138 = vpop.f32.mrf.mxu0
  %v139 = vadd.f32 %v38, %v138
  %v140 = vpop.f32.mrf.mxu0
  %v141 = vpop.f32.mrf.mxu0
  %v142 = vpop.f32.mrf.mxu0
  %143 = vdwg.mxu0
  %v144 = vmax.f32 %v139, 0.0
  %145 = vst [vmem:[%s3] sm:$0xff] %v144
  // Predicated region
  $region14: #{vqvae2_forward.20} parent=0 // pred_check
    _
  $region15: #{vqvae2_forward.20} parent=0 // pred_check_branch
    %147 = sbr.rel (0) target = $region17
  $region16: #{vqvae2_forward.20} parent=0 // pred_region
    _
  $region17: #{vqvae2_forward.20} parent=0 // pred_fallthru
    _
  // Predicated region
  $region18: #{vqvae2_forward.20} parent=0 // pred_check
    _
  $region19: #{vqvae2_forward.20} parent=0 // pred_check_branch
    %149 = sbr.rel (0) target = $region21
  $region20: #{vqvae2_forward.20} parent=0 // pred_region
    _
  $region21: #{vqvae2_forward.20} parent=0 // pred_fallthru
    _

// kernel: vqvae2_forward.21
$region0: #{vqvae2_forward.21}
  #allocation0 [shape = 'u32[]', space=smem, size = 0x4, offset = 0x4, fixed_abs, tag = 'smem constant byte address 0x4 - core index']
  #allocation1 [shape = 'u32[144,128]{1,0:T(1,128)}', space=vmem, size = 0x12000, scoped, tag = 'internal scratch']
  %s0 = inlined_call_operand.vmem [shape: bf16[72,512], index: 0, kind: input, shape index: {}]
  %s1 = inlined_call_operand.vmem [shape: bf16[4,72], index: 1, kind: input, shape index: {}]
  %s2 = inlined_call_operand.vmem [shape: f32[4,1], index: 2, kind: input, shape index: {}]
  %s3 = inlined_call_operand.vmem [shape: f32[4,512], index: 3, kind: output, shape index: {}]
  %s4 = sld [smem:[#allocation0]]
  $region22: #{vqvae2_forward.21} parent=0
    _
  %s6 = ssub.s32 1, %s4
  %s7 = scalar_select 0, %s6, %s4
  // Predicated region
  $region2: #{vqvae2_forward.21} parent=0 // pred_check
    _
  $region3: #{vqvae2_forward.21} parent=0 // pred_check_branch
    %9 = sbr.rel (0) target = $region5
  $region4: #{vqvae2_forward.21} parent=0 // pred_region
    _
  $region5: #{vqvae2_forward.21} parent=0 // pred_fallthru
    _
  // Predicated region
  $region6: #{vqvae2_forward.21} parent=0 // pred_check
    _
  $region7: #{vqvae2_forward.21} parent=0 // pred_check_branch
    %11 = sbr.rel (0) target = $region9
  $region8: #{vqvae2_forward.21} parent=0 // pred_region
    _
  $region9: #{vqvae2_forward.21} parent=0 // pred_fallthru
    _
  // Predicated region
  $region10: #{vqvae2_forward.21} parent=0 // pred_check
    _
  $region11: #{vqvae2_forward.21} parent=0 // pred_check_branch
    %13 = sbr.rel (0) target = $region13
  $region12: #{vqvae2_forward.21} parent=0 // pred_region
    _
  $region13: #{vqvae2_forward.21} parent=0 // pred_fallthru
    _
  %v15 = vld [vmem:[%s1] sm:$0x3]
  %v16 = vld [vmem:[%s0] sm:$0xff]
  %v17 = vld [vmem:[%s0 + $0x8] sm:$0xff]
  %v18 = vld [vmem:[%s0 + $0x10] sm:$0xff]
  %v19 = vld [vmem:[%s0 + $0x18] sm:$0xff]
  %v20 = vld [vmem:[%s0 + $0x20] sm:$0xff]
  %v21 = vld [vmem:[%s0 + $0x28] sm:$0xff]
  %v22 = vld [vmem:[%s0 + $0x30] sm:$0xff]
  %v23 = vld [vmem:[%s0 + $0x38] sm:$0xff]
  %v24 = vld [vmem:[%s0 + $0x40] sm:$0xff]
  %v25 = vld [vmem:[%s0 + $0x48] sm:$0xff]
  %v26 = vld [vmem:[%s0 + $0x50] sm:$0xff]
  %v27 = vld [vmem:[%s0 + $0x58] sm:$0xff]
  %v28 = vld [vmem:[%s0 + $0x60] sm:$0xff]
  %v29 = vld [vmem:[%s0 + $0x68] sm:$0xff]
  %v30 = vld [vmem:[%s0 + $0x70] sm:$0xff]
  %v31 = vld [vmem:[%s0 + $0x78] sm:$0xff]
  %v32 = vld [vmem:[%s0 + $0x80] sm:$0xff]
  %v33 = vld [vmem:[%s0 + $0x88] sm:$0xff]
  %v34 = vld [vmem:[%s2] sm:$0xf]
  %36 = vset.pattern.permute.xlu0 0
  %37 = vperm.xlu0 %36, %v34
  %v38 = vpop.permute.xlu0 %37
  %v58 = vunpack.c.l.b16 %v16
  %v59 = vunpack.c.h.b16 %v16
  %v60 = vunpack.c.l.b16 %v17
  %v61 = vunpack.c.h.b16 %v17
  %v62 = vunpack.c.l.b16 %v18
  %v63 = vunpack.c.h.b16 %v18
  %v64 = vunpack.c.l.b16 %v19
  %v65 = vunpack.c.h.b16 %v19
  %v66 = vunpack.c.l.b16 %v20
  %v67 = vunpack.c.h.b16 %v20
  %v68 = vunpack.c.l.b16 %v21
  %v69 = vunpack.c.h.b16 %v21
  %v70 = vunpack.c.l.b16 %v22
  %v71 = vunpack.c.h.b16 %v22
  %v72 = vunpack.c.l.b16 %v23
  %v73 = vunpack.c.h.b16 %v23
  %v74 = vunpack.c.l.b16 %v24
  %v75 = vunpack.c.h.b16 %v24
  %v76 = vunpack.c.l.b16 %v25
  %v77 = vunpack.c.h.b16 %v25
  %v78 = vunpack.c.l.b16 %v26
  %v79 = vunpack.c.h.b16 %v26
  %v80 = vunpack.c.l.b16 %v27
  %v81 = vunpack.c.h.b16 %v27
  %v82 = vunpack.c.l.b16 %v28
  %v83 = vunpack.c.h.b16 %v28
  %v84 = vunpack.c.l.b16 %v29
  %v85 = vunpack.c.h.b16 %v29
  %v86 = vunpack.c.l.b16 %v30
  %v87 = vunpack.c.h.b16 %v30
  %v88 = vunpack.c.l.b16 %v31
  %v89 = vunpack.c.h.b16 %v31
  %v90 = vunpack.c.l.b16 %v32
  %v91 = vunpack.c.h.b16 %v32
  %v92 = vunpack.c.l.b16 %v33
  %v93 = vunpack.c.h.b16 %v33
  %v94 = vpack.c.b16 %v62, %v58
  %v95 = vpack.c.b16 %v63, %v59
  %v96 = vpack.c.b16 %v64, %v60
  %v97 = vpack.c.b16 %v65, %v61
  %v98 = vpack.c.b16 %v70, %v66
  %v99 = vpack.c.b16 %v71, %v67
  %v100 = vpack.c.b16 %v72, %v68
  %v101 = vpack.c.b16 %v73, %v69
  %v102 = vpack.c.b16 %v78, %v74
  %v103 = vpack.c.b16 %v79, %v75
  %v104 = vpack.c.b16 %v80, %v76
  %v105 = vpack.c.b16 %v81, %v77
  %v106 = vpack.c.b16 %v86, %v82
  %v107 = vpack.c.b16 %v87, %v83
  %v108 = vpack.c.b16 %v88, %v84
  %v109 = vpack.c.b16 %v89, %v85
  %v110 = vpack.c.b16 %v90, %v90
  %v111 = vpack.c.b16 %v91, %v91
  %v112 = vpack.c.b16 %v92, %v92
  %v113 = vpack.c.b16 %v93, %v93
  %vm130 = vcmask 588800
  %v132 = vsel %vm130, %v15, 0
  %vm134 = vcmask 1043456
  %v136 = vsel %vm134, %v110, 0
  %v139 = vsel %vm134, %v111, 0
  %v142 = vsel %vm134, %v112, 0
  %v145 = vsel %vm134, %v113, 0
  %147 = vmatprep.subr.bf16.mxu0 0
  %148 = vmatpush1.bf16.msra.mxu0 0
  %149 = vmatprep.subr.bf16.mxu0 0
  %150 = vmatpush1.bf16.msra.mxu0 0
  %151 = vmatprep.subr.bf16.mxu0 0
  %152 = vmatpush1.bf16.msra.mxu0 0
  %153 = vmatprep.subr.bf16.mxu0 %v139
  %154 = vmatpush1.bf16.msra.mxu0 %v136
  %155 = vmatprep.subr.bf16.mxu0 %v107
  %156 = vmatpush1.bf16.msra.mxu0 %v106
  %157 = vmatprep.subr.bf16.mxu0 %v103
  %158 = vmatpush1.bf16.msra.mxu0 %v102
  %159 = vmatprep.subr.bf16.mxu0 %v99
  %160 = vmatpush1.bf16.msra.mxu0 %v98
  %161 = vmatprep.subr.bf16.mxu0 %v95
  %162 = vmatpush1.bf16.msra.mxu0 %v94
  %163 = vmatprep.subr.bf16.mxu0 0
  %164 = vmatpush2.bf16.msra.mxu0 0
  %165 = vmatprep.subr.bf16.mxu0 0
  %166 = vmatpush2.bf16.msra.mxu0 0
  %167 = vmatprep.subr.bf16.mxu0 0
  %168 = vmatpush2.bf16.msra.mxu0 0
  %169 = vmatprep.subr.bf16.mxu0 0
  %170 = vmatpush2.bf16.msra.mxu0 0
  %171 = vmatprep.subr.bf16.mxu0 0
  %172 = vmatpush2.bf16.msra.mxu0 0
  %173 = vmatprep.subr.bf16.mxu0 0
  %174 = vmatpush2.bf16.msra.mxu0 0
  %175 = vmatprep.subr.bf16.mxu0 0
  %176 = vmatpush2.bf16.msra.mxu0 0
  %177 = vmatprep.subr.bf16.mxu0 0
  %178 = vmatpush2.bf16.msra.mxu0 0
  %179 = vmatprep.mubr.bf16.mxu0 0
  %180 = vmatmul.mubr.bf16.gmra.mxu0 %v132
  %v181 = vpop.f32.mrf.mxu0
  %v182 = vadd.f32 %v38, %v181
  %v183 = vpop.f32.mrf.mxu0
  %v184 = vadd.f32 %v38, %v183
  %v185 = vpop.f32.mrf.mxu0
  %v186 = vpop.f32.mrf.mxu0
  %187 = vdwg.mxu0
  %188 = vmatprep.subr.bf16.mxu0 0
  %189 = vmatpush1.bf16.msra.mxu0 0
  %190 = vmatprep.subr.bf16.mxu0 0
  %191 = vmatpush1.bf16.msra.mxu0 0
  %192 = vmatprep.subr.bf16.mxu0 0
  %193 = vmatpush1.bf16.msra.mxu0 0
  %194 = vmatprep.subr.bf16.mxu0 %v145
  %195 = vmatpush1.bf16.msra.mxu0 %v142
  %196 = vmatprep.subr.bf16.mxu0 %v109
  %197 = vmatpush1.bf16.msra.mxu0 %v108
  %198 = vmatprep.subr.bf16.mxu0 %v105
  %199 = vmatpush1.bf16.msra.mxu0 %v104
  %200 = vmatprep.subr.bf16.mxu0 %v101
  %201 = vmatpush1.bf16.msra.mxu0 %v100
  %202 = vmatprep.subr.bf16.mxu0 %v97
  %203 = vmatpush1.bf16.msra.mxu0 %v96
  %204 = vmatprep.subr.bf16.mxu0 0
  %205 = vmatpush2.bf16.msra.mxu0 0
  %206 = vmatprep.subr.bf16.mxu0 0
  %207 = vmatpush2.bf16.msra.mxu0 0
  %208 = vmatprep.subr.bf16.mxu0 0
  %209 = vmatpush2.bf16.msra.mxu0 0
  %210 = vmatprep.subr.bf16.mxu0 0
  %211 = vmatpush2.bf16.msra.mxu0 0
  %212 = vmatprep.subr.bf16.mxu0 0
  %213 = vmatpush2.bf16.msra.mxu0 0
  %214 = vmatprep.subr.bf16.mxu0 0
  %215 = vmatpush2.bf16.msra.mxu0 0
  %216 = vmatprep.subr.bf16.mxu0 0
  %217 = vmatpush2.bf16.msra.mxu0 0
  %218 = vmatprep.subr.bf16.mxu0 0
  %219 = vmatpush2.bf16.msra.mxu0 0
  %220 = vmatprep.mubr.bf16.mxu0 0
  %221 = vmatmul.mubr.bf16.gmra.mxu0 %v132
  %v222 = vpop.f32.mrf.mxu0
  %v223 = vadd.f32 %v38, %v222
  %v224 = vpop.f32.mrf.mxu0
  %v225 = vadd.f32 %v38, %v224
  %v226 = vpop.f32.mrf.mxu0
  %v227 = vpop.f32.mrf.mxu0
  %228 = vdwg.mxu0
  %v229 = vmax.f32 %v182, 0.0
  %v230 = vmax.f32 %v184, 0.0
  %v231 = vmax.f32 %v223, 0.0
  %v232 = vmax.f32 %v225, 0.0
  %v237 = vcombine.low %v229, %v230
  %v238 = vcombine.low %v231, %v232
  %241 = vst [vmem:[%s3] sm:$0xff] %v237
  %242 = vst [vmem:[%s3 + $0x8] sm:$0xff] %v238
  // Predicated region
  $region14: #{vqvae2_forward.21} parent=0 // pred_check
    _
  $region15: #{vqvae2_forward.21} parent=0 // pred_check_branch
    %244 = sbr.rel (0) target = $region17
  $region16: #{vqvae2_forward.21} parent=0 // pred_region
    _
  $region17: #{vqvae2_forward.21} parent=0 // pred_fallthru
    _
  // Predicated region
  $region18: #{vqvae2_forward.21} parent=0 // pred_check
    _
  $region19: #{vqvae2_forward.21} parent=0 // pred_check_branch
    %246 = sbr.rel (0) target = $region21
  $region20: #{vqvae2_forward.21} parent=0 // pred_region
    _
  $region21: #{vqvae2_forward.21} parent=0 // pred_fallthru
    _

// kernel: vqvae2_forward.23
$region0: #{vqvae2_forward.23}
  #allocation0 [shape = 'u32[]', space=smem, size = 0x4, offset = 0x4, fixed_abs, tag = 'smem constant byte address 0x4 - core index']
  #allocation1 [shape = 'u32[144,128]{1,0:T(1,128)}', space=vmem, size = 0x12000, scoped, tag = 'internal scratch']
  %s0 = inlined_call_operand.vmem [shape: bf16[4,512], index: 0, kind: input, shape index: {}]
  %s1 = inlined_call_operand.vmem [shape: bf16[4,4], index: 1, kind: input, shape index: {}]
  %s2 = inlined_call_operand.vmem [shape: f32[4,1], index: 2, kind: input, shape index: {}]
  %s3 = inlined_call_operand.vmem [shape: f32[4,512], index: 3, kind: output, shape index: {}]
  %s4 = sld [smem:[#allocation0]]
  $region22: #{vqvae2_forward.23} parent=0
    _
  %s6 = ssub.s32 1, %s4
  %s7 = scalar_select 0, %s6, %s4
  // Predicated region
  $region2: #{vqvae2_forward.23} parent=0 // pred_check
    _
  $region3: #{vqvae2_forward.23} parent=0 // pred_check_branch
    %9 = sbr.rel (0) target = $region5
  $region4: #{vqvae2_forward.23} parent=0 // pred_region
    _
  $region5: #{vqvae2_forward.23} parent=0 // pred_fallthru
    _
  // Predicated region
  $region6: #{vqvae2_forward.23} parent=0 // pred_check
    _
  $region7: #{vqvae2_forward.23} parent=0 // pred_check_branch
    %11 = sbr.rel (0) target = $region9
  $region8: #{vqvae2_forward.23} parent=0 // pred_region
    _
  $region9: #{vqvae2_forward.23} parent=0 // pred_fallthru
    _
  // Predicated region
  $region10: #{vqvae2_forward.23} parent=0 // pred_check
    _
  $region11: #{vqvae2_forward.23} parent=0 // pred_check_branch
    %13 = sbr.rel (0) target = $region13
  $region12: #{vqvae2_forward.23} parent=0 // pred_region
    _
  $region13: #{vqvae2_forward.23} parent=0 // pred_fallthru
    _
  %v15 = vld [vmem:[%s1] sm:$0x3]
  %v16 = vld [vmem:[%s0] sm:$0xff]
  %v17 = vld [vmem:[%s2] sm:$0xf]
  %19 = vset.pattern.permute.xlu0 0
  %20 = vperm.xlu0 %19, %v17
  %v21 = vpop.permute.xlu0 %20
  %v24 = vcombine.high %v16, %v16
  %v26 = vunpack.c.l.s4 1983009808
  %v27 = vunpack.c.0.s8 %v26
  %v28 = vlaneseq
  %v29 = vshrl.u32 %v28, 7
  %v30 = vsub.s32 %v27, %v29
  %v31 = vrot.slane %v16, %v30
  %v33 = vunpack.c.l.s4 1983009808
  %v34 = vunpack.c.0.s8 %v33
  %v35 = vlaneseq
  %v36 = vshrl.u32 %v35, 7
  %v37 = vsub.s32 %v34, %v36
  %v38 = vrot.slane %v24, %v37
  %v39 = vcombine.high %v31, %v31
  %v40 = vcombine.high %v38, %v38
  %vm41 = vcmask 31744
  %v43 = vsel %vm41, %v15, 0
  %vm45 = vcmask 1041408
  %v47 = vsel %vm45, %v31, 0
  %v50 = vsel %vm45, %v39, 0
  %v53 = vsel %vm45, %v38, 0
  %v56 = vsel %vm45, %v40, 0
  %58 = vmatprep.subr.bf16.mxu0 0
  %59 = vmatpush1.bf16.msra.mxu0 0
  %60 = vmatprep.subr.bf16.mxu0 0
  %61 = vmatpush1.bf16.msra.mxu0 0
  %62 = vmatprep.subr.bf16.mxu0 0
  %63 = vmatpush1.bf16.msra.mxu0 0
  %64 = vmatprep.subr.bf16.mxu0 0
  %65 = vmatpush1.bf16.msra.mxu0 0
  %66 = vmatprep.subr.bf16.mxu0 0
  %67 = vmatpush1.bf16.msra.mxu0 0
  %68 = vmatprep.subr.bf16.mxu0 0
  %69 = vmatpush1.bf16.msra.mxu0 0
  %70 = vmatprep.subr.bf16.mxu0 0
  %71 = vmatpush1.bf16.msra.mxu0 0
  %72 = vmatprep.subr.bf16.mxu0 %v50
  %73 = vmatpush1.bf16.msra.mxu0 %v47
  %74 = vmatprep.subr.bf16.mxu0 0
  %75 = vmatpush2.bf16.msra.mxu0 0
  %76 = vmatprep.subr.bf16.mxu0 0
  %77 = vmatpush2.bf16.msra.mxu0 0
  %78 = vmatprep.subr.bf16.mxu0 0
  %79 = vmatpush2.bf16.msra.mxu0 0
  %80 = vmatprep.subr.bf16.mxu0 0
  %81 = vmatpush2.bf16.msra.mxu0 0
  %82 = vmatprep.subr.bf16.mxu0 0
  %83 = vmatpush2.bf16.msra.mxu0 0
  %84 = vmatprep.subr.bf16.mxu0 0
  %85 = vmatpush2.bf16.msra.mxu0 0
  %86 = vmatprep.subr.bf16.mxu0 0
  %87 = vmatpush2.bf16.msra.mxu0 0
  %88 = vmatprep.subr.bf16.mxu0 0
  %89 = vmatpush2.bf16.msra.mxu0 0
  %90 = vmatprep.mubr.bf16.mxu0 0
  %91 = vmatmul.mubr.bf16.gmra.mxu0 %v43
  %v92 = vpop.f32.mrf.mxu0
  %v93 = vadd.f32 %v21, %v92
  %v94 = vpop.f32.mrf.mxu0
  %v95 = vadd.f32 %v21, %v94
  %v96 = vpop.f32.mrf.mxu0
  %v97 = vpop.f32.mrf.mxu0
  %98 = vdwg.mxu0
  %99 = vmatprep.subr.bf16.mxu0 0
  %100 = vmatpush1.bf16.msra.mxu0 0
  %101 = vmatprep.subr.bf16.mxu0 0
  %102 = vmatpush1.bf16.msra.mxu0 0
  %103 = vmatprep.subr.bf16.mxu0 0
  %104 = vmatpush1.bf16.msra.mxu0 0
  %105 = vmatprep.subr.bf16.mxu0 0
  %106 = vmatpush1.bf16.msra.mxu0 0
  %107 = vmatprep.subr.bf16.mxu0 0
  %108 = vmatpush1.bf16.msra.mxu0 0
  %109 = vmatprep.subr.bf16.mxu0 0
  %110 = vmatpush1.bf16.msra.mxu0 0
  %111 = vmatprep.subr.bf16.mxu0 0
  %112 = vmatpush1.bf16.msra.mxu0 0
  %113 = vmatprep.subr.bf16.mxu0 %v56
  %114 = vmatpush1.bf16.msra.mxu0 %v53
  %115 = vmatprep.subr.bf16.mxu0 0
  %116 = vmatpush2.bf16.msra.mxu0 0
  %117 = vmatprep.subr.bf16.mxu0 0
  %118 = vmatpush2.bf16.msra.mxu0 0
  %119 = vmatprep.subr.bf16.mxu0 0
  %120 = vmatpush2.bf16.msra.mxu0 0
  %121 = vmatprep.subr.bf16.mxu0 0
  %122 = vmatpush2.bf16.msra.mxu0 0
  %123 = vmatprep.subr.bf16.mxu0 0
  %124 = vmatpush2.bf16.msra.mxu0 0
  %125 = vmatprep.subr.bf16.mxu0 0
  %126 = vmatpush2.bf16.msra.mxu0 0
  %127 = vmatprep.subr.bf16.mxu0 0
  %128 = vmatpush2.bf16.msra.mxu0 0
  %129 = vmatprep.subr.bf16.mxu0 0
  %130 = vmatpush2.bf16.msra.mxu0 0
  %131 = vmatprep.mubr.bf16.mxu0 0
  %132 = vmatmul.mubr.bf16.gmra.mxu0 %v43
  %v133 = vpop.f32.mrf.mxu0
  %v134 = vadd.f32 %v21, %v133
  %v135 = vpop.f32.mrf.mxu0
  %v136 = vadd.f32 %v21, %v135
  %v137 = vpop.f32.mrf.mxu0
  %v138 = vpop.f32.mrf.mxu0
  %139 = vdwg.mxu0
  %v144 = vcombine.low %v93, %v95
  %v145 = vcombine.low %v134, %v136
  %148 = vst [vmem:[%s3] sm:$0xff] %v144
  %149 = vst [vmem:[%s3 + $0x8] sm:$0xff] %v145
  // Predicated region
  $region14: #{vqvae2_forward.23} parent=0 // pred_check
    _
  $region15: #{vqvae2_forward.23} parent=0 // pred_check_branch
    %151 = sbr.rel (0) target = $region17
  $region16: #{vqvae2_forward.23} parent=0 // pred_region
    _
  $region17: #{vqvae2_forward.23} parent=0 // pred_fallthru
    _
  // Predicated region
  $region18: #{vqvae2_forward.23} parent=0 // pred_check
    _
  $region19: #{vqvae2_forward.23} parent=0 // pred_check_branch
    %153 = sbr.rel (0) target = $region21
  $region20: #{vqvae2_forward.23} parent=0 // pred_region
    _
  $region21: #{vqvae2_forward.23} parent=0 // pred_fallthru
    _

// kernel: vqvae2_forward.22
$region0: #{vqvae2_forward.22}
  #allocation0 [shape = 'u32[]', space=smem, size = 0x4, offset = 0x4, fixed_abs, tag = 'smem constant byte address 0x4 - core index']
  #allocation1 [shape = 'u32[144,128]{1,0:T(1,128)}', space=vmem, size = 0x12000, scoped, tag = 'internal scratch']
  %s0 = inlined_call_operand.vmem [shape: bf16[36,512], index: 0, kind: input, shape index: {}]
  %s1 = inlined_call_operand.vmem [shape: bf16[4,36], index: 1, kind: input, shape index: {}]
  %s2 = inlined_call_operand.vmem [shape: f32[4,1], index: 2, kind: input, shape index: {}]
  %s3 = inlined_call_operand.vmem [shape: f32[4,1], index: 3, kind: input, shape index: {}]
  %s4 = inlined_call_operand.vmem [shape: f32[4,1], index: 4, kind: input, shape index: {}]
  %s5 = inlined_call_operand.vmem [shape: bf16[4,4], index: 5, kind: input, shape index: {}]
  %s6 = inlined_call_operand.vmem [shape: f32[4,1], index: 6, kind: input, shape index: {}]
  %s7 = inlined_call_operand.vmem [shape: f32[4,512], index: 7, kind: input, shape index: {}]
  %s8 = inlined_call_operand.vmem [shape: f32[4,512], index: 8, kind: output, shape index: {}]
  %s9 = sld [smem:[#allocation0]]
  $region42: #{vqvae2_forward.22} parent=0
    _
  %s11 = ssub.s32 1, %s9
  %s12 = scalar_select 0, %s11, %s9
  // Predicated region
  $region2: #{vqvae2_forward.22} parent=0 // pred_check
    _
  $region3: #{vqvae2_forward.22} parent=0 // pred_check_branch
    %14 = sbr.rel (0) target = $region5
  $region4: #{vqvae2_forward.22} parent=0 // pred_region
    _
  $region5: #{vqvae2_forward.22} parent=0 // pred_fallthru
    _
  // Predicated region
  $region6: #{vqvae2_forward.22} parent=0 // pred_check
    _
  $region7: #{vqvae2_forward.22} parent=0 // pred_check_branch
    %16 = sbr.rel (0) target = $region9
  $region8: #{vqvae2_forward.22} parent=0 // pred_region
    _
  $region9: #{vqvae2_forward.22} parent=0 // pred_fallthru
    _
  // Predicated region
  $region10: #{vqvae2_forward.22} parent=0 // pred_check
    _
  $region11: #{vqvae2_forward.22} parent=0 // pred_check_branch
    %18 = sbr.rel (0) target = $region13
  $region12: #{vqvae2_forward.22} parent=0 // pred_region
    _
  $region13: #{vqvae2_forward.22} parent=0 // pred_fallthru
    _
  // Predicated region
  $region14: #{vqvae2_forward.22} parent=0 // pred_check
    _
  $region15: #{vqvae2_forward.22} parent=0 // pred_check_branch
    %20 = sbr.rel (0) target = $region17
  $region16: #{vqvae2_forward.22} parent=0 // pred_region
    _
  $region17: #{vqvae2_forward.22} parent=0 // pred_fallthru
    _
  // Predicated region
  $region18: #{vqvae2_forward.22} parent=0 // pred_check
    _
  $region19: #{vqvae2_forward.22} parent=0 // pred_check_branch
    %22 = sbr.rel (0) target = $region21
  $region20: #{vqvae2_forward.22} parent=0 // pred_region
    _
  $region21: #{vqvae2_forward.22} parent=0 // pred_fallthru
    _
  // Predicated region
  $region22: #{vqvae2_forward.22} parent=0 // pred_check
    _
  $region23: #{vqvae2_forward.22} parent=0 // pred_check_branch
    %24 = sbr.rel (0) target = $region25
  $region24: #{vqvae2_forward.22} parent=0 // pred_region
    _
  $region25: #{vqvae2_forward.22} parent=0 // pred_fallthru
    _
  // Predicated region
  $region26: #{vqvae2_forward.22} parent=0 // pred_check
    _
  $region27: #{vqvae2_forward.22} parent=0 // pred_check_branch
    %26 = sbr.rel (0) target = $region29
  $region28: #{vqvae2_forward.22} parent=0 // pred_region
    _
  $region29: #{vqvae2_forward.22} parent=0 // pred_fallthru
    _
  // Predicated region
  $region30: #{vqvae2_forward.22} parent=0 // pred_check
    _
  $region31: #{vqvae2_forward.22} parent=0 // pred_check_branch
    %28 = sbr.rel (0) target = $region33
  $region32: #{vqvae2_forward.22} parent=0 // pred_region
    _
  $region33: #{vqvae2_forward.22} parent=0 // pred_fallthru
    _
  %v30 = vld [vmem:[%s1] sm:$0x3]
  %v31 = vld [vmem:[%s0] sm:$0xff]
  %v32 = vld [vmem:[%s0 + $0x8] sm:$0xff]
  %v33 = vld [vmem:[%s0 + $0x10] sm:$0xff]
  %v34 = vld [vmem:[%s0 + $0x18] sm:$0xff]
  %v35 = vld [vmem:[%s0 + $0x20] sm:$0xff]
  %v36 = vld [vmem:[%s0 + $0x28] sm:$0xff]
  %v37 = vld [vmem:[%s0 + $0x30] sm:$0xff]
  %v38 = vld [vmem:[%s0 + $0x38] sm:$0xff]
  %v39 = vld [vmem:[%s0 + $0x40] sm:$0x33]
  %v40 = vld [vmem:[%s0 + $0x48] sm:$0x33]
  %v41 = vld [vmem:[%s2] sm:$0xf]
  %43 = vset.pattern.permute.xlu0 0
  %44 = vperm.xlu0 %43, %v41
  %v45 = vpop.permute.xlu0 %44
  %v57 = vunpack.c.l.b16 %v31
  %v58 = vunpack.c.h.b16 %v31
  %v59 = vunpack.c.l.b16 %v32
  %v60 = vunpack.c.h.b16 %v32
  %v61 = vunpack.c.l.b16 %v33
  %v62 = vunpack.c.h.b16 %v33
  %v63 = vunpack.c.l.b16 %v34
  %v64 = vunpack.c.h.b16 %v34
  %v65 = vunpack.c.l.b16 %v35
  %v66 = vunpack.c.h.b16 %v35
  %v67 = vunpack.c.l.b16 %v36
  %v68 = vunpack.c.h.b16 %v36
  %v69 = vunpack.c.l.b16 %v37
  %v70 = vunpack.c.h.b16 %v37
  %v71 = vunpack.c.l.b16 %v38
  %v72 = vunpack.c.h.b16 %v38
  %v73 = vunpack.c.l.b16 %v39
  %v74 = vunpack.c.h.b16 %v39
  %v75 = vunpack.c.l.b16 %v40
  %v76 = vunpack.c.h.b16 %v40
  %v77 = vpack.c.b16 %v61, %v57
  %v78 = vpack.c.b16 %v62, %v58
  %v79 = vpack.c.b16 %v63, %v59
  %v80 = vpack.c.b16 %v64, %v60
  %v81 = vpack.c.b16 %v69, %v65
  %v82 = vpack.c.b16 %v70, %v66
  %v83 = vpack.c.b16 %v71, %v67
  %v84 = vpack.c.b16 %v72, %v68
  %v85 = vpack.c.b16 %v73, %v73
  %v86 = vpack.c.b16 %v74, %v74
  %v87 = vpack.c.b16 %v75, %v75
  %v88 = vpack.c.b16 %v76, %v76
  %vm97 = vcmask 293888
  %v99 = vsel %vm97, %v30, 0
  %vm101 = vcmask 1041408
  %v103 = vsel %vm101, %v85, 0
  %v106 = vsel %vm101, %v86, 0
  %v109 = vsel %vm101, %v87, 0
  %v112 = vsel %vm101, %v88, 0
  %114 = vmatprep.subr.bf16.mxu0 0
  %115 = vmatpush1.bf16.msra.mxu0 0
  %116 = vmatprep.subr.bf16.mxu0 0
  %117 = vmatpush1.bf16.msra.mxu0 0
  %118 = vmatprep.subr.bf16.mxu0 0
  %119 = vmatpush1.bf16.msra.mxu0 0
  %120 = vmatprep.subr.bf16.mxu0 0
  %121 = vmatpush1.bf16.msra.mxu0 0
  %122 = vmatprep.subr.bf16.mxu0 0
  %123 = vmatpush1.bf16.msra.mxu0 0
  %124 = vmatprep.subr.bf16.mxu0 %v106
  %125 = vmatpush1.bf16.msra.mxu0 %v103
  %126 = vmatprep.subr.bf16.mxu0 %v82
  %127 = vmatpush1.bf16.msra.mxu0 %v81
  %128 = vmatprep.subr.bf16.mxu0 %v78
  %129 = vmatpush1.bf16.msra.mxu0 %v77
  %130 = vmatprep.subr.bf16.mxu0 0
  %131 = vmatpush2.bf16.msra.mxu0 0
  %132 = vmatprep.subr.bf16.mxu0 0
  %133 = vmatpush2.bf16.msra.mxu0 0
  %134 = vmatprep.subr.bf16.mxu0 0
  %135 = vmatpush2.bf16.msra.mxu0 0
  %136 = vmatprep.subr.bf16.mxu0 0
  %137 = vmatpush2.bf16.msra.mxu0 0
  %138 = vmatprep.subr.bf16.mxu0 0
  %139 = vmatpush2.bf16.msra.mxu0 0
  %140 = vmatprep.subr.bf16.mxu0 0
  %141 = vmatpush2.bf16.msra.mxu0 0
  %142 = vmatprep.subr.bf16.mxu0 0
  %143 = vmatpush2.bf16.msra.mxu0 0
  %144 = vmatprep.subr.bf16.mxu0 0
  %145 = vmatpush2.bf16.msra.mxu0 0
  %146 = vmatprep.mubr.bf16.mxu0 0
  %147 = vmatmul.mubr.bf16.gmra.mxu0 %v99
  %v148 = vpop.f32.mrf.mxu0
  %v149 = vadd.f32 %v45, %v148
  %v150 = vpop.f32.mrf.mxu0
  %v151 = vadd.f32 %v45, %v150
  %v152 = vpop.f32.mrf.mxu0
  %v153 = vpop.f32.mrf.mxu0
  %154 = vdwg.mxu0
  %155 = vmatprep.subr.bf16.mxu0 0
  %156 = vmatpush1.bf16.msra.mxu0 0
  %157 = vmatprep.subr.bf16.mxu0 0
  %158 = vmatpush1.bf16.msra.mxu0 0
  %159 = vmatprep.subr.bf16.mxu0 0
  %160 = vmatpush1.bf16.msra.mxu0 0
  %161 = vmatprep.subr.bf16.mxu0 0
  %162 = vmatpush1.bf16.msra.mxu0 0
  %163 = vmatprep.subr.bf16.mxu0 0
  %164 = vmatpush1.bf16.msra.mxu0 0
  %165 = vmatprep.subr.bf16.mxu0 %v112
  %166 = vmatpush1.bf16.msra.mxu0 %v109
  %167 = vmatprep.subr.bf16.mxu0 %v84
  %168 = vmatpush1.bf16.msra.mxu0 %v83
  %169 = vmatprep.subr.bf16.mxu0 %v80
  %170 = vmatpush1.bf16.msra.mxu0 %v79
  %171 = vmatprep.subr.bf16.mxu0 0
  %172 = vmatpush2.bf16.msra.mxu0 0
  %173 = vmatprep.subr.bf16.mxu0 0
  %174 = vmatpush2.bf16.msra.mxu0 0
  %175 = vmatprep.subr.bf16.mxu0 0
  %176 = vmatpush2.bf16.msra.mxu0 0
  %177 = vmatprep.subr.bf16.mxu0 0
  %178 = vmatpush2.bf16.msra.mxu0 0
  %179 = vmatprep.subr.bf16.mxu0 0
  %180 = vmatpush2.bf16.msra.mxu0 0
  %181 = vmatprep.subr.bf16.mxu0 0
  %182 = vmatpush2.bf16.msra.mxu0 0
  %183 = vmatprep.subr.bf16.mxu0 0
  %184 = vmatpush2.bf16.msra.mxu0 0
  %185 = vmatprep.subr.bf16.mxu0 0
  %186 = vmatpush2.bf16.msra.mxu0 0
  %187 = vmatprep.mubr.bf16.mxu0 0
  %188 = vmatmul.mubr.bf16.gmra.mxu0 %v99
  %v189 = vpop.f32.mrf.mxu0
  %v190 = vadd.f32 %v45, %v189
  %v191 = vpop.f32.mrf.mxu0
  %v192 = vadd.f32 %v45, %v191
  %v193 = vpop.f32.mrf.mxu0
  %v194 = vpop.f32.mrf.mxu0
  %195 = vdwg.mxu0
  %vm196 = vcmask 1043456
  %v197 = vsel %vm196, %v149, 0.0
  %v198 = vsel %vm196, %v151, 0.0
  %v199 = vadd.f32 %v197, %v198
  %v200 = vsel %vm196, %v190, 0.0
  %v201 = vadd.f32 %v199, %v200
  %v202 = vsel %vm196, %v192, 0.0
  %v203 = vadd.f32 %v201, %v202
  %204 = vadd.xlane.f32.xlu0 %v203
  %v205 = vpop.xlane.xlu0 %204
  %v206 = vmul.f32 %v205, 0.001953125
  %v207 = vsub.f32 %v149, %v206
  %v208 = vsub.f32 %v151, %v206
  %v209 = vsub.f32 %v190, %v206
  %v210 = vsub.f32 %v192, %v206
  %v211 = vmul.f32 %v207, %v207
  %v212 = vmul.f32 %v208, %v208
  %v213 = vmul.f32 %v209, %v209
  %v214 = vmul.f32 %v210, %v210
  %v215 = vsel %vm196, %v211, 0.0
  %v216 = vsel %vm196, %v212, 0.0
  %v217 = vadd.f32 %v215, %v216
  %v218 = vsel %vm196, %v213, 0.0
  %v219 = vadd.f32 %v217, %v218
  %v220 = vsel %vm196, %v214, 0.0
  %v221 = vadd.f32 %v219, %v220
  %222 = vadd.xlane.f32.xlu0 %v221
  %v223 = vpop.xlane.xlu0 %222
  %v224 = vmul.f32 %v223, 0.001953125
  %v225 = vld [vmem:[%s3] sm:$0xf]
  %v226 = vadd.f32 %v224, 1e-05
  %v227 = vrsqrt.pop %v226
  %v228 = vmul.f32 %v225, %v227
  %v229 = vld [vmem:[%s4] sm:$0xf]
  %v230 = vmul.f32 %v206, %v228
  %v231 = vsub.f32 %v229, %v230
  %233 = vset.pattern.permute.xlu0 0
  %234 = vperm.xlu0 %233, %v228
  %v235 = vpop.permute.xlu0 %234
  %v237 = vmul.f32 %v149, %v235
  %v238 = vmul.f32 %v151, %v235
  %v239 = vmul.f32 %v190, %v235
  %v240 = vmul.f32 %v192, %v235
  %242 = vset.pattern.permute.xlu0 0
  %243 = vperm.xlu0 %242, %v231
  %v244 = vpop.permute.xlu0 %243
  %v246 = vadd.f32 %v237, %v244
  %v247 = vadd.f32 %v238, %v244
  %v248 = vadd.f32 %v239, %v244
  %v249 = vadd.f32 %v240, %v244
  %v250 = vmax.f32 %v246, 0.0
  %v251 = vmax.f32 %v247, 0.0
  %v252 = vmax.f32 %v248, 0.0
  %v253 = vmax.f32 %v249, 0.0
  %v254 = vld [vmem:[%s5] sm:$0x3]
  %v255 = vpack.c.bf16 %v250, %v250
  %v256 = vpack.c.bf16 %v251, %v251
  %v257 = vpack.c.bf16 %v252, %v252
  %v258 = vpack.c.bf16 %v253, %v253
  %v259 = vld [vmem:[%s6] sm:$0xf]
  %261 = vset.pattern.permute.xlu0 0
  %262 = vperm.xlu0 %261, %v259
  %v263 = vpop.permute.xlu0 %262
  %vm265 = vcmask 31744
  %v267 = vsel %vm265, %v254, 0
  %v270 = vsel %vm101, %v255, 0
  %v273 = vsel %vm101, %v256, 0
  %v276 = vsel %vm101, %v257, 0
  %v279 = vsel %vm101, %v258, 0
  %281 = vmatprep.subr.bf16.mxu0 0
  %282 = vmatpush1.bf16.msra.mxu0 0
  %283 = vmatprep.subr.bf16.mxu0 0
  %284 = vmatpush1.bf16.msra.mxu0 0
  %285 = vmatprep.subr.bf16.mxu0 0
  %286 = vmatpush1.bf16.msra.mxu0 0
  %287 = vmatprep.subr.bf16.mxu0 0
  %288 = vmatpush1.bf16.msra.mxu0 0
  %289 = vmatprep.subr.bf16.mxu0 0
  %290 = vmatpush1.bf16.msra.mxu0 0
  %291 = vmatprep.subr.bf16.mxu0 0
  %292 = vmatpush1.bf16.msra.mxu0 0
  %293 = vmatprep.subr.bf16.mxu0 0
  %294 = vmatpush1.bf16.msra.mxu0 0
  %295 = vmatprep.subr.bf16.mxu0 %v273
  %296 = vmatpush1.bf16.msra.mxu0 %v270
  %297 = vmatprep.subr.bf16.mxu0 0
  %298 = vmatpush2.bf16.msra.mxu0 0
  %299 = vmatprep.subr.bf16.mxu0 0
  %300 = vmatpush2.bf16.msra.mxu0 0
  %301 = vmatprep.subr.bf16.mxu0 0
  %302 = vmatpush2.bf16.msra.mxu0 0
  %303 = vmatprep.subr.bf16.mxu0 0
  %304 = vmatpush2.bf16.msra.mxu0 0
  %305 = vmatprep.subr.bf16.mxu0 0
  %306 = vmatpush2.bf16.msra.mxu0 0
  %307 = vmatprep.subr.bf16.mxu0 0
  %308 = vmatpush2.bf16.msra.mxu0 0
  %309 = vmatprep.subr.bf16.mxu0 0
  %310 = vmatpush2.bf16.msra.mxu0 0
  %311 = vmatprep.subr.bf16.mxu0 0
  %312 = vmatpush2.bf16.msra.mxu0 0
  %313 = vmatprep.mubr.bf16.mxu0 0
  %314 = vmatmul.mubr.bf16.gmra.mxu0 %v267
  %v315 = vpop.f32.mrf.mxu0
  %v316 = vadd.f32 %v263, %v315
  %v317 = vpop.f32.mrf.mxu0
  %v318 = vadd.f32 %v263, %v317
  %v319 = vpop.f32.mrf.mxu0
  %v320 = vpop.f32.mrf.mxu0
  %321 = vdwg.mxu0
  %322 = vmatprep.subr.bf16.mxu0 0
  %323 = vmatpush1.bf16.msra.mxu0 0
  %324 = vmatprep.subr.bf16.mxu0 0
  %325 = vmatpush1.bf16.msra.mxu0 0
  %326 = vmatprep.subr.bf16.mxu0 0
  %327 = vmatpush1.bf16.msra.mxu0 0
  %328 = vmatprep.subr.bf16.mxu0 0
  %329 = vmatpush1.bf16.msra.mxu0 0
  %330 = vmatprep.subr.bf16.mxu0 0
  %331 = vmatpush1.bf16.msra.mxu0 0
  %332 = vmatprep.subr.bf16.mxu0 0
  %333 = vmatpush1.bf16.msra.mxu0 0
  %334 = vmatprep.subr.bf16.mxu0 0
  %335 = vmatpush1.bf16.msra.mxu0 0
  %336 = vmatprep.subr.bf16.mxu0 %v279
  %337 = vmatpush1.bf16.msra.mxu0 %v276
  %338 = vmatprep.subr.bf16.mxu0 0
  %339 = vmatpush2.bf16.msra.mxu0 0
  %340 = vmatprep.subr.bf16.mxu0 0
  %341 = vmatpush2.bf16.msra.mxu0 0
  %342 = vmatprep.subr.bf16.mxu0 0
  %343 = vmatpush2.bf16.msra.mxu0 0
  %344 = vmatprep.subr.bf16.mxu0 0
  %345 = vmatpush2.bf16.msra.mxu0 0
  %346 = vmatprep.subr.bf16.mxu0 0
  %347 = vmatpush2.bf16.msra.mxu0 0
  %348 = vmatprep.subr.bf16.mxu0 0
  %349 = vmatpush2.bf16.msra.mxu0 0
  %350 = vmatprep.subr.bf16.mxu0 0
  %351 = vmatpush2.bf16.msra.mxu0 0
  %352 = vmatprep.subr.bf16.mxu0 0
  %353 = vmatpush2.bf16.msra.mxu0 0
  %354 = vmatprep.mubr.bf16.mxu0 0
  %355 = vmatmul.mubr.bf16.gmra.mxu0 %v267
  %v356 = vpop.f32.mrf.mxu0
  %v357 = vadd.f32 %v263, %v356
  %v358 = vpop.f32.mrf.mxu0
  %v359 = vadd.f32 %v263, %v358
  %v360 = vpop.f32.mrf.mxu0
  %v361 = vpop.f32.mrf.mxu0
  %362 = vdwg.mxu0
  %v363 = vld [vmem:[%s7] sm:$0xff]
  %v364 = vld [vmem:[%s7 + $0x8] sm:$0xff]
  %v367 = vcombine.high %v363, %v363
  %v368 = vcombine.high %v364, %v364
  %v371 = vadd.f32 %v316, %v363
  %v372 = vadd.f32 %v318, %v367
  %v373 = vadd.f32 %v357, %v364
  %v374 = vadd.f32 %v359, %v368
  %v375 = vmax.f32 %v371, 0.0
  %v376 = vmax.f32 %v372, 0.0
  %v377 = vmax.f32 %v373, 0.0
  %v378 = vmax.f32 %v374, 0.0
  %v383 = vcombine.low %v375, %v376
  %v384 = vcombine.low %v377, %v378
  %387 = vst [vmem:[%s8] sm:$0xff] %v383
  %388 = vst [vmem:[%s8 + $0x8] sm:$0xff] %v384
  // Predicated region
  $region34: #{vqvae2_forward.22} parent=0 // pred_check
    _
  $region35: #{vqvae2_forward.22} parent=0 // pred_check_branch
    %390 = sbr.rel (0) target = $region37
  $region36: #{vqvae2_forward.22} parent=0 // pred_region
    _
  $region37: #{vqvae2_forward.22} parent=0 // pred_fallthru
    _
  // Predicated region
  $region38: #{vqvae2_forward.22} parent=0 // pred_check
    _
  $region39: #{vqvae2_forward.22} parent=0 // pred_check_branch
    %392 = sbr.rel (0) target = $region41
  $region40: #{vqvae2_forward.22} parent=0 // pred_region
    _
  $region41: #{vqvae2_forward.22} parent=0 // pred_fallthru
    _

</llo_original>
